<compile_context>
chip_gen: v7x
topology: tpu7x:2x2x1
jax: 0.10.0
libtpu: 0.0.40
codegen_flags: <defaults>
</compile_context>

<pallas_src>
import jax
import jax.numpy as jnp
from jax.experimental import pallas as pl
from jax.experimental.pallas import tpu as pltpu

LEAKY_SLOPE = 0.01  # InPlaceABN default activation: leaky_relu(0.01)
# TODO(synk): some CasMVSNet variants use plain ReLU for norm_act; set LEAKY_SLOPE = 0.0 there.


def _vmem_limit_bytes():
    try:
        cap = int(pltpu.get_tpu_info().vmem_capacity_bytes)   # 128 MiB v5e/v6e, 64 MiB v7x
    except Exception:
        cap = 64 * 1024 * 1024                                # conservative fallback
    return min(int(0.75 * cap), 96 * 1024 * 1024)


def _pick_d_tile(N, D, Cin, Cout, HWf, HWq, out_bytes, budget):
    """Largest divisor of D whose per-step VMEM footprint fits `budget`, preferring
    tilings that leave >= 4 grid steps (keeps both v7x TCs busy and the pipeline deep)."""
    def vmem_need(t):
        x_blocks = 2 * (t + 2) * Cin * HWf * 2           # double-buffered bf16 d-slices
        out_block = 2 * t * Cout * HWq * out_bytes       # double-buffered output tile
        patch = 27 * Cin * HWq * 2                       # im2col VMEM scratch (bf16)
        epilogue = 2 * Cout * HWq * 4                    # dot result + temp (f32)
        weights = 2 * (Cout * 27 * Cin * 2 + Cout * 4)
        return x_blocks + out_block + patch + epilogue + weights

    divisors = [t for t in range(1, D + 1) if D % t == 0 and t + 2 <= 16]
    fitting = [t for t in divisors if vmem_need(t) <= budget] or [1]
    preferred = [t for t in fitting if N * (D // t) >= 4]
    return max(preferred) if preferred else max(fitting)


def conv_bn_relu3d(x_ncdhw, w_oidhw, scale, bias, *, d_tile=None, out_dtype=jnp.float32):
    """Fused Conv3d(k=3, s=1, p=1, bias=False) + folded BatchNorm3d + LeakyReLU(0.01).

    x_ncdhw: (N, Cin, D, H, W) f32 (PyTorch layout); w_oidhw: (Cout, Cin, 3, 3, 3).
    scale / bias: folded per-channel BN scale / bias (eval running-stats semantics).
    Returns (N, Cout, D, H, W) in out_dtype (f32 by default; pass bf16 when the consumer
    is the next conv/BN layer to halve output HBM traffic).
    """
    N, Cin, D, H, W = x_ncdhw.shape
    Cout = w_oidhw.shape[0]
    Hp, Wp = H + 2, W + 2
    HWp = Hp * Wp
    HWf = HWp + 2          # +2 tail so kw=2 taps of the (discarded) garbage cols stay in bounds
    HWq = H * Wp           # per-d-slice output width (2 garbage columns per row at w >= W)

    vmem_limit = _vmem_limit_bytes()
    if d_tile is None:
        d_tile = _pick_d_tile(N, D, Cin, Cout, HWf, HWq,
                              jnp.dtype(out_dtype).itemsize, int(0.6 * vmem_limit))
    assert D % d_tile == 0
    n_d = D // d_tile
    # TODO(synk): for production feature volumes where Cout*H*Wp alone exceeds the VMEM
    # budget (e.g. Cin=64, H=W~160), add an H-tile grid axis on top of the D tiling.

    # Weights: fold BN scale BEFORE the bf16 cast, repack to (Cout, 27*Cin) with columns
    # ordered (kd, kh, kw, cin) to match the kernel's im2col row order.  Bias stays f32.
    w_folded = w_oidhw * scale[:, None, None, None, None]
    w_mat = jnp.transpose(w_folded, (0, 2, 3, 4, 1)).reshape(Cout, 27 * Cin)
    w_mat = w_mat.astype(jnp.bfloat16)
    bias2 = bias.reshape(Cout, 1).astype(jnp.float32)

    # Activation: zero-pad (p=1), flatten (Hp, Wp) into one lane-dense minor axis, keep the
    # padded-D axis second so block-size-1 Blocked indexing gives element-level overlapping
    # halo offsets without duplicating anything in HBM.  Cast to bf16 for the MXU.
    x_pad = jnp.pad(x_ncdhw, ((0, 0), (0, 0), (1, 1), (1, 1), (1, 1)))
    x_prep = jnp.transpose(x_pad, (0, 2, 1, 3, 4)).reshape(N, D + 2, Cin, HWp)
    x_prep = jnp.pad(x_prep, ((0, 0), (0, 0), (0, 0), (0, HWf - HWp)))
    x_prep = x_prep.astype(jnp.bfloat16)

    def kernel(w_ref, b_ref, *args):
        # args = x_refs[d_tile+2] (each (1,1,Cin,HWf)), o_ref (1,d_tile,Cout,HWq), patch scratch.
        *x_refs, o_ref, patch_ref = args
        w = w_ref[...]                       # (Cout, 27*Cin) bf16, BN scale folded in
        b = b_ref[...]                       # (Cout, 1) f32 folded BN bias (hoisted)
        for dl in range(d_tile):
            # im2col: 27 shifted-window slices -> (27*Cin, HWq) bf16 scratch.
            for kd in range(3):
                xr = x_refs[dl + kd]
                for kh in range(3):
                    for kw in range(3):
                        t = (kd * 3 + kh) * 3 + kw
                        off = kh * Wp + kw
                        patch_ref[t * Cin:(t + 1) * Cin, :] = xr[0, 0, :, off:off + HWq]
            # One fat-K MXU matmul per output d-slice (K = 27*Cin), f32 accumulation.
            acc = jax.lax.dot_general(
                w, patch_ref[...],
                dimension_numbers=(((1,), (0,)), ((), ())),
                preferred_element_type=jnp.float32)
            # Lean f32 epilogue: folded BN bias + LeakyReLU(0.01), lane-dense store.
            y = acc + b
            y = jnp.where(y > 0, y, LEAKY_SLOPE * y)
            o_ref[0, dl] = y.astype(o_ref.dtype)

    # (d_tile + 2) views of the SAME x_prep buffer: block size 1 on the Dp axis makes the
    # block index an element offset, so tile d gets padded slices [d*d_tile, d*d_tile+d_tile+2).
    x_specs = [
        pl.BlockSpec((1, 1, Cin, HWf), lambda n, d, j=j: (n, d * d_tile + j, 0, 0))
        for j in range(d_tile + 2)
    ]

    out_flat = pl.pallas_call(
        kernel,
        out_shape=jax.ShapeDtypeStruct((N, D, Cout, HWq), out_dtype),
        grid_spec=pltpu.PrefetchScalarGridSpec(
            num_scalar_prefetch=0,
            grid=(N, n_d),
            in_specs=[pl.BlockSpec((Cout, 27 * Cin), lambda n, d: (0, 0)),
                      pl.BlockSpec((Cout, 1), lambda n, d: (0, 0))] + x_specs,
            out_specs=pl.BlockSpec((1, d_tile, Cout, HWq), lambda n, d: (n, d, 0, 0)),
            scratch_shapes=[pltpu.VMEM((27 * Cin, HWq), jnp.bfloat16)],
        ),
        compiler_params=pltpu.CompilerParams(
            dimension_semantics=("parallel", "parallel"),
            vmem_limit_bytes=vmem_limit,
        ),
    )(w_mat, bias2, *([x_prep] * (d_tile + 2)))

    # Drop the 2 garbage columns per row and return to NCDHW (single fused XLA copy).
    out = out_flat.reshape(N, D, Cout, H, Wp)[:, :, :, :, :W]
    return jnp.transpose(out, (0, 2, 1, 3, 4))


def reference_ncdhw(x_ncdhw, w_oidhw, scale, bias):
    """Pure-f32 reference matching PyTorch Conv3d(k=3,s=1,p=1,no bias)+BN(eval)+LeakyReLU."""
    y = jax.lax.conv_general_dilated(
        x_ncdhw, w_oidhw,
        window_strides=(1, 1, 1),
        padding=((1, 1), (1, 1), (1, 1)),
        dimension_numbers=("NCDHW", "OIDHW", "NCDHW"),
        precision=jax.lax.Precision.HIGHEST,
    )
    y = y * scale[None, :, None, None, None] + bias[None, :, None, None, None]
    return jnp.where(y > 0, y, LEAKY_SLOPE * y)


def reference_bf16_folded(x_ncdhw, w_oidhw, scale, bias):
    """Reference with the kernel's numerics: scale folded into weights, bf16 conv operands."""
    w_folded = w_oidhw * scale[:, None, None, None, None]
    xq = x_ncdhw.astype(jnp.bfloat16).astype(jnp.float32)
    wq = w_folded.astype(jnp.bfloat16).astype(jnp.float32)
    y = jax.lax.conv_general_dilated(
        xq, wq,
        window_strides=(1, 1, 1),
        padding=((1, 1), (1, 1), (1, 1)),
        dimension_numbers=("NCDHW", "OIDHW", "NCDHW"),
        precision=jax.lax.Precision.HIGHEST,
    )
    y = y + bias[None, :, None, None, None]
    return jnp.where(y > 0, y, LEAKY_SLOPE * y)


if __name__ == "__main__":
    # Small shapes consistent with the module: N=2, Cin=4, Cout=8, D=8, H=W=16.
    N, Cin, Cout, D, H, W = 2, 4, 8, 8, 16, 16
    eps = 1e-5

    key = jax.random.PRNGKey(0)
    kx, kw, kg, kb, km, kv = jax.random.split(key, 6)

    # PyTorch-convention input (NCDHW) and Conv3d weight (OIDHW), built in-script.
    x_ncdhw = jax.random.normal(kx, (N, Cin, D, H, W), jnp.float32)
    w_oidhw = 0.1 * jax.random.normal(kw, (Cout, Cin, 3, 3, 3), jnp.float32)

    # Deterministic BatchNorm3d parameters / running stats.
    gamma = jax.random.uniform(kg, (Cout,), jnp.float32, 0.5, 1.5)
    beta = 0.1 * jax.random.normal(kb, (Cout,), jnp.float32)
    running_mean = 0.1 * jax.random.normal(km, (Cout,), jnp.float32)
    running_var = jax.random.uniform(kv, (Cout,), jnp.float32, 0.5, 1.5)

    # Fold BN into per-channel scale/bias (eval / running-stats semantics).
    # TODO(synk): InPlaceABN in training mode uses batch statistics; not supported here.
    scale = gamma / jnp.sqrt(running_var + eps)
    bias = beta - running_mean * scale

    fused = jax.jit(conv_bn_relu3d)
    out = fused(x_ncdhw, w_oidhw, scale, bias)
    jax.block_until_ready(out)
    assert out.shape == (N, Cout, D, H, W)

    # Tight check vs a reference with the kernel's exact numerics (folded scale, bf16 operands).
    ref_q = reference_bf16_folded(x_ncdhw, w_oidhw, scale, bias)
    assert jnp.allclose(out, ref_q, atol=1e-3, rtol=1e-3), "mismatch vs bf16-folded reference"

    # Loose sanity check vs the full-f32 unfused reference (difference = bf16 rounding).
    ref_f32 = reference_ncdhw(x_ncdhw, w_oidhw, scale, bias)
    assert jnp.allclose(out, ref_f32, atol=5e-2, rtol=5e-2), "mismatch vs f32 reference"

    print("KERNEL_OK")
</pallas_src>

<mosaic_0001>
module attributes {stable_mosaic.version = 11 : i64} {
  func.func @kernel(%arg0: i32, %arg1: i32, %arg2: memref<8x108xbf16, #tpu.memory_space<vmem>>, %arg3: memref<8x1xf32, #tpu.memory_space<vmem>>, %arg4: memref<1x1x4x326xbf16, #tpu.memory_space<vmem>>, %arg5: memref<1x1x4x326xbf16, #tpu.memory_space<vmem>>, %arg6: memref<1x1x4x326xbf16, #tpu.memory_space<vmem>>, %arg7: memref<1x1x4x326xbf16, #tpu.memory_space<vmem>>, %arg8: memref<1x1x4x326xbf16, #tpu.memory_space<vmem>>, %arg9: memref<1x1x4x326xbf16, #tpu.memory_space<vmem>>, %arg10: memref<1x4x8x288xf32, #tpu.memory_space<vmem>>, %arg11: memref<108x288xbf16, #tpu.memory_space<vmem>>) attributes {dimension_semantics = [#tpu.dimension_semantics<parallel>, #tpu.dimension_semantics<parallel>], iteration_bounds = array<i64: 2, 2>, scalar_prefetch = 0 : i64, scratch_operands = 1 : i64, tpu.core_type = #tpu.core_type<tc>, window_params = [{pipeline_mode = #tpu.pipeline_mode<synchronous>, transform_indices = @transform_0, window_bounds = array<i64: 8, 108>}, {pipeline_mode = #tpu.pipeline_mode<synchronous>, transform_indices = @transform_1, window_bounds = array<i64: 8, 1>}, {transform_indices = @transform_2, window_bounds = array<i64: 1, 1, 4, 326>}, {transform_indices = @transform_3, window_bounds = array<i64: 1, 1, 4, 326>}, {transform_indices = @transform_4, window_bounds = array<i64: 1, 1, 4, 326>}, {transform_indices = @transform_5, window_bounds = array<i64: 1, 1, 4, 326>}, {transform_indices = @transform_6, window_bounds = array<i64: 1, 1, 4, 326>}, {transform_indices = @transform_7, window_bounds = array<i64: 1, 1, 4, 326>}, {transform_indices = @transform_8, window_bounds = array<i64: 1, 4, 8, 288>}]} {
    %c0 = arith.constant 0 : index
    %c0_0 = arith.constant 0 : index
    %0 = vector.load %arg2[%c0, %c0_0] : memref<8x108xbf16, #tpu.memory_space<vmem>>, vector<8x108xbf16>
    %c0_1 = arith.constant 0 : index
    %c0_2 = arith.constant 0 : index
    %1 = vector.load %arg3[%c0_1, %c0_2] : memref<8x1xf32, #tpu.memory_space<vmem>>, vector<8x1xf32>
    %c0_3 = arith.constant 0 : index
    %c0_4 = arith.constant 0 : index
    %c0_5 = arith.constant 0 : index
    %c0_6 = arith.constant 0 : index
    %2 = vector.load %arg4[%c0_3, %c0_4, %c0_5, %c0_6] : memref<1x1x4x326xbf16, #tpu.memory_space<vmem>>, vector<1x1x4x288xbf16>
    %3 = vector.shape_cast %2 : vector<1x1x4x288xbf16> to vector<4x288xbf16>
    %c0_7 = arith.constant 0 : index
    %c0_8 = arith.constant 0 : index
    %4 = vector.load %arg11[%c0_7, %c0_8] : memref<108x288xbf16, #tpu.memory_space<vmem>>, vector<4x288xbf16>
    tpu.vector_store %arg11[%c0_7, %c0_8], %3 {strides = array<i32>} : memref<108x288xbf16, #tpu.memory_space<vmem>>, vector<4x288xbf16>,
    %c0_9 = arith.constant 0 : index
    %c0_10 = arith.constant 0 : index
    %c0_11 = arith.constant 0 : index
    %c1 = arith.constant 1 : index
    %5 = vector.load %arg4[%c0_9, %c0_10, %c0_11, %c1] : memref<1x1x4x326xbf16, #tpu.memory_space<vmem>>, vector<1x1x4x288xbf16>
    %6 = vector.shape_cast %5 : vector<1x1x4x288xbf16> to vector<4x288xbf16>
    %c4 = arith.constant 4 : index
    %c0_12 = arith.constant 0 : index
    %7 = vector.load %arg11[%c4, %c0_12] : memref<108x288xbf16, #tpu.memory_space<vmem>>, vector<4x288xbf16>
    tpu.vector_store %arg11[%c4, %c0_12], %6 {strides = array<i32>} : memref<108x288xbf16, #tpu.memory_space<vmem>>, vector<4x288xbf16>,
    %c0_13 = arith.constant 0 : index
    %c0_14 = arith.constant 0 : index
    %c0_15 = arith.constant 0 : index
    %c2 = arith.constant 2 : index
    %8 = vector.load %arg4[%c0_13, %c0_14, %c0_15, %c2] : memref<1x1x4x326xbf16, #tpu.memory_space<vmem>>, vector<1x1x4x288xbf16>
    %9 = vector.shape_cast %8 : vector<1x1x4x288xbf16> to vector<4x288xbf16>
    %c8 = arith.constant 8 : index
    %c0_16 = arith.constant 0 : index
    %10 = vector.load %arg11[%c8, %c0_16] : memref<108x288xbf16, #tpu.memory_space<vmem>>, vector<4x288xbf16>
    tpu.vector_store %arg11[%c8, %c0_16], %9 {strides = array<i32>} : memref<108x288xbf16, #tpu.memory_space<vmem>>, vector<4x288xbf16>,
    %c0_17 = arith.constant 0 : index
    %c0_18 = arith.constant 0 : index
    %c0_19 = arith.constant 0 : index
    %c18 = arith.constant 18 : index
    %11 = vector.load %arg4[%c0_17, %c0_18, %c0_19, %c18] : memref<1x1x4x326xbf16, #tpu.memory_space<vmem>>, vector<1x1x4x288xbf16>
    %12 = vector.shape_cast %11 : vector<1x1x4x288xbf16> to vector<4x288xbf16>
    %c12 = arith.constant 12 : index
    %c0_20 = arith.constant 0 : index
    %13 = vector.load %arg11[%c12, %c0_20] : memref<108x288xbf16, #tpu.memory_space<vmem>>, vector<4x288xbf16>
    tpu.vector_store %arg11[%c12, %c0_20], %12 {strides = array<i32>} : memref<108x288xbf16, #tpu.memory_space<vmem>>, vector<4x288xbf16>,
    %c0_21 = arith.constant 0 : index
    %c0_22 = arith.constant 0 : index
    %c0_23 = arith.constant 0 : index
    %c19 = arith.constant 19 : index
    %14 = vector.load %arg4[%c0_21, %c0_22, %c0_23, %c19] : memref<1x1x4x326xbf16, #tpu.memory_space<vmem>>, vector<1x1x4x288xbf16>
    %15 = vector.shape_cast %14 : vector<1x1x4x288xbf16> to vector<4x288xbf16>
    %c16 = arith.constant 16 : index
    %c0_24 = arith.constant 0 : index
    %16 = vector.load %arg11[%c16, %c0_24] : memref<108x288xbf16, #tpu.memory_space<vmem>>, vector<4x288xbf16>
    tpu.vector_store %arg11[%c16, %c0_24], %15 {strides = array<i32>} : memref<108x288xbf16, #tpu.memory_space<vmem>>, vector<4x288xbf16>,
    %c0_25 = arith.constant 0 : index
    %c0_26 = arith.constant 0 : index
    %c0_27 = arith.constant 0 : index
    %c20 = arith.constant 20 : index
    %17 = vector.load %arg4[%c0_25, %c0_26, %c0_27, %c20] : memref<1x1x4x326xbf16, #tpu.memory_space<vmem>>, vector<1x1x4x288xbf16>
    %18 = vector.shape_cast %17 : vector<1x1x4x288xbf16> to vector<4x288xbf16>
    %c20_28 = arith.constant 20 : index
    %c0_29 = arith.constant 0 : index
    %19 = vector.load %arg11[%c20_28, %c0_29] : memref<108x288xbf16, #tpu.memory_space<vmem>>, vector<4x288xbf16>
    tpu.vector_store %arg11[%c20_28, %c0_29], %18 {strides = array<i32>} : memref<108x288xbf16, #tpu.memory_space<vmem>>, vector<4x288xbf16>,
    %c0_30 = arith.constant 0 : index
    %c0_31 = arith.constant 0 : index
    %c0_32 = arith.constant 0 : index
    %c36 = arith.constant 36 : index
    %20 = vector.load %arg4[%c0_30, %c0_31, %c0_32, %c36] : memref<1x1x4x326xbf16, #tpu.memory_space<vmem>>, vector<1x1x4x288xbf16>
    %21 = vector.shape_cast %20 : vector<1x1x4x288xbf16> to vector<4x288xbf16>
    %c24 = arith.constant 24 : index
    %c0_33 = arith.constant 0 : index
    %22 = vector.load %arg11[%c24, %c0_33] : memref<108x288xbf16, #tpu.memory_space<vmem>>, vector<4x288xbf16>
    tpu.vector_store %arg11[%c24, %c0_33], %21 {strides = array<i32>} : memref<108x288xbf16, #tpu.memory_space<vmem>>, vector<4x288xbf16>,
    %c0_34 = arith.constant 0 : index
    %c0_35 = arith.constant 0 : index
    %c0_36 = arith.constant 0 : index
    %c37 = arith.constant 37 : index
    %23 = vector.load %arg4[%c0_34, %c0_35, %c0_36, %c37] : memref<1x1x4x326xbf16, #tpu.memory_space<vmem>>, vector<1x1x4x288xbf16>
    %24 = vector.shape_cast %23 : vector<1x1x4x288xbf16> to vector<4x288xbf16>
    %c28 = arith.constant 28 : index
    %c0_37 = arith.constant 0 : index
    %25 = vector.load %arg11[%c28, %c0_37] : memref<108x288xbf16, #tpu.memory_space<vmem>>, vector<4x288xbf16>
    tpu.vector_store %arg11[%c28, %c0_37], %24 {strides = array<i32>} : memref<108x288xbf16, #tpu.memory_space<vmem>>, vector<4x288xbf16>,
    %c0_38 = arith.constant 0 : index
    %c0_39 = arith.constant 0 : index
    %c0_40 = arith.constant 0 : index
    %c38 = arith.constant 38 : index
    %26 = vector.load %arg4[%c0_38, %c0_39, %c0_40, %c38] : memref<1x1x4x326xbf16, #tpu.memory_space<vmem>>, vector<1x1x4x288xbf16>
    %27 = vector.shape_cast %26 : vector<1x1x4x288xbf16> to vector<4x288xbf16>
    %c32 = arith.constant 32 : index
    %c0_41 = arith.constant 0 : index
    %28 = vector.load %arg11[%c32, %c0_41] : memref<108x288xbf16, #tpu.memory_space<vmem>>, vector<4x288xbf16>
    tpu.vector_store %arg11[%c32, %c0_41], %27 {strides = array<i32>} : memref<108x288xbf16, #tpu.memory_space<vmem>>, vector<4x288xbf16>,
    %c0_42 = arith.constant 0 : index
    %c0_43 = arith.constant 0 : index
    %c0_44 = arith.constant 0 : index
    %c0_45 = arith.constant 0 : index
    %29 = vector.load %arg5[%c0_42, %c0_43, %c0_44, %c0_45] : memref<1x1x4x326xbf16, #tpu.memory_space<vmem>>, vector<1x1x4x288xbf16>
    %30 = vector.shape_cast %29 : vector<1x1x4x288xbf16> to vector<4x288xbf16>
    %c36_46 = arith.constant 36 : index
    %c0_47 = arith.constant 0 : index
    %31 = vector.load %arg11[%c36_46, %c0_47] : memref<108x288xbf16, #tpu.memory_space<vmem>>, vector<4x288xbf16>
    tpu.vector_store %arg11[%c36_46, %c0_47], %30 {strides = array<i32>} : memref<108x288xbf16, #tpu.memory_space<vmem>>, vector<4x288xbf16>,
    %c0_48 = arith.constant 0 : index
    %c0_49 = arith.constant 0 : index
    %c0_50 = arith.constant 0 : index
    %c1_51 = arith.constant 1 : index
    %32 = vector.load %arg5[%c0_48, %c0_49, %c0_50, %c1_51] : memref<1x1x4x326xbf16, #tpu.memory_space<vmem>>, vector<1x1x4x288xbf16>
    %33 = vector.shape_cast %32 : vector<1x1x4x288xbf16> to vector<4x288xbf16>
    %c40 = arith.constant 40 : index
    %c0_52 = arith.constant 0 : index
    %34 = vector.load %arg11[%c40, %c0_52] : memref<108x288xbf16, #tpu.memory_space<vmem>>, vector<4x288xbf16>
    tpu.vector_store %arg11[%c40, %c0_52], %33 {strides = array<i32>} : memref<108x288xbf16, #tpu.memory_space<vmem>>, vector<4x288xbf16>,
    %c0_53 = arith.constant 0 : index
    %c0_54 = arith.constant 0 : index
    %c0_55 = arith.constant 0 : index
    %c2_56 = arith.constant 2 : index
    %35 = vector.load %arg5[%c0_53, %c0_54, %c0_55, %c2_56] : memref<1x1x4x326xbf16, #tpu.memory_space<vmem>>, vector<1x1x4x288xbf16>
    %36 = vector.shape_cast %35 : vector<1x1x4x288xbf16> to vector<4x288xbf16>
    %c44 = arith.constant 44 : index
    %c0_57 = arith.constant 0 : index
    %37 = vector.load %arg11[%c44, %c0_57] : memref<108x288xbf16, #tpu.memory_space<vmem>>, vector<4x288xbf16>
    tpu.vector_store %arg11[%c44, %c0_57], %36 {strides = array<i32>} : memref<108x288xbf16, #tpu.memory_space<vmem>>, vector<4x288xbf16>,
    %c0_58 = arith.constant 0 : index
    %c0_59 = arith.constant 0 : index
    %c0_60 = arith.constant 0 : index
    %c18_61 = arith.constant 18 : index
    %38 = vector.load %arg5[%c0_58, %c0_59, %c0_60, %c18_61] : memref<1x1x4x326xbf16, #tpu.memory_space<vmem>>, vector<1x1x4x288xbf16>
    %39 = vector.shape_cast %38 : vector<1x1x4x288xbf16> to vector<4x288xbf16>
    %c48 = arith.constant 48 : index
    %c0_62 = arith.constant 0 : index
    %40 = vector.load %arg11[%c48, %c0_62] : memref<108x288xbf16, #tpu.memory_space<vmem>>, vector<4x288xbf16>
    tpu.vector_store %arg11[%c48, %c0_62], %39 {strides = array<i32>} : memref<108x288xbf16, #tpu.memory_space<vmem>>, vector<4x288xbf16>,
    %c0_63 = arith.constant 0 : index
    %c0_64 = arith.constant 0 : index
    %c0_65 = arith.constant 0 : index
    %c19_66 = arith.constant 19 : index
    %41 = vector.load %arg5[%c0_63, %c0_64, %c0_65, %c19_66] : memref<1x1x4x326xbf16, #tpu.memory_space<vmem>>, vector<1x1x4x288xbf16>
    %42 = vector.shape_cast %41 : vector<1x1x4x288xbf16> to vector<4x288xbf16>
    %c52 = arith.constant 52 : index
    %c0_67 = arith.constant 0 : index
    %43 = vector.load %arg11[%c52, %c0_67] : memref<108x288xbf16, #tpu.memory_space<vmem>>, vector<4x288xbf16>
    tpu.vector_store %arg11[%c52, %c0_67], %42 {strides = array<i32>} : memref<108x288xbf16, #tpu.memory_space<vmem>>, vector<4x288xbf16>,
    %c0_68 = arith.constant 0 : index
    %c0_69 = arith.constant 0 : index
    %c0_70 = arith.constant 0 : index
    %c20_71 = arith.constant 20 : index
    %44 = vector.load %arg5[%c0_68, %c0_69, %c0_70, %c20_71] : memref<1x1x4x326xbf16, #tpu.memory_space<vmem>>, vector<1x1x4x288xbf16>
    %45 = vector.shape_cast %44 : vector<1x1x4x288xbf16> to vector<4x288xbf16>
    %c56 = arith.constant 56 : index
    %c0_72 = arith.constant 0 : index
    %46 = vector.load %arg11[%c56, %c0_72] : memref<108x288xbf16, #tpu.memory_space<vmem>>, vector<4x288xbf16>
    tpu.vector_store %arg11[%c56, %c0_72], %45 {strides = array<i32>} : memref<108x288xbf16, #tpu.memory_space<vmem>>, vector<4x288xbf16>,
    %c0_73 = arith.constant 0 : index
    %c0_74 = arith.constant 0 : index
    %c0_75 = arith.constant 0 : index
    %c36_76 = arith.constant 36 : index
    %47 = vector.load %arg5[%c0_73, %c0_74, %c0_75, %c36_76] : memref<1x1x4x326xbf16, #tpu.memory_space<vmem>>, vector<1x1x4x288xbf16>
    %48 = vector.shape_cast %47 : vector<1x1x4x288xbf16> to vector<4x288xbf16>
    %c60 = arith.constant 60 : index
    %c0_77 = arith.constant 0 : index
    %49 = vector.load %arg11[%c60, %c0_77] : memref<108x288xbf16, #tpu.memory_space<vmem>>, vector<4x288xbf16>
    tpu.vector_store %arg11[%c60, %c0_77], %48 {strides = array<i32>} : memref<108x288xbf16, #tpu.memory_space<vmem>>, vector<4x288xbf16>,
    %c0_78 = arith.constant 0 : index
    %c0_79 = arith.constant 0 : index
    %c0_80 = arith.constant 0 : index
    %c37_81 = arith.constant 37 : index
    %50 = vector.load %arg5[%c0_78, %c0_79, %c0_80, %c37_81] : memref<1x1x4x326xbf16, #tpu.memory_space<vmem>>, vector<1x1x4x288xbf16>
    %51 = vector.shape_cast %50 : vector<1x1x4x288xbf16> to vector<4x288xbf16>
    %c64 = arith.constant 64 : index
    %c0_82 = arith.constant 0 : index
    %52 = vector.load %arg11[%c64, %c0_82] : memref<108x288xbf16, #tpu.memory_space<vmem>>, vector<4x288xbf16>
    tpu.vector_store %arg11[%c64, %c0_82], %51 {strides = array<i32>} : memref<108x288xbf16, #tpu.memory_space<vmem>>, vector<4x288xbf16>,
    %c0_83 = arith.constant 0 : index
    %c0_84 = arith.constant 0 : index
    %c0_85 = arith.constant 0 : index
    %c38_86 = arith.constant 38 : index
    %53 = vector.load %arg5[%c0_83, %c0_84, %c0_85, %c38_86] : memref<1x1x4x326xbf16, #tpu.memory_space<vmem>>, vector<1x1x4x288xbf16>
    %54 = vector.shape_cast %53 : vector<1x1x4x288xbf16> to vector<4x288xbf16>
    %c68 = arith.constant 68 : index
    %c0_87 = arith.constant 0 : index
    %55 = vector.load %arg11[%c68, %c0_87] : memref<108x288xbf16, #tpu.memory_space<vmem>>, vector<4x288xbf16>
    tpu.vector_store %arg11[%c68, %c0_87], %54 {strides = array<i32>} : memref<108x288xbf16, #tpu.memory_space<vmem>>, vector<4x288xbf16>,
    %c0_88 = arith.constant 0 : index
    %c0_89 = arith.constant 0 : index
    %c0_90 = arith.constant 0 : index
    %c0_91 = arith.constant 0 : index
    %56 = vector.load %arg6[%c0_88, %c0_89, %c0_90, %c0_91] : memref<1x1x4x326xbf16, #tpu.memory_space<vmem>>, vector<1x1x4x288xbf16>
    %57 = vector.shape_cast %56 : vector<1x1x4x288xbf16> to vector<4x288xbf16>
    %c72 = arith.constant 72 : index
    %c0_92 = arith.constant 0 : index
    %58 = vector.load %arg11[%c72, %c0_92] : memref<108x288xbf16, #tpu.memory_space<vmem>>, vector<4x288xbf16>
    tpu.vector_store %arg11[%c72, %c0_92], %57 {strides = array<i32>} : memref<108x288xbf16, #tpu.memory_space<vmem>>, vector<4x288xbf16>,
    %c0_93 = arith.constant 0 : index
    %c0_94 = arith.constant 0 : index
    %c0_95 = arith.constant 0 : index
    %c1_96 = arith.constant 1 : index
    %59 = vector.load %arg6[%c0_93, %c0_94, %c0_95, %c1_96] : memref<1x1x4x326xbf16, #tpu.memory_space<vmem>>, vector<1x1x4x288xbf16>
    %60 = vector.shape_cast %59 : vector<1x1x4x288xbf16> to vector<4x288xbf16>
    %c76 = arith.constant 76 : index
    %c0_97 = arith.constant 0 : index
    %61 = vector.load %arg11[%c76, %c0_97] : memref<108x288xbf16, #tpu.memory_space<vmem>>, vector<4x288xbf16>
    tpu.vector_store %arg11[%c76, %c0_97], %60 {strides = array<i32>} : memref<108x288xbf16, #tpu.memory_space<vmem>>, vector<4x288xbf16>,
    %c0_98 = arith.constant 0 : index
    %c0_99 = arith.constant 0 : index
    %c0_100 = arith.constant 0 : index
    %c2_101 = arith.constant 2 : index
    %62 = vector.load %arg6[%c0_98, %c0_99, %c0_100, %c2_101] : memref<1x1x4x326xbf16, #tpu.memory_space<vmem>>, vector<1x1x4x288xbf16>
    %63 = vector.shape_cast %62 : vector<1x1x4x288xbf16> to vector<4x288xbf16>
    %c80 = arith.constant 80 : index
    %c0_102 = arith.constant 0 : index
    %64 = vector.load %arg11[%c80, %c0_102] : memref<108x288xbf16, #tpu.memory_space<vmem>>, vector<4x288xbf16>
    tpu.vector_store %arg11[%c80, %c0_102], %63 {strides = array<i32>} : memref<108x288xbf16, #tpu.memory_space<vmem>>, vector<4x288xbf16>,
    %c0_103 = arith.constant 0 : index
    %c0_104 = arith.constant 0 : index
    %c0_105 = arith.constant 0 : index
    %c18_106 = arith.constant 18 : index
    %65 = vector.load %arg6[%c0_103, %c0_104, %c0_105, %c18_106] : memref<1x1x4x326xbf16, #tpu.memory_space<vmem>>, vector<1x1x4x288xbf16>
    %66 = vector.shape_cast %65 : vector<1x1x4x288xbf16> to vector<4x288xbf16>
    %c84 = arith.constant 84 : index
    %c0_107 = arith.constant 0 : index
    %67 = vector.load %arg11[%c84, %c0_107] : memref<108x288xbf16, #tpu.memory_space<vmem>>, vector<4x288xbf16>
    tpu.vector_store %arg11[%c84, %c0_107], %66 {strides = array<i32>} : memref<108x288xbf16, #tpu.memory_space<vmem>>, vector<4x288xbf16>,
    %c0_108 = arith.constant 0 : index
    %c0_109 = arith.constant 0 : index
    %c0_110 = arith.constant 0 : index
    %c19_111 = arith.constant 19 : index
    %68 = vector.load %arg6[%c0_108, %c0_109, %c0_110, %c19_111] : memref<1x1x4x326xbf16, #tpu.memory_space<vmem>>, vector<1x1x4x288xbf16>
    %69 = vector.shape_cast %68 : vector<1x1x4x288xbf16> to vector<4x288xbf16>
    %c88 = arith.constant 88 : index
    %c0_112 = arith.constant 0 : index
    %70 = vector.load %arg11[%c88, %c0_112] : memref<108x288xbf16, #tpu.memory_space<vmem>>, vector<4x288xbf16>
    tpu.vector_store %arg11[%c88, %c0_112], %69 {strides = array<i32>} : memref<108x288xbf16, #tpu.memory_space<vmem>>, vector<4x288xbf16>,
    %c0_113 = arith.constant 0 : index
    %c0_114 = arith.constant 0 : index
    %c0_115 = arith.constant 0 : index
    %c20_116 = arith.constant 20 : index
    %71 = vector.load %arg6[%c0_113, %c0_114, %c0_115, %c20_116] : memref<1x1x4x326xbf16, #tpu.memory_space<vmem>>, vector<1x1x4x288xbf16>
    %72 = vector.shape_cast %71 : vector<1x1x4x288xbf16> to vector<4x288xbf16>
    %c92 = arith.constant 92 : index
    %c0_117 = arith.constant 0 : index
    %73 = vector.load %arg11[%c92, %c0_117] : memref<108x288xbf16, #tpu.memory_space<vmem>>, vector<4x288xbf16>
    tpu.vector_store %arg11[%c92, %c0_117], %72 {strides = array<i32>} : memref<108x288xbf16, #tpu.memory_space<vmem>>, vector<4x288xbf16>,
    %c0_118 = arith.constant 0 : index
    %c0_119 = arith.constant 0 : index
    %c0_120 = arith.constant 0 : index
    %c36_121 = arith.constant 36 : index
    %74 = vector.load %arg6[%c0_118, %c0_119, %c0_120, %c36_121] : memref<1x1x4x326xbf16, #tpu.memory_space<vmem>>, vector<1x1x4x288xbf16>
    %75 = vector.shape_cast %74 : vector<1x1x4x288xbf16> to vector<4x288xbf16>
    %c96 = arith.constant 96 : index
    %c0_122 = arith.constant 0 : index
    %76 = vector.load %arg11[%c96, %c0_122] : memref<108x288xbf16, #tpu.memory_space<vmem>>, vector<4x288xbf16>
    tpu.vector_store %arg11[%c96, %c0_122], %75 {strides = array<i32>} : memref<108x288xbf16, #tpu.memory_space<vmem>>, vector<4x288xbf16>,
    %c0_123 = arith.constant 0 : index
    %c0_124 = arith.constant 0 : index
    %c0_125 = arith.constant 0 : index
    %c37_126 = arith.constant 37 : index
    %77 = vector.load %arg6[%c0_123, %c0_124, %c0_125, %c37_126] : memref<1x1x4x326xbf16, #tpu.memory_space<vmem>>, vector<1x1x4x288xbf16>
    %78 = vector.shape_cast %77 : vector<1x1x4x288xbf16> to vector<4x288xbf16>
    %c100 = arith.constant 100 : index
    %c0_127 = arith.constant 0 : index
    %79 = vector.load %arg11[%c100, %c0_127] : memref<108x288xbf16, #tpu.memory_space<vmem>>, vector<4x288xbf16>
    tpu.vector_store %arg11[%c100, %c0_127], %78 {strides = array<i32>} : memref<108x288xbf16, #tpu.memory_space<vmem>>, vector<4x288xbf16>,
    %c0_128 = arith.constant 0 : index
    %c0_129 = arith.constant 0 : index
    %c0_130 = arith.constant 0 : index
    %c38_131 = arith.constant 38 : index
    %80 = vector.load %arg6[%c0_128, %c0_129, %c0_130, %c38_131] : memref<1x1x4x326xbf16, #tpu.memory_space<vmem>>, vector<1x1x4x288xbf16>
    %81 = vector.shape_cast %80 : vector<1x1x4x288xbf16> to vector<4x288xbf16>
    %c104 = arith.constant 104 : index
    %c0_132 = arith.constant 0 : index
    %82 = vector.load %arg11[%c104, %c0_132] : memref<108x288xbf16, #tpu.memory_space<vmem>>, vector<4x288xbf16>
    tpu.vector_store %arg11[%c104, %c0_132], %81 {strides = array<i32>} : memref<108x288xbf16, #tpu.memory_space<vmem>>, vector<4x288xbf16>,
    %c0_133 = arith.constant 0 : index
    %c0_134 = arith.constant 0 : index
    %83 = vector.load %arg11[%c0_133, %c0_134] : memref<108x288xbf16, #tpu.memory_space<vmem>>, vector<108x288xbf16>
    %cst = arith.constant dense<0.000000e+00> : vector<8x288xf32>
    %84 = tpu.matmul %0, %83, %cst {dimension_numbers = #tpu.dot_dimension_numbers<[1], [0], [0], [1], [0, 0, 1, 1], [], []>} : vector<8x108xbf16>, vector<108x288xbf16>, vector<8x288xf32> -> vector<8x288xf32>
    %85 = vector.broadcast %1 : vector<8x1xf32> to vector<8x288xf32>
    %86 = arith.addf %84, %85 : vector<8x288xf32>
    %cst_135 = arith.constant 0.000000e+00 : f32
    %87 = vector.broadcast %cst_135 : f32 to vector<8x288xf32>
    %88 = arith.cmpf ogt, %86, %87 : vector<8x288xf32>
    %cst_136 = arith.constant 0.00999999977 : f32
    %89 = vector.broadcast %cst_136 : f32 to vector<8x288xf32>
    %90 = arith.mulf %89, %86 : vector<8x288xf32>
    %91 = arith.select %88, %86, %90 : vector<8x288xi1>, vector<8x288xf32>
    %c0_137 = arith.constant 0 : index
    %c0_138 = arith.constant 0 : index
    %c0_139 = arith.constant 0 : index
    %c0_140 = arith.constant 0 : index
    %92 = vector.load %arg10[%c0_137, %c0_138, %c0_139, %c0_140] : memref<1x4x8x288xf32, #tpu.memory_space<vmem>>, vector<1x1x8x288xf32>
    %93 = vector.shape_cast %92 : vector<1x1x8x288xf32> to vector<8x288xf32>
    %94 = vector.shape_cast %91 : vector<8x288xf32> to vector<1x1x8x288xf32>
    tpu.vector_store %arg10[%c0_137, %c0_138, %c0_139, %c0_140], %94 {strides = array<i32>} : memref<1x4x8x288xf32, #tpu.memory_space<vmem>>, vector<1x1x8x288xf32>,
    %c0_141 = arith.constant 0 : index
    %c0_142 = arith.constant 0 : index
    %c0_143 = arith.constant 0 : index
    %c0_144 = arith.constant 0 : index
    %95 = vector.load %arg5[%c0_141, %c0_142, %c0_143, %c0_144] : memref<1x1x4x326xbf16, #tpu.memory_space<vmem>>, vector<1x1x4x288xbf16>
    %96 = vector.shape_cast %95 : vector<1x1x4x288xbf16> to vector<4x288xbf16>
    %c0_145 = arith.constant 0 : index
    %c0_146 = arith.constant 0 : index
    %97 = vector.load %arg11[%c0_145, %c0_146] : memref<108x288xbf16, #tpu.memory_space<vmem>>, vector<4x288xbf16>
    tpu.vector_store %arg11[%c0_145, %c0_146], %96 {strides = array<i32>} : memref<108x288xbf16, #tpu.memory_space<vmem>>, vector<4x288xbf16>,
    %c0_147 = arith.constant 0 : index
    %c0_148 = arith.constant 0 : index
    %c0_149 = arith.constant 0 : index
    %c1_150 = arith.constant 1 : index
    %98 = vector.load %arg5[%c0_147, %c0_148, %c0_149, %c1_150] : memref<1x1x4x326xbf16, #tpu.memory_space<vmem>>, vector<1x1x4x288xbf16>
    %99 = vector.shape_cast %98 : vector<1x1x4x288xbf16> to vector<4x288xbf16>
    %c4_151 = arith.constant 4 : index
    %c0_152 = arith.constant 0 : index
    %100 = vector.load %arg11[%c4_151, %c0_152] : memref<108x288xbf16, #tpu.memory_space<vmem>>, vector<4x288xbf16>
    tpu.vector_store %arg11[%c4_151, %c0_152], %99 {strides = array<i32>} : memref<108x288xbf16, #tpu.memory_space<vmem>>, vector<4x288xbf16>,
    %c0_153 = arith.constant 0 : index
    %c0_154 = arith.constant 0 : index
    %c0_155 = arith.constant 0 : index
    %c2_156 = arith.constant 2 : index
    %101 = vector.load %arg5[%c0_153, %c0_154, %c0_155, %c2_156] : memref<1x1x4x326xbf16, #tpu.memory_space<vmem>>, vector<1x1x4x288xbf16>
    %102 = vector.shape_cast %101 : vector<1x1x4x288xbf16> to vector<4x288xbf16>
    %c8_157 = arith.constant 8 : index
    %c0_158 = arith.constant 0 : index
    %103 = vector.load %arg11[%c8_157, %c0_158] : memref<108x288xbf16, #tpu.memory_space<vmem>>, vector<4x288xbf16>
    tpu.vector_store %arg11[%c8_157, %c0_158], %102 {strides = array<i32>} : memref<108x288xbf16, #tpu.memory_space<vmem>>, vector<4x288xbf16>,
    %c0_159 = arith.constant 0 : index
    %c0_160 = arith.constant 0 : index
    %c0_161 = arith.constant 0 : index
    %c18_162 = arith.constant 18 : index
    %104 = vector.load %arg5[%c0_159, %c0_160, %c0_161, %c18_162] : memref<1x1x4x326xbf16, #tpu.memory_space<vmem>>, vector<1x1x4x288xbf16>
    %105 = vector.shape_cast %104 : vector<1x1x4x288xbf16> to vector<4x288xbf16>
    %c12_163 = arith.constant 12 : index
    %c0_164 = arith.constant 0 : index
    %106 = vector.load %arg11[%c12_163, %c0_164] : memref<108x288xbf16, #tpu.memory_space<vmem>>, vector<4x288xbf16>
    tpu.vector_store %arg11[%c12_163, %c0_164], %105 {strides = array<i32>} : memref<108x288xbf16, #tpu.memory_space<vmem>>, vector<4x288xbf16>,
    %c0_165 = arith.constant 0 : index
    %c0_166 = arith.constant 0 : index
    %c0_167 = arith.constant 0 : index
    %c19_168 = arith.constant 19 : index
    %107 = vector.load %arg5[%c0_165, %c0_166, %c0_167, %c19_168] : memref<1x1x4x326xbf16, #tpu.memory_space<vmem>>, vector<1x1x4x288xbf16>
    %108 = vector.shape_cast %107 : vector<1x1x4x288xbf16> to vector<4x288xbf16>
    %c16_169 = arith.constant 16 : index
    %c0_170 = arith.constant 0 : index
    %109 = vector.load %arg11[%c16_169, %c0_170] : memref<108x288xbf16, #tpu.memory_space<vmem>>, vector<4x288xbf16>
    tpu.vector_store %arg11[%c16_169, %c0_170], %108 {strides = array<i32>} : memref<108x288xbf16, #tpu.memory_space<vmem>>, vector<4x288xbf16>,
    %c0_171 = arith.constant 0 : index
    %c0_172 = arith.constant 0 : index
    %c0_173 = arith.constant 0 : index
    %c20_174 = arith.constant 20 : index
    %110 = vector.load %arg5[%c0_171, %c0_172, %c0_173, %c20_174] : memref<1x1x4x326xbf16, #tpu.memory_space<vmem>>, vector<1x1x4x288xbf16>
    %111 = vector.shape_cast %110 : vector<1x1x4x288xbf16> to vector<4x288xbf16>
    %c20_175 = arith.constant 20 : index
    %c0_176 = arith.constant 0 : index
    %112 = vector.load %arg11[%c20_175, %c0_176] : memref<108x288xbf16, #tpu.memory_space<vmem>>, vector<4x288xbf16>
    tpu.vector_store %arg11[%c20_175, %c0_176], %111 {strides = array<i32>} : memref<108x288xbf16, #tpu.memory_space<vmem>>, vector<4x288xbf16>,
    %c0_177 = arith.constant 0 : index
    %c0_178 = arith.constant 0 : index
    %c0_179 = arith.constant 0 : index
    %c36_180 = arith.constant 36 : index
    %113 = vector.load %arg5[%c0_177, %c0_178, %c0_179, %c36_180] : memref<1x1x4x326xbf16, #tpu.memory_space<vmem>>, vector<1x1x4x288xbf16>
    %114 = vector.shape_cast %113 : vector<1x1x4x288xbf16> to vector<4x288xbf16>
    %c24_181 = arith.constant 24 : index
    %c0_182 = arith.constant 0 : index
    %115 = vector.load %arg11[%c24_181, %c0_182] : memref<108x288xbf16, #tpu.memory_space<vmem>>, vector<4x288xbf16>
    tpu.vector_store %arg11[%c24_181, %c0_182], %114 {strides = array<i32>} : memref<108x288xbf16, #tpu.memory_space<vmem>>, vector<4x288xbf16>,
    %c0_183 = arith.constant 0 : index
    %c0_184 = arith.constant 0 : index
    %c0_185 = arith.constant 0 : index
    %c37_186 = arith.constant 37 : index
    %116 = vector.load %arg5[%c0_183, %c0_184, %c0_185, %c37_186] : memref<1x1x4x326xbf16, #tpu.memory_space<vmem>>, vector<1x1x4x288xbf16>
    %117 = vector.shape_cast %116 : vector<1x1x4x288xbf16> to vector<4x288xbf16>
    %c28_187 = arith.constant 28 : index
    %c0_188 = arith.constant 0 : index
    %118 = vector.load %arg11[%c28_187, %c0_188] : memref<108x288xbf16, #tpu.memory_space<vmem>>, vector<4x288xbf16>
    tpu.vector_store %arg11[%c28_187, %c0_188], %117 {strides = array<i32>} : memref<108x288xbf16, #tpu.memory_space<vmem>>, vector<4x288xbf16>,
    %c0_189 = arith.constant 0 : index
    %c0_190 = arith.constant 0 : index
    %c0_191 = arith.constant 0 : index
    %c38_192 = arith.constant 38 : index
    %119 = vector.load %arg5[%c0_189, %c0_190, %c0_191, %c38_192] : memref<1x1x4x326xbf16, #tpu.memory_space<vmem>>, vector<1x1x4x288xbf16>
    %120 = vector.shape_cast %119 : vector<1x1x4x288xbf16> to vector<4x288xbf16>
    %c32_193 = arith.constant 32 : index
    %c0_194 = arith.constant 0 : index
    %121 = vector.load %arg11[%c32_193, %c0_194] : memref<108x288xbf16, #tpu.memory_space<vmem>>, vector<4x288xbf16>
    tpu.vector_store %arg11[%c32_193, %c0_194], %120 {strides = array<i32>} : memref<108x288xbf16, #tpu.memory_space<vmem>>, vector<4x288xbf16>,
    %c0_195 = arith.constant 0 : index
    %c0_196 = arith.constant 0 : index
    %c0_197 = arith.constant 0 : index
    %c0_198 = arith.constant 0 : index
    %122 = vector.load %arg6[%c0_195, %c0_196, %c0_197, %c0_198] : memref<1x1x4x326xbf16, #tpu.memory_space<vmem>>, vector<1x1x4x288xbf16>
    %123 = vector.shape_cast %122 : vector<1x1x4x288xbf16> to vector<4x288xbf16>
    %c36_199 = arith.constant 36 : index
    %c0_200 = arith.constant 0 : index
    %124 = vector.load %arg11[%c36_199, %c0_200] : memref<108x288xbf16, #tpu.memory_space<vmem>>, vector<4x288xbf16>
    tpu.vector_store %arg11[%c36_199, %c0_200], %123 {strides = array<i32>} : memref<108x288xbf16, #tpu.memory_space<vmem>>, vector<4x288xbf16>,
    %c0_201 = arith.constant 0 : index
    %c0_202 = arith.constant 0 : index
    %c0_203 = arith.constant 0 : index
    %c1_204 = arith.constant 1 : index
    %125 = vector.load %arg6[%c0_201, %c0_202, %c0_203, %c1_204] : memref<1x1x4x326xbf16, #tpu.memory_space<vmem>>, vector<1x1x4x288xbf16>
    %126 = vector.shape_cast %125 : vector<1x1x4x288xbf16> to vector<4x288xbf16>
    %c40_205 = arith.constant 40 : index
    %c0_206 = arith.constant 0 : index
    %127 = vector.load %arg11[%c40_205, %c0_206] : memref<108x288xbf16, #tpu.memory_space<vmem>>, vector<4x288xbf16>
    tpu.vector_store %arg11[%c40_205, %c0_206], %126 {strides = array<i32>} : memref<108x288xbf16, #tpu.memory_space<vmem>>, vector<4x288xbf16>,
    %c0_207 = arith.constant 0 : index
    %c0_208 = arith.constant 0 : index
    %c0_209 = arith.constant 0 : index
    %c2_210 = arith.constant 2 : index
    %128 = vector.load %arg6[%c0_207, %c0_208, %c0_209, %c2_210] : memref<1x1x4x326xbf16, #tpu.memory_space<vmem>>, vector<1x1x4x288xbf16>
    %129 = vector.shape_cast %128 : vector<1x1x4x288xbf16> to vector<4x288xbf16>
    %c44_211 = arith.constant 44 : index
    %c0_212 = arith.constant 0 : index
    %130 = vector.load %arg11[%c44_211, %c0_212] : memref<108x288xbf16, #tpu.memory_space<vmem>>, vector<4x288xbf16>
    tpu.vector_store %arg11[%c44_211, %c0_212], %129 {strides = array<i32>} : memref<108x288xbf16, #tpu.memory_space<vmem>>, vector<4x288xbf16>,
    %c0_213 = arith.constant 0 : index
    %c0_214 = arith.constant 0 : index
    %c0_215 = arith.constant 0 : index
    %c18_216 = arith.constant 18 : index
    %131 = vector.load %arg6[%c0_213, %c0_214, %c0_215, %c18_216] : memref<1x1x4x326xbf16, #tpu.memory_space<vmem>>, vector<1x1x4x288xbf16>
    %132 = vector.shape_cast %131 : vector<1x1x4x288xbf16> to vector<4x288xbf16>
    %c48_217 = arith.constant 48 : index
    %c0_218 = arith.constant 0 : index
    %133 = vector.load %arg11[%c48_217, %c0_218] : memref<108x288xbf16, #tpu.memory_space<vmem>>, vector<4x288xbf16>
    tpu.vector_store %arg11[%c48_217, %c0_218], %132 {strides = array<i32>} : memref<108x288xbf16, #tpu.memory_space<vmem>>, vector<4x288xbf16>,
    %c0_219 = arith.constant 0 : index
    %c0_220 = arith.constant 0 : index
    %c0_221 = arith.constant 0 : index
    %c19_222 = arith.constant 19 : index
    %134 = vector.load %arg6[%c0_219, %c0_220, %c0_221, %c19_222] : memref<1x1x4x326xbf16, #tpu.memory_space<vmem>>, vector<1x1x4x288xbf16>
    %135 = vector.shape_cast %134 : vector<1x1x4x288xbf16> to vector<4x288xbf16>
    %c52_223 = arith.constant 52 : index
    %c0_224 = arith.constant 0 : index
    %136 = vector.load %arg11[%c52_223, %c0_224] : memref<108x288xbf16, #tpu.memory_space<vmem>>, vector<4x288xbf16>
    tpu.vector_store %arg11[%c52_223, %c0_224], %135 {strides = array<i32>} : memref<108x288xbf16, #tpu.memory_space<vmem>>, vector<4x288xbf16>,
    %c0_225 = arith.constant 0 : index
    %c0_226 = arith.constant 0 : index
    %c0_227 = arith.constant 0 : index
    %c20_228 = arith.constant 20 : index
    %137 = vector.load %arg6[%c0_225, %c0_226, %c0_227, %c20_228] : memref<1x1x4x326xbf16, #tpu.memory_space<vmem>>, vector<1x1x4x288xbf16>
    %138 = vector.shape_cast %137 : vector<1x1x4x288xbf16> to vector<4x288xbf16>
    %c56_229 = arith.constant 56 : index
    %c0_230 = arith.constant 0 : index
    %139 = vector.load %arg11[%c56_229, %c0_230] : memref<108x288xbf16, #tpu.memory_space<vmem>>, vector<4x288xbf16>
    tpu.vector_store %arg11[%c56_229, %c0_230], %138 {strides = array<i32>} : memref<108x288xbf16, #tpu.memory_space<vmem>>, vector<4x288xbf16>,
    %c0_231 = arith.constant 0 : index
    %c0_232 = arith.constant 0 : index
    %c0_233 = arith.constant 0 : index
    %c36_234 = arith.constant 36 : index
    %140 = vector.load %arg6[%c0_231, %c0_232, %c0_233, %c36_234] : memref<1x1x4x326xbf16, #tpu.memory_space<vmem>>, vector<1x1x4x288xbf16>
    %141 = vector.shape_cast %140 : vector<1x1x4x288xbf16> to vector<4x288xbf16>
    %c60_235 = arith.constant 60 : index
    %c0_236 = arith.constant 0 : index
    %142 = vector.load %arg11[%c60_235, %c0_236] : memref<108x288xbf16, #tpu.memory_space<vmem>>, vector<4x288xbf16>
    tpu.vector_store %arg11[%c60_235, %c0_236], %141 {strides = array<i32>} : memref<108x288xbf16, #tpu.memory_space<vmem>>, vector<4x288xbf16>,
    %c0_237 = arith.constant 0 : index
    %c0_238 = arith.constant 0 : index
    %c0_239 = arith.constant 0 : index
    %c37_240 = arith.constant 37 : index
    %143 = vector.load %arg6[%c0_237, %c0_238, %c0_239, %c37_240] : memref<1x1x4x326xbf16, #tpu.memory_space<vmem>>, vector<1x1x4x288xbf16>
    %144 = vector.shape_cast %143 : vector<1x1x4x288xbf16> to vector<4x288xbf16>
    %c64_241 = arith.constant 64 : index
    %c0_242 = arith.constant 0 : index
    %145 = vector.load %arg11[%c64_241, %c0_242] : memref<108x288xbf16, #tpu.memory_space<vmem>>, vector<4x288xbf16>
    tpu.vector_store %arg11[%c64_241, %c0_242], %144 {strides = array<i32>} : memref<108x288xbf16, #tpu.memory_space<vmem>>, vector<4x288xbf16>,
    %c0_243 = arith.constant 0 : index
    %c0_244 = arith.constant 0 : index
    %c0_245 = arith.constant 0 : index
    %c38_246 = arith.constant 38 : index
    %146 = vector.load %arg6[%c0_243, %c0_244, %c0_245, %c38_246] : memref<1x1x4x326xbf16, #tpu.memory_space<vmem>>, vector<1x1x4x288xbf16>
    %147 = vector.shape_cast %146 : vector<1x1x4x288xbf16> to vector<4x288xbf16>
    %c68_247 = arith.constant 68 : index
    %c0_248 = arith.constant 0 : index
    %148 = vector.load %arg11[%c68_247, %c0_248] : memref<108x288xbf16, #tpu.memory_space<vmem>>, vector<4x288xbf16>
    tpu.vector_store %arg11[%c68_247, %c0_248], %147 {strides = array<i32>} : memref<108x288xbf16, #tpu.memory_space<vmem>>, vector<4x288xbf16>,
    %c0_249 = arith.constant 0 : index
    %c0_250 = arith.constant 0 : index
    %c0_251 = arith.constant 0 : index
    %c0_252 = arith.constant 0 : index
    %149 = vector.load %arg7[%c0_249, %c0_250, %c0_251, %c0_252] : memref<1x1x4x326xbf16, #tpu.memory_space<vmem>>, vector<1x1x4x288xbf16>
    %150 = vector.shape_cast %149 : vector<1x1x4x288xbf16> to vector<4x288xbf16>
    %c72_253 = arith.constant 72 : index
    %c0_254 = arith.constant 0 : index
    %151 = vector.load %arg11[%c72_253, %c0_254] : memref<108x288xbf16, #tpu.memory_space<vmem>>, vector<4x288xbf16>
    tpu.vector_store %arg11[%c72_253, %c0_254], %150 {strides = array<i32>} : memref<108x288xbf16, #tpu.memory_space<vmem>>, vector<4x288xbf16>,
    %c0_255 = arith.constant 0 : index
    %c0_256 = arith.constant 0 : index
    %c0_257 = arith.constant 0 : index
    %c1_258 = arith.constant 1 : index
    %152 = vector.load %arg7[%c0_255, %c0_256, %c0_257, %c1_258] : memref<1x1x4x326xbf16, #tpu.memory_space<vmem>>, vector<1x1x4x288xbf16>
    %153 = vector.shape_cast %152 : vector<1x1x4x288xbf16> to vector<4x288xbf16>
    %c76_259 = arith.constant 76 : index
    %c0_260 = arith.constant 0 : index
    %154 = vector.load %arg11[%c76_259, %c0_260] : memref<108x288xbf16, #tpu.memory_space<vmem>>, vector<4x288xbf16>
    tpu.vector_store %arg11[%c76_259, %c0_260], %153 {strides = array<i32>} : memref<108x288xbf16, #tpu.memory_space<vmem>>, vector<4x288xbf16>,
    %c0_261 = arith.constant 0 : index
    %c0_262 = arith.constant 0 : index
    %c0_263 = arith.constant 0 : index
    %c2_264 = arith.constant 2 : index
    %155 = vector.load %arg7[%c0_261, %c0_262, %c0_263, %c2_264] : memref<1x1x4x326xbf16, #tpu.memory_space<vmem>>, vector<1x1x4x288xbf16>
    %156 = vector.shape_cast %155 : vector<1x1x4x288xbf16> to vector<4x288xbf16>
    %c80_265 = arith.constant 80 : index
    %c0_266 = arith.constant 0 : index
    %157 = vector.load %arg11[%c80_265, %c0_266] : memref<108x288xbf16, #tpu.memory_space<vmem>>, vector<4x288xbf16>
    tpu.vector_store %arg11[%c80_265, %c0_266], %156 {strides = array<i32>} : memref<108x288xbf16, #tpu.memory_space<vmem>>, vector<4x288xbf16>,
    %c0_267 = arith.constant 0 : index
    %c0_268 = arith.constant 0 : index
    %c0_269 = arith.constant 0 : index
    %c18_270 = arith.constant 18 : index
    %158 = vector.load %arg7[%c0_267, %c0_268, %c0_269, %c18_270] : memref<1x1x4x326xbf16, #tpu.memory_space<vmem>>, vector<1x1x4x288xbf16>
    %159 = vector.shape_cast %158 : vector<1x1x4x288xbf16> to vector<4x288xbf16>
    %c84_271 = arith.constant 84 : index
    %c0_272 = arith.constant 0 : index
    %160 = vector.load %arg11[%c84_271, %c0_272] : memref<108x288xbf16, #tpu.memory_space<vmem>>, vector<4x288xbf16>
    tpu.vector_store %arg11[%c84_271, %c0_272], %159 {strides = array<i32>} : memref<108x288xbf16, #tpu.memory_space<vmem>>, vector<4x288xbf16>,
    %c0_273 = arith.constant 0 : index
    %c0_274 = arith.constant 0 : index
    %c0_275 = arith.constant 0 : index
    %c19_276 = arith.constant 19 : index
    %161 = vector.load %arg7[%c0_273, %c0_274, %c0_275, %c19_276] : memref<1x1x4x326xbf16, #tpu.memory_space<vmem>>, vector<1x1x4x288xbf16>
    %162 = vector.shape_cast %161 : vector<1x1x4x288xbf16> to vector<4x288xbf16>
    %c88_277 = arith.constant 88 : index
    %c0_278 = arith.constant 0 : index
    %163 = vector.load %arg11[%c88_277, %c0_278] : memref<108x288xbf16, #tpu.memory_space<vmem>>, vector<4x288xbf16>
    tpu.vector_store %arg11[%c88_277, %c0_278], %162 {strides = array<i32>} : memref<108x288xbf16, #tpu.memory_space<vmem>>, vector<4x288xbf16>,
    %c0_279 = arith.constant 0 : index
    %c0_280 = arith.constant 0 : index
    %c0_281 = arith.constant 0 : index
    %c20_282 = arith.constant 20 : index
    %164 = vector.load %arg7[%c0_279, %c0_280, %c0_281, %c20_282] : memref<1x1x4x326xbf16, #tpu.memory_space<vmem>>, vector<1x1x4x288xbf16>
    %165 = vector.shape_cast %164 : vector<1x1x4x288xbf16> to vector<4x288xbf16>
    %c92_283 = arith.constant 92 : index
    %c0_284 = arith.constant 0 : index
    %166 = vector.load %arg11[%c92_283, %c0_284] : memref<108x288xbf16, #tpu.memory_space<vmem>>, vector<4x288xbf16>
    tpu.vector_store %arg11[%c92_283, %c0_284], %165 {strides = array<i32>} : memref<108x288xbf16, #tpu.memory_space<vmem>>, vector<4x288xbf16>,
    %c0_285 = arith.constant 0 : index
    %c0_286 = arith.constant 0 : index
    %c0_287 = arith.constant 0 : index
    %c36_288 = arith.constant 36 : index
    %167 = vector.load %arg7[%c0_285, %c0_286, %c0_287, %c36_288] : memref<1x1x4x326xbf16, #tpu.memory_space<vmem>>, vector<1x1x4x288xbf16>
    %168 = vector.shape_cast %167 : vector<1x1x4x288xbf16> to vector<4x288xbf16>
    %c96_289 = arith.constant 96 : index
    %c0_290 = arith.constant 0 : index
    %169 = vector.load %arg11[%c96_289, %c0_290] : memref<108x288xbf16, #tpu.memory_space<vmem>>, vector<4x288xbf16>
    tpu.vector_store %arg11[%c96_289, %c0_290], %168 {strides = array<i32>} : memref<108x288xbf16, #tpu.memory_space<vmem>>, vector<4x288xbf16>,
    %c0_291 = arith.constant 0 : index
    %c0_292 = arith.constant 0 : index
    %c0_293 = arith.constant 0 : index
    %c37_294 = arith.constant 37 : index
    %170 = vector.load %arg7[%c0_291, %c0_292, %c0_293, %c37_294] : memref<1x1x4x326xbf16, #tpu.memory_space<vmem>>, vector<1x1x4x288xbf16>
    %171 = vector.shape_cast %170 : vector<1x1x4x288xbf16> to vector<4x288xbf16>
    %c100_295 = arith.constant 100 : index
    %c0_296 = arith.constant 0 : index
    %172 = vector.load %arg11[%c100_295, %c0_296] : memref<108x288xbf16, #tpu.memory_space<vmem>>, vector<4x288xbf16>
    tpu.vector_store %arg11[%c100_295, %c0_296], %171 {strides = array<i32>} : memref<108x288xbf16, #tpu.memory_space<vmem>>, vector<4x288xbf16>,
    %c0_297 = arith.constant 0 : index
    %c0_298 = arith.constant 0 : index
    %c0_299 = arith.constant 0 : index
    %c38_300 = arith.constant 38 : index
    %173 = vector.load %arg7[%c0_297, %c0_298, %c0_299, %c38_300] : memref<1x1x4x326xbf16, #tpu.memory_space<vmem>>, vector<1x1x4x288xbf16>
    %174 = vector.shape_cast %173 : vector<1x1x4x288xbf16> to vector<4x288xbf16>
    %c104_301 = arith.constant 104 : index
    %c0_302 = arith.constant 0 : index
    %175 = vector.load %arg11[%c104_301, %c0_302] : memref<108x288xbf16, #tpu.memory_space<vmem>>, vector<4x288xbf16>
    tpu.vector_store %arg11[%c104_301, %c0_302], %174 {strides = array<i32>} : memref<108x288xbf16, #tpu.memory_space<vmem>>, vector<4x288xbf16>,
    %c0_303 = arith.constant 0 : index
    %c0_304 = arith.constant 0 : index
    %176 = vector.load %arg11[%c0_303, %c0_304] : memref<108x288xbf16, #tpu.memory_space<vmem>>, vector<108x288xbf16>
    %cst_305 = arith.constant dense<0.000000e+00> : vector<8x288xf32>
    %177 = tpu.matmul %0, %176, %cst_305 {dimension_numbers = #tpu.dot_dimension_numbers<[1], [0], [0], [1], [0, 0, 1, 1], [], []>} : vector<8x108xbf16>, vector<108x288xbf16>, vector<8x288xf32> -> vector<8x288xf32>
    %178 = vector.broadcast %1 : vector<8x1xf32> to vector<8x288xf32>
    %179 = arith.addf %177, %178 : vector<8x288xf32>
    %cst_306 = arith.constant 0.000000e+00 : f32
    %180 = vector.broadcast %cst_306 : f32 to vector<8x288xf32>
    %181 = arith.cmpf ogt, %179, %180 : vector<8x288xf32>
    %cst_307 = arith.constant 0.00999999977 : f32
    %182 = vector.broadcast %cst_307 : f32 to vector<8x288xf32>
    %183 = arith.mulf %182, %179 : vector<8x288xf32>
    %184 = arith.select %181, %179, %183 : vector<8x288xi1>, vector<8x288xf32>
    %c0_308 = arith.constant 0 : index
    %c1_309 = arith.constant 1 : index
    %c0_310 = arith.constant 0 : index
    %c0_311 = arith.constant 0 : index
    %185 = vector.load %arg10[%c0_308, %c1_309, %c0_310, %c0_311] : memref<1x4x8x288xf32, #tpu.memory_space<vmem>>, vector<1x1x8x288xf32>
    %186 = vector.shape_cast %185 : vector<1x1x8x288xf32> to vector<8x288xf32>
    %187 = vector.shape_cast %184 : vector<8x288xf32> to vector<1x1x8x288xf32>
    tpu.vector_store %arg10[%c0_308, %c1_309, %c0_310, %c0_311], %187 {strides = array<i32>} : memref<1x4x8x288xf32, #tpu.memory_space<vmem>>, vector<1x1x8x288xf32>,
    %c0_312 = arith.constant 0 : index
    %c0_313 = arith.constant 0 : index
    %c0_314 = arith.constant 0 : index
    %c0_315 = arith.constant 0 : index
    %188 = vector.load %arg6[%c0_312, %c0_313, %c0_314, %c0_315] : memref<1x1x4x326xbf16, #tpu.memory_space<vmem>>, vector<1x1x4x288xbf16>
    %189 = vector.shape_cast %188 : vector<1x1x4x288xbf16> to vector<4x288xbf16>
    %c0_316 = arith.constant 0 : index
    %c0_317 = arith.constant 0 : index
    %190 = vector.load %arg11[%c0_316, %c0_317] : memref<108x288xbf16, #tpu.memory_space<vmem>>, vector<4x288xbf16>
    tpu.vector_store %arg11[%c0_316, %c0_317], %189 {strides = array<i32>} : memref<108x288xbf16, #tpu.memory_space<vmem>>, vector<4x288xbf16>,
    %c0_318 = arith.constant 0 : index
    %c0_319 = arith.constant 0 : index
    %c0_320 = arith.constant 0 : index
    %c1_321 = arith.constant 1 : index
    %191 = vector.load %arg6[%c0_318, %c0_319, %c0_320, %c1_321] : memref<1x1x4x326xbf16, #tpu.memory_space<vmem>>, vector<1x1x4x288xbf16>
    %192 = vector.shape_cast %191 : vector<1x1x4x288xbf16> to vector<4x288xbf16>
    %c4_322 = arith.constant 4 : index
    %c0_323 = arith.constant 0 : index
    %193 = vector.load %arg11[%c4_322, %c0_323] : memref<108x288xbf16, #tpu.memory_space<vmem>>, vector<4x288xbf16>
    tpu.vector_store %arg11[%c4_322, %c0_323], %192 {strides = array<i32>} : memref<108x288xbf16, #tpu.memory_space<vmem>>, vector<4x288xbf16>,
    %c0_324 = arith.constant 0 : index
    %c0_325 = arith.constant 0 : index
    %c0_326 = arith.constant 0 : index
    %c2_327 = arith.constant 2 : index
    %194 = vector.load %arg6[%c0_324, %c0_325, %c0_326, %c2_327] : memref<1x1x4x326xbf16, #tpu.memory_space<vmem>>, vector<1x1x4x288xbf16>
    %195 = vector.shape_cast %194 : vector<1x1x4x288xbf16> to vector<4x288xbf16>
    %c8_328 = arith.constant 8 : index
    %c0_329 = arith.constant 0 : index
    %196 = vector.load %arg11[%c8_328, %c0_329] : memref<108x288xbf16, #tpu.memory_space<vmem>>, vector<4x288xbf16>
    tpu.vector_store %arg11[%c8_328, %c0_329], %195 {strides = array<i32>} : memref<108x288xbf16, #tpu.memory_space<vmem>>, vector<4x288xbf16>,
    %c0_330 = arith.constant 0 : index
    %c0_331 = arith.constant 0 : index
    %c0_332 = arith.constant 0 : index
    %c18_333 = arith.constant 18 : index
    %197 = vector.load %arg6[%c0_330, %c0_331, %c0_332, %c18_333] : memref<1x1x4x326xbf16, #tpu.memory_space<vmem>>, vector<1x1x4x288xbf16>
    %198 = vector.shape_cast %197 : vector<1x1x4x288xbf16> to vector<4x288xbf16>
    %c12_334 = arith.constant 12 : index
    %c0_335 = arith.constant 0 : index
    %199 = vector.load %arg11[%c12_334, %c0_335] : memref<108x288xbf16, #tpu.memory_space<vmem>>, vector<4x288xbf16>
    tpu.vector_store %arg11[%c12_334, %c0_335], %198 {strides = array<i32>} : memref<108x288xbf16, #tpu.memory_space<vmem>>, vector<4x288xbf16>,
    %c0_336 = arith.constant 0 : index
    %c0_337 = arith.constant 0 : index
    %c0_338 = arith.constant 0 : index
    %c19_339 = arith.constant 19 : index
    %200 = vector.load %arg6[%c0_336, %c0_337, %c0_338, %c19_339] : memref<1x1x4x326xbf16, #tpu.memory_space<vmem>>, vector<1x1x4x288xbf16>
    %201 = vector.shape_cast %200 : vector<1x1x4x288xbf16> to vector<4x288xbf16>
    %c16_340 = arith.constant 16 : index
    %c0_341 = arith.constant 0 : index
    %202 = vector.load %arg11[%c16_340, %c0_341] : memref<108x288xbf16, #tpu.memory_space<vmem>>, vector<4x288xbf16>
    tpu.vector_store %arg11[%c16_340, %c0_341], %201 {strides = array<i32>} : memref<108x288xbf16, #tpu.memory_space<vmem>>, vector<4x288xbf16>,
    %c0_342 = arith.constant 0 : index
    %c0_343 = arith.constant 0 : index
    %c0_344 = arith.constant 0 : index
    %c20_345 = arith.constant 20 : index
    %203 = vector.load %arg6[%c0_342, %c0_343, %c0_344, %c20_345] : memref<1x1x4x326xbf16, #tpu.memory_space<vmem>>, vector<1x1x4x288xbf16>
    %204 = vector.shape_cast %203 : vector<1x1x4x288xbf16> to vector<4x288xbf16>
    %c20_346 = arith.constant 20 : index
    %c0_347 = arith.constant 0 : index
    %205 = vector.load %arg11[%c20_346, %c0_347] : memref<108x288xbf16, #tpu.memory_space<vmem>>, vector<4x288xbf16>
    tpu.vector_store %arg11[%c20_346, %c0_347], %204 {strides = array<i32>} : memref<108x288xbf16, #tpu.memory_space<vmem>>, vector<4x288xbf16>,
    %c0_348 = arith.constant 0 : index
    %c0_349 = arith.constant 0 : index
    %c0_350 = arith.constant 0 : index
    %c36_351 = arith.constant 36 : index
    %206 = vector.load %arg6[%c0_348, %c0_349, %c0_350, %c36_351] : memref<1x1x4x326xbf16, #tpu.memory_space<vmem>>, vector<1x1x4x288xbf16>
    %207 = vector.shape_cast %206 : vector<1x1x4x288xbf16> to vector<4x288xbf16>
    %c24_352 = arith.constant 24 : index
    %c0_353 = arith.constant 0 : index
    %208 = vector.load %arg11[%c24_352, %c0_353] : memref<108x288xbf16, #tpu.memory_space<vmem>>, vector<4x288xbf16>
    tpu.vector_store %arg11[%c24_352, %c0_353], %207 {strides = array<i32>} : memref<108x288xbf16, #tpu.memory_space<vmem>>, vector<4x288xbf16>,
    %c0_354 = arith.constant 0 : index
    %c0_355 = arith.constant 0 : index
    %c0_356 = arith.constant 0 : index
    %c37_357 = arith.constant 37 : index
    %209 = vector.load %arg6[%c0_354, %c0_355, %c0_356, %c37_357] : memref<1x1x4x326xbf16, #tpu.memory_space<vmem>>, vector<1x1x4x288xbf16>
    %210 = vector.shape_cast %209 : vector<1x1x4x288xbf16> to vector<4x288xbf16>
    %c28_358 = arith.constant 28 : index
    %c0_359 = arith.constant 0 : index
    %211 = vector.load %arg11[%c28_358, %c0_359] : memref<108x288xbf16, #tpu.memory_space<vmem>>, vector<4x288xbf16>
    tpu.vector_store %arg11[%c28_358, %c0_359], %210 {strides = array<i32>} : memref<108x288xbf16, #tpu.memory_space<vmem>>, vector<4x288xbf16>,
    %c0_360 = arith.constant 0 : index
    %c0_361 = arith.constant 0 : index
    %c0_362 = arith.constant 0 : index
    %c38_363 = arith.constant 38 : index
    %212 = vector.load %arg6[%c0_360, %c0_361, %c0_362, %c38_363] : memref<1x1x4x326xbf16, #tpu.memory_space<vmem>>, vector<1x1x4x288xbf16>
    %213 = vector.shape_cast %212 : vector<1x1x4x288xbf16> to vector<4x288xbf16>
    %c32_364 = arith.constant 32 : index
    %c0_365 = arith.constant 0 : index
    %214 = vector.load %arg11[%c32_364, %c0_365] : memref<108x288xbf16, #tpu.memory_space<vmem>>, vector<4x288xbf16>
    tpu.vector_store %arg11[%c32_364, %c0_365], %213 {strides = array<i32>} : memref<108x288xbf16, #tpu.memory_space<vmem>>, vector<4x288xbf16>,
    %c0_366 = arith.constant 0 : index
    %c0_367 = arith.constant 0 : index
    %c0_368 = arith.constant 0 : index
    %c0_369 = arith.constant 0 : index
    %215 = vector.load %arg7[%c0_366, %c0_367, %c0_368, %c0_369] : memref<1x1x4x326xbf16, #tpu.memory_space<vmem>>, vector<1x1x4x288xbf16>
    %216 = vector.shape_cast %215 : vector<1x1x4x288xbf16> to vector<4x288xbf16>
    %c36_370 = arith.constant 36 : index
    %c0_371 = arith.constant 0 : index
    %217 = vector.load %arg11[%c36_370, %c0_371] : memref<108x288xbf16, #tpu.memory_space<vmem>>, vector<4x288xbf16>
    tpu.vector_store %arg11[%c36_370, %c0_371], %216 {strides = array<i32>} : memref<108x288xbf16, #tpu.memory_space<vmem>>, vector<4x288xbf16>,
    %c0_372 = arith.constant 0 : index
    %c0_373 = arith.constant 0 : index
    %c0_374 = arith.constant 0 : index
    %c1_375 = arith.constant 1 : index
    %218 = vector.load %arg7[%c0_372, %c0_373, %c0_374, %c1_375] : memref<1x1x4x326xbf16, #tpu.memory_space<vmem>>, vector<1x1x4x288xbf16>
    %219 = vector.shape_cast %218 : vector<1x1x4x288xbf16> to vector<4x288xbf16>
    %c40_376 = arith.constant 40 : index
    %c0_377 = arith.constant 0 : index
    %220 = vector.load %arg11[%c40_376, %c0_377] : memref<108x288xbf16, #tpu.memory_space<vmem>>, vector<4x288xbf16>
    tpu.vector_store %arg11[%c40_376, %c0_377], %219 {strides = array<i32>} : memref<108x288xbf16, #tpu.memory_space<vmem>>, vector<4x288xbf16>,
    %c0_378 = arith.constant 0 : index
    %c0_379 = arith.constant 0 : index
    %c0_380 = arith.constant 0 : index
    %c2_381 = arith.constant 2 : index
    %221 = vector.load %arg7[%c0_378, %c0_379, %c0_380, %c2_381] : memref<1x1x4x326xbf16, #tpu.memory_space<vmem>>, vector<1x1x4x288xbf16>
    %222 = vector.shape_cast %221 : vector<1x1x4x288xbf16> to vector<4x288xbf16>
    %c44_382 = arith.constant 44 : index
    %c0_383 = arith.constant 0 : index
    %223 = vector.load %arg11[%c44_382, %c0_383] : memref<108x288xbf16, #tpu.memory_space<vmem>>, vector<4x288xbf16>
    tpu.vector_store %arg11[%c44_382, %c0_383], %222 {strides = array<i32>} : memref<108x288xbf16, #tpu.memory_space<vmem>>, vector<4x288xbf16>,
    %c0_384 = arith.constant 0 : index
    %c0_385 = arith.constant 0 : index
    %c0_386 = arith.constant 0 : index
    %c18_387 = arith.constant 18 : index
    %224 = vector.load %arg7[%c0_384, %c0_385, %c0_386, %c18_387] : memref<1x1x4x326xbf16, #tpu.memory_space<vmem>>, vector<1x1x4x288xbf16>
    %225 = vector.shape_cast %224 : vector<1x1x4x288xbf16> to vector<4x288xbf16>
    %c48_388 = arith.constant 48 : index
    %c0_389 = arith.constant 0 : index
    %226 = vector.load %arg11[%c48_388, %c0_389] : memref<108x288xbf16, #tpu.memory_space<vmem>>, vector<4x288xbf16>
    tpu.vector_store %arg11[%c48_388, %c0_389], %225 {strides = array<i32>} : memref<108x288xbf16, #tpu.memory_space<vmem>>, vector<4x288xbf16>,
    %c0_390 = arith.constant 0 : index
    %c0_391 = arith.constant 0 : index
    %c0_392 = arith.constant 0 : index
    %c19_393 = arith.constant 19 : index
    %227 = vector.load %arg7[%c0_390, %c0_391, %c0_392, %c19_393] : memref<1x1x4x326xbf16, #tpu.memory_space<vmem>>, vector<1x1x4x288xbf16>
    %228 = vector.shape_cast %227 : vector<1x1x4x288xbf16> to vector<4x288xbf16>
    %c52_394 = arith.constant 52 : index
    %c0_395 = arith.constant 0 : index
    %229 = vector.load %arg11[%c52_394, %c0_395] : memref<108x288xbf16, #tpu.memory_space<vmem>>, vector<4x288xbf16>
    tpu.vector_store %arg11[%c52_394, %c0_395], %228 {strides = array<i32>} : memref<108x288xbf16, #tpu.memory_space<vmem>>, vector<4x288xbf16>,
    %c0_396 = arith.constant 0 : index
    %c0_397 = arith.constant 0 : index
    %c0_398 = arith.constant 0 : index
    %c20_399 = arith.constant 20 : index
    %230 = vector.load %arg7[%c0_396, %c0_397, %c0_398, %c20_399] : memref<1x1x4x326xbf16, #tpu.memory_space<vmem>>, vector<1x1x4x288xbf16>
    %231 = vector.shape_cast %230 : vector<1x1x4x288xbf16> to vector<4x288xbf16>
    %c56_400 = arith.constant 56 : index
    %c0_401 = arith.constant 0 : index
    %232 = vector.load %arg11[%c56_400, %c0_401] : memref<108x288xbf16, #tpu.memory_space<vmem>>, vector<4x288xbf16>
    tpu.vector_store %arg11[%c56_400, %c0_401], %231 {strides = array<i32>} : memref<108x288xbf16, #tpu.memory_space<vmem>>, vector<4x288xbf16>,
    %c0_402 = arith.constant 0 : index
    %c0_403 = arith.constant 0 : index
    %c0_404 = arith.constant 0 : index
    %c36_405 = arith.constant 36 : index
    %233 = vector.load %arg7[%c0_402, %c0_403, %c0_404, %c36_405] : memref<1x1x4x326xbf16, #tpu.memory_space<vmem>>, vector<1x1x4x288xbf16>
    %234 = vector.shape_cast %233 : vector<1x1x4x288xbf16> to vector<4x288xbf16>
    %c60_406 = arith.constant 60 : index
    %c0_407 = arith.constant 0 : index
    %235 = vector.load %arg11[%c60_406, %c0_407] : memref<108x288xbf16, #tpu.memory_space<vmem>>, vector<4x288xbf16>
    tpu.vector_store %arg11[%c60_406, %c0_407], %234 {strides = array<i32>} : memref<108x288xbf16, #tpu.memory_space<vmem>>, vector<4x288xbf16>,
    %c0_408 = arith.constant 0 : index
    %c0_409 = arith.constant 0 : index
    %c0_410 = arith.constant 0 : index
    %c37_411 = arith.constant 37 : index
    %236 = vector.load %arg7[%c0_408, %c0_409, %c0_410, %c37_411] : memref<1x1x4x326xbf16, #tpu.memory_space<vmem>>, vector<1x1x4x288xbf16>
    %237 = vector.shape_cast %236 : vector<1x1x4x288xbf16> to vector<4x288xbf16>
    %c64_412 = arith.constant 64 : index
    %c0_413 = arith.constant 0 : index
    %238 = vector.load %arg11[%c64_412, %c0_413] : memref<108x288xbf16, #tpu.memory_space<vmem>>, vector<4x288xbf16>
    tpu.vector_store %arg11[%c64_412, %c0_413], %237 {strides = array<i32>} : memref<108x288xbf16, #tpu.memory_space<vmem>>, vector<4x288xbf16>,
    %c0_414 = arith.constant 0 : index
    %c0_415 = arith.constant 0 : index
    %c0_416 = arith.constant 0 : index
    %c38_417 = arith.constant 38 : index
    %239 = vector.load %arg7[%c0_414, %c0_415, %c0_416, %c38_417] : memref<1x1x4x326xbf16, #tpu.memory_space<vmem>>, vector<1x1x4x288xbf16>
    %240 = vector.shape_cast %239 : vector<1x1x4x288xbf16> to vector<4x288xbf16>
    %c68_418 = arith.constant 68 : index
    %c0_419 = arith.constant 0 : index
    %241 = vector.load %arg11[%c68_418, %c0_419] : memref<108x288xbf16, #tpu.memory_space<vmem>>, vector<4x288xbf16>
    tpu.vector_store %arg11[%c68_418, %c0_419], %240 {strides = array<i32>} : memref<108x288xbf16, #tpu.memory_space<vmem>>, vector<4x288xbf16>,
    %c0_420 = arith.constant 0 : index
    %c0_421 = arith.constant 0 : index
    %c0_422 = arith.constant 0 : index
    %c0_423 = arith.constant 0 : index
    %242 = vector.load %arg8[%c0_420, %c0_421, %c0_422, %c0_423] : memref<1x1x4x326xbf16, #tpu.memory_space<vmem>>, vector<1x1x4x288xbf16>
    %243 = vector.shape_cast %242 : vector<1x1x4x288xbf16> to vector<4x288xbf16>
    %c72_424 = arith.constant 72 : index
    %c0_425 = arith.constant 0 : index
    %244 = vector.load %arg11[%c72_424, %c0_425] : memref<108x288xbf16, #tpu.memory_space<vmem>>, vector<4x288xbf16>
    tpu.vector_store %arg11[%c72_424, %c0_425], %243 {strides = array<i32>} : memref<108x288xbf16, #tpu.memory_space<vmem>>, vector<4x288xbf16>,
    %c0_426 = arith.constant 0 : index
    %c0_427 = arith.constant 0 : index
    %c0_428 = arith.constant 0 : index
    %c1_429 = arith.constant 1 : index
    %245 = vector.load %arg8[%c0_426, %c0_427, %c0_428, %c1_429] : memref<1x1x4x326xbf16, #tpu.memory_space<vmem>>, vector<1x1x4x288xbf16>
    %246 = vector.shape_cast %245 : vector<1x1x4x288xbf16> to vector<4x288xbf16>
    %c76_430 = arith.constant 76 : index
    %c0_431 = arith.constant 0 : index
    %247 = vector.load %arg11[%c76_430, %c0_431] : memref<108x288xbf16, #tpu.memory_space<vmem>>, vector<4x288xbf16>
    tpu.vector_store %arg11[%c76_430, %c0_431], %246 {strides = array<i32>} : memref<108x288xbf16, #tpu.memory_space<vmem>>, vector<4x288xbf16>,
    %c0_432 = arith.constant 0 : index
    %c0_433 = arith.constant 0 : index
    %c0_434 = arith.constant 0 : index
    %c2_435 = arith.constant 2 : index
    %248 = vector.load %arg8[%c0_432, %c0_433, %c0_434, %c2_435] : memref<1x1x4x326xbf16, #tpu.memory_space<vmem>>, vector<1x1x4x288xbf16>
    %249 = vector.shape_cast %248 : vector<1x1x4x288xbf16> to vector<4x288xbf16>
    %c80_436 = arith.constant 80 : index
    %c0_437 = arith.constant 0 : index
    %250 = vector.load %arg11[%c80_436, %c0_437] : memref<108x288xbf16, #tpu.memory_space<vmem>>, vector<4x288xbf16>
    tpu.vector_store %arg11[%c80_436, %c0_437], %249 {strides = array<i32>} : memref<108x288xbf16, #tpu.memory_space<vmem>>, vector<4x288xbf16>,
    %c0_438 = arith.constant 0 : index
    %c0_439 = arith.constant 0 : index
    %c0_440 = arith.constant 0 : index
    %c18_441 = arith.constant 18 : index
    %251 = vector.load %arg8[%c0_438, %c0_439, %c0_440, %c18_441] : memref<1x1x4x326xbf16, #tpu.memory_space<vmem>>, vector<1x1x4x288xbf16>
    %252 = vector.shape_cast %251 : vector<1x1x4x288xbf16> to vector<4x288xbf16>
    %c84_442 = arith.constant 84 : index
    %c0_443 = arith.constant 0 : index
    %253 = vector.load %arg11[%c84_442, %c0_443] : memref<108x288xbf16, #tpu.memory_space<vmem>>, vector<4x288xbf16>
    tpu.vector_store %arg11[%c84_442, %c0_443], %252 {strides = array<i32>} : memref<108x288xbf16, #tpu.memory_space<vmem>>, vector<4x288xbf16>,
    %c0_444 = arith.constant 0 : index
    %c0_445 = arith.constant 0 : index
    %c0_446 = arith.constant 0 : index
    %c19_447 = arith.constant 19 : index
    %254 = vector.load %arg8[%c0_444, %c0_445, %c0_446, %c19_447] : memref<1x1x4x326xbf16, #tpu.memory_space<vmem>>, vector<1x1x4x288xbf16>
    %255 = vector.shape_cast %254 : vector<1x1x4x288xbf16> to vector<4x288xbf16>
    %c88_448 = arith.constant 88 : index
    %c0_449 = arith.constant 0 : index
    %256 = vector.load %arg11[%c88_448, %c0_449] : memref<108x288xbf16, #tpu.memory_space<vmem>>, vector<4x288xbf16>
    tpu.vector_store %arg11[%c88_448, %c0_449], %255 {strides = array<i32>} : memref<108x288xbf16, #tpu.memory_space<vmem>>, vector<4x288xbf16>,
    %c0_450 = arith.constant 0 : index
    %c0_451 = arith.constant 0 : index
    %c0_452 = arith.constant 0 : index
    %c20_453 = arith.constant 20 : index
    %257 = vector.load %arg8[%c0_450, %c0_451, %c0_452, %c20_453] : memref<1x1x4x326xbf16, #tpu.memory_space<vmem>>, vector<1x1x4x288xbf16>
    %258 = vector.shape_cast %257 : vector<1x1x4x288xbf16> to vector<4x288xbf16>
    %c92_454 = arith.constant 92 : index
    %c0_455 = arith.constant 0 : index
    %259 = vector.load %arg11[%c92_454, %c0_455] : memref<108x288xbf16, #tpu.memory_space<vmem>>, vector<4x288xbf16>
    tpu.vector_store %arg11[%c92_454, %c0_455], %258 {strides = array<i32>} : memref<108x288xbf16, #tpu.memory_space<vmem>>, vector<4x288xbf16>,
    %c0_456 = arith.constant 0 : index
    %c0_457 = arith.constant 0 : index
    %c0_458 = arith.constant 0 : index
    %c36_459 = arith.constant 36 : index
    %260 = vector.load %arg8[%c0_456, %c0_457, %c0_458, %c36_459] : memref<1x1x4x326xbf16, #tpu.memory_space<vmem>>, vector<1x1x4x288xbf16>
    %261 = vector.shape_cast %260 : vector<1x1x4x288xbf16> to vector<4x288xbf16>
    %c96_460 = arith.constant 96 : index
    %c0_461 = arith.constant 0 : index
    %262 = vector.load %arg11[%c96_460, %c0_461] : memref<108x288xbf16, #tpu.memory_space<vmem>>, vector<4x288xbf16>
    tpu.vector_store %arg11[%c96_460, %c0_461], %261 {strides = array<i32>} : memref<108x288xbf16, #tpu.memory_space<vmem>>, vector<4x288xbf16>,
    %c0_462 = arith.constant 0 : index
    %c0_463 = arith.constant 0 : index
    %c0_464 = arith.constant 0 : index
    %c37_465 = arith.constant 37 : index
    %263 = vector.load %arg8[%c0_462, %c0_463, %c0_464, %c37_465] : memref<1x1x4x326xbf16, #tpu.memory_space<vmem>>, vector<1x1x4x288xbf16>
    %264 = vector.shape_cast %263 : vector<1x1x4x288xbf16> to vector<4x288xbf16>
    %c100_466 = arith.constant 100 : index
    %c0_467 = arith.constant 0 : index
    %265 = vector.load %arg11[%c100_466, %c0_467] : memref<108x288xbf16, #tpu.memory_space<vmem>>, vector<4x288xbf16>
    tpu.vector_store %arg11[%c100_466, %c0_467], %264 {strides = array<i32>} : memref<108x288xbf16, #tpu.memory_space<vmem>>, vector<4x288xbf16>,
    %c0_468 = arith.constant 0 : index
    %c0_469 = arith.constant 0 : index
    %c0_470 = arith.constant 0 : index
    %c38_471 = arith.constant 38 : index
    %266 = vector.load %arg8[%c0_468, %c0_469, %c0_470, %c38_471] : memref<1x1x4x326xbf16, #tpu.memory_space<vmem>>, vector<1x1x4x288xbf16>
    %267 = vector.shape_cast %266 : vector<1x1x4x288xbf16> to vector<4x288xbf16>
    %c104_472 = arith.constant 104 : index
    %c0_473 = arith.constant 0 : index
    %268 = vector.load %arg11[%c104_472, %c0_473] : memref<108x288xbf16, #tpu.memory_space<vmem>>, vector<4x288xbf16>
    tpu.vector_store %arg11[%c104_472, %c0_473], %267 {strides = array<i32>} : memref<108x288xbf16, #tpu.memory_space<vmem>>, vector<4x288xbf16>,
    %c0_474 = arith.constant 0 : index
    %c0_475 = arith.constant 0 : index
    %269 = vector.load %arg11[%c0_474, %c0_475] : memref<108x288xbf16, #tpu.memory_space<vmem>>, vector<108x288xbf16>
    %cst_476 = arith.constant dense<0.000000e+00> : vector<8x288xf32>
    %270 = tpu.matmul %0, %269, %cst_476 {dimension_numbers = #tpu.dot_dimension_numbers<[1], [0], [0], [1], [0, 0, 1, 1], [], []>} : vector<8x108xbf16>, vector<108x288xbf16>, vector<8x288xf32> -> vector<8x288xf32>
    %271 = vector.broadcast %1 : vector<8x1xf32> to vector<8x288xf32>
    %272 = arith.addf %270, %271 : vector<8x288xf32>
    %cst_477 = arith.constant 0.000000e+00 : f32
    %273 = vector.broadcast %cst_477 : f32 to vector<8x288xf32>
    %274 = arith.cmpf ogt, %272, %273 : vector<8x288xf32>
    %cst_478 = arith.constant 0.00999999977 : f32
    %275 = vector.broadcast %cst_478 : f32 to vector<8x288xf32>
    %276 = arith.mulf %275, %272 : vector<8x288xf32>
    %277 = arith.select %274, %272, %276 : vector<8x288xi1>, vector<8x288xf32>
    %c0_479 = arith.constant 0 : index
    %c2_480 = arith.constant 2 : index
    %c0_481 = arith.constant 0 : index
    %c0_482 = arith.constant 0 : index
    %278 = vector.load %arg10[%c0_479, %c2_480, %c0_481, %c0_482] : memref<1x4x8x288xf32, #tpu.memory_space<vmem>>, vector<1x1x8x288xf32>
    %279 = vector.shape_cast %278 : vector<1x1x8x288xf32> to vector<8x288xf32>
    %280 = vector.shape_cast %277 : vector<8x288xf32> to vector<1x1x8x288xf32>
    tpu.vector_store %arg10[%c0_479, %c2_480, %c0_481, %c0_482], %280 {strides = array<i32>} : memref<1x4x8x288xf32, #tpu.memory_space<vmem>>, vector<1x1x8x288xf32>,
    %c0_483 = arith.constant 0 : index
    %c0_484 = arith.constant 0 : index
    %c0_485 = arith.constant 0 : index
    %c0_486 = arith.constant 0 : index
    %281 = vector.load %arg7[%c0_483, %c0_484, %c0_485, %c0_486] : memref<1x1x4x326xbf16, #tpu.memory_space<vmem>>, vector<1x1x4x288xbf16>
    %282 = vector.shape_cast %281 : vector<1x1x4x288xbf16> to vector<4x288xbf16>
    %c0_487 = arith.constant 0 : index
    %c0_488 = arith.constant 0 : index
    %283 = vector.load %arg11[%c0_487, %c0_488] : memref<108x288xbf16, #tpu.memory_space<vmem>>, vector<4x288xbf16>
    tpu.vector_store %arg11[%c0_487, %c0_488], %282 {strides = array<i32>} : memref<108x288xbf16, #tpu.memory_space<vmem>>, vector<4x288xbf16>,
    %c0_489 = arith.constant 0 : index
    %c0_490 = arith.constant 0 : index
    %c0_491 = arith.constant 0 : index
    %c1_492 = arith.constant 1 : index
    %284 = vector.load %arg7[%c0_489, %c0_490, %c0_491, %c1_492] : memref<1x1x4x326xbf16, #tpu.memory_space<vmem>>, vector<1x1x4x288xbf16>
    %285 = vector.shape_cast %284 : vector<1x1x4x288xbf16> to vector<4x288xbf16>
    %c4_493 = arith.constant 4 : index
    %c0_494 = arith.constant 0 : index
    %286 = vector.load %arg11[%c4_493, %c0_494] : memref<108x288xbf16, #tpu.memory_space<vmem>>, vector<4x288xbf16>
    tpu.vector_store %arg11[%c4_493, %c0_494], %285 {strides = array<i32>} : memref<108x288xbf16, #tpu.memory_space<vmem>>, vector<4x288xbf16>,
    %c0_495 = arith.constant 0 : index
    %c0_496 = arith.constant 0 : index
    %c0_497 = arith.constant 0 : index
    %c2_498 = arith.constant 2 : index
    %287 = vector.load %arg7[%c0_495, %c0_496, %c0_497, %c2_498] : memref<1x1x4x326xbf16, #tpu.memory_space<vmem>>, vector<1x1x4x288xbf16>
    %288 = vector.shape_cast %287 : vector<1x1x4x288xbf16> to vector<4x288xbf16>
    %c8_499 = arith.constant 8 : index
    %c0_500 = arith.constant 0 : index
    %289 = vector.load %arg11[%c8_499, %c0_500] : memref<108x288xbf16, #tpu.memory_space<vmem>>, vector<4x288xbf16>
    tpu.vector_store %arg11[%c8_499, %c0_500], %288 {strides = array<i32>} : memref<108x288xbf16, #tpu.memory_space<vmem>>, vector<4x288xbf16>,
    %c0_501 = arith.constant 0 : index
    %c0_502 = arith.constant 0 : index
    %c0_503 = arith.constant 0 : index
    %c18_504 = arith.constant 18 : index
    %290 = vector.load %arg7[%c0_501, %c0_502, %c0_503, %c18_504] : memref<1x1x4x326xbf16, #tpu.memory_space<vmem>>, vector<1x1x4x288xbf16>
    %291 = vector.shape_cast %290 : vector<1x1x4x288xbf16> to vector<4x288xbf16>
    %c12_505 = arith.constant 12 : index
    %c0_506 = arith.constant 0 : index
    %292 = vector.load %arg11[%c12_505, %c0_506] : memref<108x288xbf16, #tpu.memory_space<vmem>>, vector<4x288xbf16>
    tpu.vector_store %arg11[%c12_505, %c0_506], %291 {strides = array<i32>} : memref<108x288xbf16, #tpu.memory_space<vmem>>, vector<4x288xbf16>,
    %c0_507 = arith.constant 0 : index
    %c0_508 = arith.constant 0 : index
    %c0_509 = arith.constant 0 : index
    %c19_510 = arith.constant 19 : index
    %293 = vector.load %arg7[%c0_507, %c0_508, %c0_509, %c19_510] : memref<1x1x4x326xbf16, #tpu.memory_space<vmem>>, vector<1x1x4x288xbf16>
    %294 = vector.shape_cast %293 : vector<1x1x4x288xbf16> to vector<4x288xbf16>
    %c16_511 = arith.constant 16 : index
    %c0_512 = arith.constant 0 : index
    %295 = vector.load %arg11[%c16_511, %c0_512] : memref<108x288xbf16, #tpu.memory_space<vmem>>, vector<4x288xbf16>
    tpu.vector_store %arg11[%c16_511, %c0_512], %294 {strides = array<i32>} : memref<108x288xbf16, #tpu.memory_space<vmem>>, vector<4x288xbf16>,
    %c0_513 = arith.constant 0 : index
    %c0_514 = arith.constant 0 : index
    %c0_515 = arith.constant 0 : index
    %c20_516 = arith.constant 20 : index
    %296 = vector.load %arg7[%c0_513, %c0_514, %c0_515, %c20_516] : memref<1x1x4x326xbf16, #tpu.memory_space<vmem>>, vector<1x1x4x288xbf16>
    %297 = vector.shape_cast %296 : vector<1x1x4x288xbf16> to vector<4x288xbf16>
    %c20_517 = arith.constant 20 : index
    %c0_518 = arith.constant 0 : index
    %298 = vector.load %arg11[%c20_517, %c0_518] : memref<108x288xbf16, #tpu.memory_space<vmem>>, vector<4x288xbf16>
    tpu.vector_store %arg11[%c20_517, %c0_518], %297 {strides = array<i32>} : memref<108x288xbf16, #tpu.memory_space<vmem>>, vector<4x288xbf16>,
    %c0_519 = arith.constant 0 : index
    %c0_520 = arith.constant 0 : index
    %c0_521 = arith.constant 0 : index
    %c36_522 = arith.constant 36 : index
    %299 = vector.load %arg7[%c0_519, %c0_520, %c0_521, %c36_522] : memref<1x1x4x326xbf16, #tpu.memory_space<vmem>>, vector<1x1x4x288xbf16>
    %300 = vector.shape_cast %299 : vector<1x1x4x288xbf16> to vector<4x288xbf16>
    %c24_523 = arith.constant 24 : index
    %c0_524 = arith.constant 0 : index
    %301 = vector.load %arg11[%c24_523, %c0_524] : memref<108x288xbf16, #tpu.memory_space<vmem>>, vector<4x288xbf16>
    tpu.vector_store %arg11[%c24_523, %c0_524], %300 {strides = array<i32>} : memref<108x288xbf16, #tpu.memory_space<vmem>>, vector<4x288xbf16>,
    %c0_525 = arith.constant 0 : index
    %c0_526 = arith.constant 0 : index
    %c0_527 = arith.constant 0 : index
    %c37_528 = arith.constant 37 : index
    %302 = vector.load %arg7[%c0_525, %c0_526, %c0_527, %c37_528] : memref<1x1x4x326xbf16, #tpu.memory_space<vmem>>, vector<1x1x4x288xbf16>
    %303 = vector.shape_cast %302 : vector<1x1x4x288xbf16> to vector<4x288xbf16>
    %c28_529 = arith.constant 28 : index
    %c0_530 = arith.constant 0 : index
    %304 = vector.load %arg11[%c28_529, %c0_530] : memref<108x288xbf16, #tpu.memory_space<vmem>>, vector<4x288xbf16>
    tpu.vector_store %arg11[%c28_529, %c0_530], %303 {strides = array<i32>} : memref<108x288xbf16, #tpu.memory_space<vmem>>, vector<4x288xbf16>,
    %c0_531 = arith.constant 0 : index
    %c0_532 = arith.constant 0 : index
    %c0_533 = arith.constant 0 : index
    %c38_534 = arith.constant 38 : index
    %305 = vector.load %arg7[%c0_531, %c0_532, %c0_533, %c38_534] : memref<1x1x4x326xbf16, #tpu.memory_space<vmem>>, vector<1x1x4x288xbf16>
    %306 = vector.shape_cast %305 : vector<1x1x4x288xbf16> to vector<4x288xbf16>
    %c32_535 = arith.constant 32 : index
    %c0_536 = arith.constant 0 : index
    %307 = vector.load %arg11[%c32_535, %c0_536] : memref<108x288xbf16, #tpu.memory_space<vmem>>, vector<4x288xbf16>
    tpu.vector_store %arg11[%c32_535, %c0_536], %306 {strides = array<i32>} : memref<108x288xbf16, #tpu.memory_space<vmem>>, vector<4x288xbf16>,
    %c0_537 = arith.constant 0 : index
    %c0_538 = arith.constant 0 : index
    %c0_539 = arith.constant 0 : index
    %c0_540 = arith.constant 0 : index
    %308 = vector.load %arg8[%c0_537, %c0_538, %c0_539, %c0_540] : memref<1x1x4x326xbf16, #tpu.memory_space<vmem>>, vector<1x1x4x288xbf16>
    %309 = vector.shape_cast %308 : vector<1x1x4x288xbf16> to vector<4x288xbf16>
    %c36_541 = arith.constant 36 : index
    %c0_542 = arith.constant 0 : index
    %310 = vector.load %arg11[%c36_541, %c0_542] : memref<108x288xbf16, #tpu.memory_space<vmem>>, vector<4x288xbf16>
    tpu.vector_store %arg11[%c36_541, %c0_542], %309 {strides = array<i32>} : memref<108x288xbf16, #tpu.memory_space<vmem>>, vector<4x288xbf16>,
    %c0_543 = arith.constant 0 : index
    %c0_544 = arith.constant 0 : index
    %c0_545 = arith.constant 0 : index
    %c1_546 = arith.constant 1 : index
    %311 = vector.load %arg8[%c0_543, %c0_544, %c0_545, %c1_546] : memref<1x1x4x326xbf16, #tpu.memory_space<vmem>>, vector<1x1x4x288xbf16>
    %312 = vector.shape_cast %311 : vector<1x1x4x288xbf16> to vector<4x288xbf16>
    %c40_547 = arith.constant 40 : index
    %c0_548 = arith.constant 0 : index
    %313 = vector.load %arg11[%c40_547, %c0_548] : memref<108x288xbf16, #tpu.memory_space<vmem>>, vector<4x288xbf16>
    tpu.vector_store %arg11[%c40_547, %c0_548], %312 {strides = array<i32>} : memref<108x288xbf16, #tpu.memory_space<vmem>>, vector<4x288xbf16>,
    %c0_549 = arith.constant 0 : index
    %c0_550 = arith.constant 0 : index
    %c0_551 = arith.constant 0 : index
    %c2_552 = arith.constant 2 : index
    %314 = vector.load %arg8[%c0_549, %c0_550, %c0_551, %c2_552] : memref<1x1x4x326xbf16, #tpu.memory_space<vmem>>, vector<1x1x4x288xbf16>
    %315 = vector.shape_cast %314 : vector<1x1x4x288xbf16> to vector<4x288xbf16>
    %c44_553 = arith.constant 44 : index
    %c0_554 = arith.constant 0 : index
    %316 = vector.load %arg11[%c44_553, %c0_554] : memref<108x288xbf16, #tpu.memory_space<vmem>>, vector<4x288xbf16>
    tpu.vector_store %arg11[%c44_553, %c0_554], %315 {strides = array<i32>} : memref<108x288xbf16, #tpu.memory_space<vmem>>, vector<4x288xbf16>,
    %c0_555 = arith.constant 0 : index
    %c0_556 = arith.constant 0 : index
    %c0_557 = arith.constant 0 : index
    %c18_558 = arith.constant 18 : index
    %317 = vector.load %arg8[%c0_555, %c0_556, %c0_557, %c18_558] : memref<1x1x4x326xbf16, #tpu.memory_space<vmem>>, vector<1x1x4x288xbf16>
    %318 = vector.shape_cast %317 : vector<1x1x4x288xbf16> to vector<4x288xbf16>
    %c48_559 = arith.constant 48 : index
    %c0_560 = arith.constant 0 : index
    %319 = vector.load %arg11[%c48_559, %c0_560] : memref<108x288xbf16, #tpu.memory_space<vmem>>, vector<4x288xbf16>
    tpu.vector_store %arg11[%c48_559, %c0_560], %318 {strides = array<i32>} : memref<108x288xbf16, #tpu.memory_space<vmem>>, vector<4x288xbf16>,
    %c0_561 = arith.constant 0 : index
    %c0_562 = arith.constant 0 : index
    %c0_563 = arith.constant 0 : index
    %c19_564 = arith.constant 19 : index
    %320 = vector.load %arg8[%c0_561, %c0_562, %c0_563, %c19_564] : memref<1x1x4x326xbf16, #tpu.memory_space<vmem>>, vector<1x1x4x288xbf16>
    %321 = vector.shape_cast %320 : vector<1x1x4x288xbf16> to vector<4x288xbf16>
    %c52_565 = arith.constant 52 : index
    %c0_566 = arith.constant 0 : index
    %322 = vector.load %arg11[%c52_565, %c0_566] : memref<108x288xbf16, #tpu.memory_space<vmem>>, vector<4x288xbf16>
    tpu.vector_store %arg11[%c52_565, %c0_566], %321 {strides = array<i32>} : memref<108x288xbf16, #tpu.memory_space<vmem>>, vector<4x288xbf16>,
    %c0_567 = arith.constant 0 : index
    %c0_568 = arith.constant 0 : index
    %c0_569 = arith.constant 0 : index
    %c20_570 = arith.constant 20 : index
    %323 = vector.load %arg8[%c0_567, %c0_568, %c0_569, %c20_570] : memref<1x1x4x326xbf16, #tpu.memory_space<vmem>>, vector<1x1x4x288xbf16>
    %324 = vector.shape_cast %323 : vector<1x1x4x288xbf16> to vector<4x288xbf16>
    %c56_571 = arith.constant 56 : index
    %c0_572 = arith.constant 0 : index
    %325 = vector.load %arg11[%c56_571, %c0_572] : memref<108x288xbf16, #tpu.memory_space<vmem>>, vector<4x288xbf16>
    tpu.vector_store %arg11[%c56_571, %c0_572], %324 {strides = array<i32>} : memref<108x288xbf16, #tpu.memory_space<vmem>>, vector<4x288xbf16>,
    %c0_573 = arith.constant 0 : index
    %c0_574 = arith.constant 0 : index
    %c0_575 = arith.constant 0 : index
    %c36_576 = arith.constant 36 : index
    %326 = vector.load %arg8[%c0_573, %c0_574, %c0_575, %c36_576] : memref<1x1x4x326xbf16, #tpu.memory_space<vmem>>, vector<1x1x4x288xbf16>
    %327 = vector.shape_cast %326 : vector<1x1x4x288xbf16> to vector<4x288xbf16>
    %c60_577 = arith.constant 60 : index
    %c0_578 = arith.constant 0 : index
    %328 = vector.load %arg11[%c60_577, %c0_578] : memref<108x288xbf16, #tpu.memory_space<vmem>>, vector<4x288xbf16>
    tpu.vector_store %arg11[%c60_577, %c0_578], %327 {strides = array<i32>} : memref<108x288xbf16, #tpu.memory_space<vmem>>, vector<4x288xbf16>,
    %c0_579 = arith.constant 0 : index
    %c0_580 = arith.constant 0 : index
    %c0_581 = arith.constant 0 : index
    %c37_582 = arith.constant 37 : index
    %329 = vector.load %arg8[%c0_579, %c0_580, %c0_581, %c37_582] : memref<1x1x4x326xbf16, #tpu.memory_space<vmem>>, vector<1x1x4x288xbf16>
    %330 = vector.shape_cast %329 : vector<1x1x4x288xbf16> to vector<4x288xbf16>
    %c64_583 = arith.constant 64 : index
    %c0_584 = arith.constant 0 : index
    %331 = vector.load %arg11[%c64_583, %c0_584] : memref<108x288xbf16, #tpu.memory_space<vmem>>, vector<4x288xbf16>
    tpu.vector_store %arg11[%c64_583, %c0_584], %330 {strides = array<i32>} : memref<108x288xbf16, #tpu.memory_space<vmem>>, vector<4x288xbf16>,
    %c0_585 = arith.constant 0 : index
    %c0_586 = arith.constant 0 : index
    %c0_587 = arith.constant 0 : index
    %c38_588 = arith.constant 38 : index
    %332 = vector.load %arg8[%c0_585, %c0_586, %c0_587, %c38_588] : memref<1x1x4x326xbf16, #tpu.memory_space<vmem>>, vector<1x1x4x288xbf16>
    %333 = vector.shape_cast %332 : vector<1x1x4x288xbf16> to vector<4x288xbf16>
    %c68_589 = arith.constant 68 : index
    %c0_590 = arith.constant 0 : index
    %334 = vector.load %arg11[%c68_589, %c0_590] : memref<108x288xbf16, #tpu.memory_space<vmem>>, vector<4x288xbf16>
    tpu.vector_store %arg11[%c68_589, %c0_590], %333 {strides = array<i32>} : memref<108x288xbf16, #tpu.memory_space<vmem>>, vector<4x288xbf16>,
    %c0_591 = arith.constant 0 : index
    %c0_592 = arith.constant 0 : index
    %c0_593 = arith.constant 0 : index
    %c0_594 = arith.constant 0 : index
    %335 = vector.load %arg9[%c0_591, %c0_592, %c0_593, %c0_594] : memref<1x1x4x326xbf16, #tpu.memory_space<vmem>>, vector<1x1x4x288xbf16>
    %336 = vector.shape_cast %335 : vector<1x1x4x288xbf16> to vector<4x288xbf16>
    %c72_595 = arith.constant 72 : index
    %c0_596 = arith.constant 0 : index
    %337 = vector.load %arg11[%c72_595, %c0_596] : memref<108x288xbf16, #tpu.memory_space<vmem>>, vector<4x288xbf16>
    tpu.vector_store %arg11[%c72_595, %c0_596], %336 {strides = array<i32>} : memref<108x288xbf16, #tpu.memory_space<vmem>>, vector<4x288xbf16>,
    %c0_597 = arith.constant 0 : index
    %c0_598 = arith.constant 0 : index
    %c0_599 = arith.constant 0 : index
    %c1_600 = arith.constant 1 : index
    %338 = vector.load %arg9[%c0_597, %c0_598, %c0_599, %c1_600] : memref<1x1x4x326xbf16, #tpu.memory_space<vmem>>, vector<1x1x4x288xbf16>
    %339 = vector.shape_cast %338 : vector<1x1x4x288xbf16> to vector<4x288xbf16>
    %c76_601 = arith.constant 76 : index
    %c0_602 = arith.constant 0 : index
    %340 = vector.load %arg11[%c76_601, %c0_602] : memref<108x288xbf16, #tpu.memory_space<vmem>>, vector<4x288xbf16>
    tpu.vector_store %arg11[%c76_601, %c0_602], %339 {strides = array<i32>} : memref<108x288xbf16, #tpu.memory_space<vmem>>, vector<4x288xbf16>,
    %c0_603 = arith.constant 0 : index
    %c0_604 = arith.constant 0 : index
    %c0_605 = arith.constant 0 : index
    %c2_606 = arith.constant 2 : index
    %341 = vector.load %arg9[%c0_603, %c0_604, %c0_605, %c2_606] : memref<1x1x4x326xbf16, #tpu.memory_space<vmem>>, vector<1x1x4x288xbf16>
    %342 = vector.shape_cast %341 : vector<1x1x4x288xbf16> to vector<4x288xbf16>
    %c80_607 = arith.constant 80 : index
    %c0_608 = arith.constant 0 : index
    %343 = vector.load %arg11[%c80_607, %c0_608] : memref<108x288xbf16, #tpu.memory_space<vmem>>, vector<4x288xbf16>
    tpu.vector_store %arg11[%c80_607, %c0_608], %342 {strides = array<i32>} : memref<108x288xbf16, #tpu.memory_space<vmem>>, vector<4x288xbf16>,
    %c0_609 = arith.constant 0 : index
    %c0_610 = arith.constant 0 : index
    %c0_611 = arith.constant 0 : index
    %c18_612 = arith.constant 18 : index
    %344 = vector.load %arg9[%c0_609, %c0_610, %c0_611, %c18_612] : memref<1x1x4x326xbf16, #tpu.memory_space<vmem>>, vector<1x1x4x288xbf16>
    %345 = vector.shape_cast %344 : vector<1x1x4x288xbf16> to vector<4x288xbf16>
    %c84_613 = arith.constant 84 : index
    %c0_614 = arith.constant 0 : index
    %346 = vector.load %arg11[%c84_613, %c0_614] : memref<108x288xbf16, #tpu.memory_space<vmem>>, vector<4x288xbf16>
    tpu.vector_store %arg11[%c84_613, %c0_614], %345 {strides = array<i32>} : memref<108x288xbf16, #tpu.memory_space<vmem>>, vector<4x288xbf16>,
    %c0_615 = arith.constant 0 : index
    %c0_616 = arith.constant 0 : index
    %c0_617 = arith.constant 0 : index
    %c19_618 = arith.constant 19 : index
    %347 = vector.load %arg9[%c0_615, %c0_616, %c0_617, %c19_618] : memref<1x1x4x326xbf16, #tpu.memory_space<vmem>>, vector<1x1x4x288xbf16>
    %348 = vector.shape_cast %347 : vector<1x1x4x288xbf16> to vector<4x288xbf16>
    %c88_619 = arith.constant 88 : index
    %c0_620 = arith.constant 0 : index
    %349 = vector.load %arg11[%c88_619, %c0_620] : memref<108x288xbf16, #tpu.memory_space<vmem>>, vector<4x288xbf16>
    tpu.vector_store %arg11[%c88_619, %c0_620], %348 {strides = array<i32>} : memref<108x288xbf16, #tpu.memory_space<vmem>>, vector<4x288xbf16>,
    %c0_621 = arith.constant 0 : index
    %c0_622 = arith.constant 0 : index
    %c0_623 = arith.constant 0 : index
    %c20_624 = arith.constant 20 : index
    %350 = vector.load %arg9[%c0_621, %c0_622, %c0_623, %c20_624] : memref<1x1x4x326xbf16, #tpu.memory_space<vmem>>, vector<1x1x4x288xbf16>
    %351 = vector.shape_cast %350 : vector<1x1x4x288xbf16> to vector<4x288xbf16>
    %c92_625 = arith.constant 92 : index
    %c0_626 = arith.constant 0 : index
    %352 = vector.load %arg11[%c92_625, %c0_626] : memref<108x288xbf16, #tpu.memory_space<vmem>>, vector<4x288xbf16>
    tpu.vector_store %arg11[%c92_625, %c0_626], %351 {strides = array<i32>} : memref<108x288xbf16, #tpu.memory_space<vmem>>, vector<4x288xbf16>,
    %c0_627 = arith.constant 0 : index
    %c0_628 = arith.constant 0 : index
    %c0_629 = arith.constant 0 : index
    %c36_630 = arith.constant 36 : index
    %353 = vector.load %arg9[%c0_627, %c0_628, %c0_629, %c36_630] : memref<1x1x4x326xbf16, #tpu.memory_space<vmem>>, vector<1x1x4x288xbf16>
    %354 = vector.shape_cast %353 : vector<1x1x4x288xbf16> to vector<4x288xbf16>
    %c96_631 = arith.constant 96 : index
    %c0_632 = arith.constant 0 : index
    %355 = vector.load %arg11[%c96_631, %c0_632] : memref<108x288xbf16, #tpu.memory_space<vmem>>, vector<4x288xbf16>
    tpu.vector_store %arg11[%c96_631, %c0_632], %354 {strides = array<i32>} : memref<108x288xbf16, #tpu.memory_space<vmem>>, vector<4x288xbf16>,
    %c0_633 = arith.constant 0 : index
    %c0_634 = arith.constant 0 : index
    %c0_635 = arith.constant 0 : index
    %c37_636 = arith.constant 37 : index
    %356 = vector.load %arg9[%c0_633, %c0_634, %c0_635, %c37_636] : memref<1x1x4x326xbf16, #tpu.memory_space<vmem>>, vector<1x1x4x288xbf16>
    %357 = vector.shape_cast %356 : vector<1x1x4x288xbf16> to vector<4x288xbf16>
    %c100_637 = arith.constant 100 : index
    %c0_638 = arith.constant 0 : index
    %358 = vector.load %arg11[%c100_637, %c0_638] : memref<108x288xbf16, #tpu.memory_space<vmem>>, vector<4x288xbf16>
    tpu.vector_store %arg11[%c100_637, %c0_638], %357 {strides = array<i32>} : memref<108x288xbf16, #tpu.memory_space<vmem>>, vector<4x288xbf16>,
    %c0_639 = arith.constant 0 : index
    %c0_640 = arith.constant 0 : index
    %c0_641 = arith.constant 0 : index
    %c38_642 = arith.constant 38 : index
    %359 = vector.load %arg9[%c0_639, %c0_640, %c0_641, %c38_642] : memref<1x1x4x326xbf16, #tpu.memory_space<vmem>>, vector<1x1x4x288xbf16>
    %360 = vector.shape_cast %359 : vector<1x1x4x288xbf16> to vector<4x288xbf16>
    %c104_643 = arith.constant 104 : index
    %c0_644 = arith.constant 0 : index
    %361 = vector.load %arg11[%c104_643, %c0_644] : memref<108x288xbf16, #tpu.memory_space<vmem>>, vector<4x288xbf16>
    tpu.vector_store %arg11[%c104_643, %c0_644], %360 {strides = array<i32>} : memref<108x288xbf16, #tpu.memory_space<vmem>>, vector<4x288xbf16>,
    %c0_645 = arith.constant 0 : index
    %c0_646 = arith.constant 0 : index
    %362 = vector.load %arg11[%c0_645, %c0_646] : memref<108x288xbf16, #tpu.memory_space<vmem>>, vector<108x288xbf16>
    %cst_647 = arith.constant dense<0.000000e+00> : vector<8x288xf32>
    %363 = tpu.matmul %0, %362, %cst_647 {dimension_numbers = #tpu.dot_dimension_numbers<[1], [0], [0], [1], [0, 0, 1, 1], [], []>} : vector<8x108xbf16>, vector<108x288xbf16>, vector<8x288xf32> -> vector<8x288xf32>
    %364 = vector.broadcast %1 : vector<8x1xf32> to vector<8x288xf32>
    %365 = arith.addf %363, %364 : vector<8x288xf32>
    %cst_648 = arith.constant 0.000000e+00 : f32
    %366 = vector.broadcast %cst_648 : f32 to vector<8x288xf32>
    %367 = arith.cmpf ogt, %365, %366 : vector<8x288xf32>
    %cst_649 = arith.constant 0.00999999977 : f32
    %368 = vector.broadcast %cst_649 : f32 to vector<8x288xf32>
    %369 = arith.mulf %368, %365 : vector<8x288xf32>
    %370 = arith.select %367, %365, %369 : vector<8x288xi1>, vector<8x288xf32>
    %c0_650 = arith.constant 0 : index
    %c3 = arith.constant 3 : index
    %c0_651 = arith.constant 0 : index
    %c0_652 = arith.constant 0 : index
    %371 = vector.load %arg10[%c0_650, %c3, %c0_651, %c0_652] : memref<1x4x8x288xf32, #tpu.memory_space<vmem>>, vector<1x1x8x288xf32>
    %372 = vector.shape_cast %371 : vector<1x1x8x288xf32> to vector<8x288xf32>
    %373 = vector.shape_cast %370 : vector<8x288xf32> to vector<1x1x8x288xf32>
    tpu.vector_store %arg10[%c0_650, %c3, %c0_651, %c0_652], %373 {strides = array<i32>} : memref<1x4x8x288xf32, #tpu.memory_space<vmem>>, vector<1x1x8x288xf32>,
    return
  }
  func.func @transform_0(%arg0: i32, %arg1: i32) -> (i32, i32) {
    %c0_i32 = arith.constant 0 : i32
    %c0_i32_0 = arith.constant 0 : i32
    %c0_i32_1 = arith.constant 0 : i32
    return %c0_i32, %c0_i32_0 : i32, i32
  }
  func.func @transform_1(%arg0: i32, %arg1: i32) -> (i32, i32) {
    %c0_i32 = arith.constant 0 : i32
    %c0_i32_0 = arith.constant 0 : i32
    %c0_i32_1 = arith.constant 0 : i32
    return %c0_i32, %c0_i32_0 : i32, i32
  }
  func.func @transform_2(%arg0: i32, %arg1: i32) -> (i32, i32, i32, i32) {
    %c4_i32 = arith.constant 4 : i32
    %0 = arith.muli %arg1, %c4_i32 : i32
    %c0_i32 = arith.constant 0 : i32
    %1 = arith.addi %0, %c0_i32 : i32
    %c0_i32_0 = arith.constant 0 : i32
    %c0_i32_1 = arith.constant 0 : i32
    %c0_i32_2 = arith.constant 0 : i32
    return %arg0, %1, %c0_i32_0, %c0_i32_1 : i32, i32, i32, i32
  }
  func.func @transform_3(%arg0: i32, %arg1: i32) -> (i32, i32, i32, i32) {
    %c4_i32 = arith.constant 4 : i32
    %0 = arith.muli %arg1, %c4_i32 : i32
    %c1_i32 = arith.constant 1 : i32
    %1 = arith.addi %0, %c1_i32 : i32
    %c0_i32 = arith.constant 0 : i32
    %c0_i32_0 = arith.constant 0 : i32
    %c0_i32_1 = arith.constant 0 : i32
    return %arg0, %1, %c0_i32, %c0_i32_0 : i32, i32, i32, i32
  }
  func.func @transform_4(%arg0: i32, %arg1: i32) -> (i32, i32, i32, i32) {
    %c4_i32 = arith.constant 4 : i32
    %0 = arith.muli %arg1, %c4_i32 : i32
    %c2_i32 = arith.constant 2 : i32
    %1 = arith.addi %0, %c2_i32 : i32
    %c0_i32 = arith.constant 0 : i32
    %c0_i32_0 = arith.constant 0 : i32
    %c0_i32_1 = arith.constant 0 : i32
    return %arg0, %1, %c0_i32, %c0_i32_0 : i32, i32, i32, i32
  }
  func.func @transform_5(%arg0: i32, %arg1: i32) -> (i32, i32, i32, i32) {
    %c4_i32 = arith.constant 4 : i32
    %0 = arith.muli %arg1, %c4_i32 : i32
    %c3_i32 = arith.constant 3 : i32
    %1 = arith.addi %0, %c3_i32 : i32
    %c0_i32 = arith.constant 0 : i32
    %c0_i32_0 = arith.constant 0 : i32
    %c0_i32_1 = arith.constant 0 : i32
    return %arg0, %1, %c0_i32, %c0_i32_0 : i32, i32, i32, i32
  }
  func.func @transform_6(%arg0: i32, %arg1: i32) -> (i32, i32, i32, i32) {
    %c4_i32 = arith.constant 4 : i32
    %0 = arith.muli %arg1, %c4_i32 : i32
    %c4_i32_0 = arith.constant 4 : i32
    %1 = arith.addi %0, %c4_i32_0 : i32
    %c0_i32 = arith.constant 0 : i32
    %c0_i32_1 = arith.constant 0 : i32
    %c0_i32_2 = arith.constant 0 : i32
    return %arg0, %1, %c0_i32, %c0_i32_1 : i32, i32, i32, i32
  }
  func.func @transform_7(%arg0: i32, %arg1: i32) -> (i32, i32, i32, i32) {
    %c4_i32 = arith.constant 4 : i32
    %0 = arith.muli %arg1, %c4_i32 : i32
    %c5_i32 = arith.constant 5 : i32
    %1 = arith.addi %0, %c5_i32 : i32
    %c0_i32 = arith.constant 0 : i32
    %c0_i32_0 = arith.constant 0 : i32
    %c0_i32_1 = arith.constant 0 : i32
    return %arg0, %1, %c0_i32, %c0_i32_0 : i32, i32, i32, i32
  }
  func.func @transform_8(%arg0: i32, %arg1: i32) -> (i32, i32, i32, i32) {
    %c0_i32 = arith.constant 0 : i32
    %c0_i32_0 = arith.constant 0 : i32
    %c0_i32_1 = arith.constant 0 : i32
    return %arg0, %arg1, %c0_i32, %c0_i32_0 : i32, i32, i32, i32
  }
}

</mosaic_0001>

<llo_original>
// kernel: conv_bn_relu3d.1
$region0: #{conv_bn_relu3d.1}
  #allocation0 [shape = 'u32[]', space=smem, size = 0x4, offset = 0x4, fixed_abs, tag = 'smem constant byte address 0x4 - core index']
  #allocation1 [shape = 'u32[144,128]{1,0:T(1,128)}', space=vmem, size = 0x12000, scoped, tag = 'internal scratch']
  #allocation2 [shape = 'bf16[108,288]{1,0:T(8,128)(2,1)}', space=vmem, size = 0x15000, scoped, tag = 'scratch operand']
  %s0 = inlined_call_operand.vmem [shape: bf16[8,108], index: 0, kind: input, shape index: {}]
  %s1 = inlined_call_operand.vmem [shape: f32[8,1], index: 1, kind: input, shape index: {}]
  %s2 = inlined_call_operand.vmem [shape: bf16[2,10,4,326], index: 2, kind: input, shape index: {}, may-alias: {2,3,4,5,6,7}]
  %s3 = inlined_call_operand.vmem [shape: bf16[2,10,4,326], index: 3, kind: input, shape index: {}, may-alias: {2,3,4,5,6,7}]
  %s4 = inlined_call_operand.vmem [shape: bf16[2,10,4,326], index: 4, kind: input, shape index: {}, may-alias: {2,3,4,5,6,7}]
  %s5 = inlined_call_operand.vmem [shape: bf16[2,10,4,326], index: 5, kind: input, shape index: {}, may-alias: {2,3,4,5,6,7}]
  %s6 = inlined_call_operand.vmem [shape: bf16[2,10,4,326], index: 6, kind: input, shape index: {}, may-alias: {2,3,4,5,6,7}]
  %s7 = inlined_call_operand.vmem [shape: bf16[2,10,4,326], index: 7, kind: input, shape index: {}, may-alias: {2,3,4,5,6,7}]
  %s8 = inlined_call_operand.vmem [shape: f32[2,8,8,288], index: 8, kind: output, shape index: {}]
  %s9 = sld [smem:[#allocation0]]
  $region65: #{conv_bn_relu3d.1} parent=0
    _
  %s11 = ssub.s32 1, %s9
  %s12 = scalar_select 0, %s11, %s9
  loop: start=0, step=1, limit=6
  $region2: #{conv_bn_relu3d.1} parent=0 // loop_pre_header
    _
  $region3: #{conv_bn_relu3d.1} parent=0 // loop_header
    %s14 = sphi 0, %s18
    %p15 = scmp.ge.s32.totalorder %s14, 6
    %s21 = sphi 0, %s33
    %s22 = sphi 0, %s29
    %s23 = sphi 0, %s21
    %s24 = sphi 0, %s22
    %s25 = sphi 0, %s23
    %s26 = sphi 0, %s24
    %s34 = sphi 0, %s34
    %s36 = sphi 0, %s34
    %s37 = sphi 0, %s36
    %s51 = sphi 0, %s37
    %s55 = sphi 0, %s55
    %s57 = sphi 0, %s55
    %s58 = sphi 0, %s57
    %s72 = sphi 0, %s58
    %s82 = sphi 0, %s84
    %s85 = sphi 0, %s82
    %s86 = sphi 0, %s85
    %s102 = sphi 0, %s86
    %s114 = sphi 0, %s116
    %s117 = sphi 0, %s114
    %s118 = sphi 0, %s117
    %s134 = sphi 0, %s118
    %s146 = sphi 0, %s148
    %s149 = sphi 0, %s146
    %s150 = sphi 0, %s149
    %s166 = sphi 0, %s150
    %s178 = sphi 0, %s180
    %s181 = sphi 0, %s178
    %s182 = sphi 0, %s181
    %s198 = sphi 0, %s182
    %s210 = sphi 0, %s212
    %s213 = sphi 0, %s210
    %s214 = sphi 0, %s213
    %s230 = sphi 0, %s214
    %s242 = sphi 0, %s244
    %s245 = sphi 0, %s242
    %s246 = sphi 0, %s245
    %s262 = sphi 0, %s246
    %s270 = sphi 0, %s272
    %s273 = sphi 0, %s270
    %s274 = sphi 0, %s273
    %s290 = sphi 0, %s274
  $region4: #{conv_bn_relu3d.1} parent=0 // loop_header_branch
    %17 = sbr.rel (%p15) target = $region8
  $region5: #{conv_bn_relu3d.1} parent=0 // loop_body
    %s19 = ssub.s32 %s14, 1
    %s20 = ssub.s32 %s14, 2
    %s27 = sadd.s32 1, %s22
    %p28 = scmp.ge.s32.totalorder %s27, 2
    %s29 = scalar_select %p28, 0, %s27
    %s30 = sadd.s32 1, %s21
    %s31 = scalar_select %p28, %s30, %s21
    %p32 = scmp.ge.s32.totalorder %s31, 2
    %s33 = scalar_select %p32, 0, %s31
    %s35 = sadd.s32 %s34, 1
    %p38 = scmp.eq.s32.totalorder %s14, 3
    %p39 = scmp.ne.s32.totalorder %s34, %s36
    %p40 = scmp.eq.s32.totalorder %s14, 0
    %p41 = por %p39, %p40
    %p42 = scmp.ne.s32.totalorder %s34, %s36
    %p43 = scmp.eq.s32.totalorder %s19, 3
    %p44 = por %p42, %p43
    %p45 = scmp.ne.s32.totalorder %s36, %s37
    %p46 = scmp.eq.s32.totalorder %s19, 0
    %p47 = por %p45, %p46
    %p48 = scmp.ne.s32.totalorder %s36, %s37
    %p49 = scmp.eq.s32.totalorder %s20, 3
    %p50 = por %p48, %p49
    %p52 = scmp.ne.s32.totalorder %s37, %s51
    %p53 = scmp.eq.s32.totalorder %s20, 0
    %p54 = por %p52, %p53
    %s56 = sadd.s32 %s55, 1
    %p59 = scmp.eq.s32.totalorder %s14, 3
    %p60 = scmp.ne.s32.totalorder %s55, %s57
    %p61 = scmp.eq.s32.totalorder %s14, 0
    %p62 = por %p60, %p61
    %p63 = scmp.ne.s32.totalorder %s55, %s57
    %p64 = scmp.eq.s32.totalorder %s19, 3
    %p65 = por %p63, %p64
    %p66 = scmp.ne.s32.totalorder %s57, %s58
    %p67 = scmp.eq.s32.totalorder %s19, 0
    %p68 = por %p66, %p67
    %p69 = scmp.ne.s32.totalorder %s57, %s58
    %p70 = scmp.eq.s32.totalorder %s20, 3
    %p71 = por %p69, %p70
    %p73 = scmp.ne.s32.totalorder %s58, %s72
    %p74 = scmp.eq.s32.totalorder %s20, 0
    %p75 = por %p73, %p74
    %s76 = smul.u32 %s22, 4
    %s77 = smul.u32 %s29, 4
    %s78 = ssub.s32 %s21, %s33
    %s79 = ssub.s32 %s76, %s77
    %s80 = sor.u32 %s78, %s79
    %p81 = scmp.eq.s32.totalorder %s80, 0
    %s83 = sadd.s32 %s82, 1
    %s84 = scalar_select %p81, %s82, %s83
    %p87 = pneg %p81
    %p88 = scmp.eq.s32.totalorder %s14, 3
    %p89 = por %p87, %p88
    %p90 = scmp.ne.s32.totalorder %s82, %s85
    %p91 = scmp.eq.s32.totalorder %s14, 0
    %p92 = por %p90, %p91
    %p93 = scmp.ne.s32.totalorder %s82, %s85
    %p94 = scmp.eq.s32.totalorder %s19, 3
    %p95 = por %p93, %p94
    %p96 = scmp.ne.s32.totalorder %s85, %s86
    %p97 = scmp.eq.s32.totalorder %s19, 0
    %p98 = por %p96, %p97
    %p99 = scmp.ne.s32.totalorder %s85, %s86
    %p100 = scmp.eq.s32.totalorder %s20, 3
    %p101 = por %p99, %p100
    %p103 = scmp.ne.s32.totalorder %s86, %s102
    %p104 = scmp.eq.s32.totalorder %s20, 0
    %p105 = por %p103, %p104
    %s106 = smul.u32 %s22, 4
    %s107 = sadd.s32 %s106, 1
    %s108 = smul.u32 %s29, 4
    %s109 = sadd.s32 %s108, 1
    %s110 = ssub.s32 %s21, %s33
    %s111 = ssub.s32 %s107, %s109
    %s112 = sor.u32 %s110, %s111
    %p113 = scmp.eq.s32.totalorder %s112, 0
    %s115 = sadd.s32 %s114, 1
    %s116 = scalar_select %p113, %s114, %s115
    %p119 = pneg %p113
    %p120 = scmp.eq.s32.totalorder %s14, 3
    %p121 = por %p119, %p120
    %p122 = scmp.ne.s32.totalorder %s114, %s117
    %p123 = scmp.eq.s32.totalorder %s14, 0
    %p124 = por %p122, %p123
    %p125 = scmp.ne.s32.totalorder %s114, %s117
    %p126 = scmp.eq.s32.totalorder %s19, 3
    %p127 = por %p125, %p126
    %p128 = scmp.ne.s32.totalorder %s117, %s118
    %p129 = scmp.eq.s32.totalorder %s19, 0
    %p130 = por %p128, %p129
    %p131 = scmp.ne.s32.totalorder %s117, %s118
    %p132 = scmp.eq.s32.totalorder %s20, 3
    %p133 = por %p131, %p132
    %p135 = scmp.ne.s32.totalorder %s118, %s134
    %p136 = scmp.eq.s32.totalorder %s20, 0
    %p137 = por %p135, %p136
    %s138 = smul.u32 %s22, 4
    %s139 = sadd.s32 %s138, 2
    %s140 = smul.u32 %s29, 4
    %s141 = sadd.s32 %s140, 2
    %s142 = ssub.s32 %s21, %s33
    %s143 = ssub.s32 %s139, %s141
    %s144 = sor.u32 %s142, %s143
    %p145 = scmp.eq.s32.totalorder %s144, 0
    %s147 = sadd.s32 %s146, 1
    %s148 = scalar_select %p145, %s146, %s147
    %p151 = pneg %p145
    %p152 = scmp.eq.s32.totalorder %s14, 3
    %p153 = por %p151, %p152
    %p154 = scmp.ne.s32.totalorder %s146, %s149
    %p155 = scmp.eq.s32.totalorder %s14, 0
    %p156 = por %p154, %p155
    %p157 = scmp.ne.s32.totalorder %s146, %s149
    %p158 = scmp.eq.s32.totalorder %s19, 3
    %p159 = por %p157, %p158
    %p160 = scmp.ne.s32.totalorder %s149, %s150
    %p161 = scmp.eq.s32.totalorder %s19, 0
    %p162 = por %p160, %p161
    %p163 = scmp.ne.s32.totalorder %s149, %s150
    %p164 = scmp.eq.s32.totalorder %s20, 3
    %p165 = por %p163, %p164
    %p167 = scmp.ne.s32.totalorder %s150, %s166
    %p168 = scmp.eq.s32.totalorder %s20, 0
    %p169 = por %p167, %p168
    %s170 = smul.u32 %s22, 4
    %s171 = sadd.s32 %s170, 3
    %s172 = smul.u32 %s29, 4
    %s173 = sadd.s32 %s172, 3
    %s174 = ssub.s32 %s21, %s33
    %s175 = ssub.s32 %s171, %s173
    %s176 = sor.u32 %s174, %s175
    %p177 = scmp.eq.s32.totalorder %s176, 0
    %s179 = sadd.s32 %s178, 1
    %s180 = scalar_select %p177, %s178, %s179
    %p183 = pneg %p177
    %p184 = scmp.eq.s32.totalorder %s14, 3
    %p185 = por %p183, %p184
    %p186 = scmp.ne.s32.totalorder %s178, %s181
    %p187 = scmp.eq.s32.totalorder %s14, 0
    %p188 = por %p186, %p187
    %p189 = scmp.ne.s32.totalorder %s178, %s181
    %p190 = scmp.eq.s32.totalorder %s19, 3
    %p191 = por %p189, %p190
    %p192 = scmp.ne.s32.totalorder %s181, %s182
    %p193 = scmp.eq.s32.totalorder %s19, 0
    %p194 = por %p192, %p193
    %p195 = scmp.ne.s32.totalorder %s181, %s182
    %p196 = scmp.eq.s32.totalorder %s20, 3
    %p197 = por %p195, %p196
    %p199 = scmp.ne.s32.totalorder %s182, %s198
    %p200 = scmp.eq.s32.totalorder %s20, 0
    %p201 = por %p199, %p200
    %s202 = smul.u32 %s22, 4
    %s203 = sadd.s32 %s202, 4
    %s204 = smul.u32 %s29, 4
    %s205 = sadd.s32 %s204, 4
    %s206 = ssub.s32 %s21, %s33
    %s207 = ssub.s32 %s203, %s205
    %s208 = sor.u32 %s206, %s207
    %p209 = scmp.eq.s32.totalorder %s208, 0
    %s211 = sadd.s32 %s210, 1
    %s212 = scalar_select %p209, %s210, %s211
    %p215 = pneg %p209
    %p216 = scmp.eq.s32.totalorder %s14, 3
    %p217 = por %p215, %p216
    %p218 = scmp.ne.s32.totalorder %s210, %s213
    %p219 = scmp.eq.s32.totalorder %s14, 0
    %p220 = por %p218, %p219
    %p221 = scmp.ne.s32.totalorder %s210, %s213
    %p222 = scmp.eq.s32.totalorder %s19, 3
    %p223 = por %p221, %p222
    %p224 = scmp.ne.s32.totalorder %s213, %s214
    %p225 = scmp.eq.s32.totalorder %s19, 0
    %p226 = por %p224, %p225
    %p227 = scmp.ne.s32.totalorder %s213, %s214
    %p228 = scmp.eq.s32.totalorder %s20, 3
    %p229 = por %p227, %p228
    %p231 = scmp.ne.s32.totalorder %s214, %s230
    %p232 = scmp.eq.s32.totalorder %s20, 0
    %p233 = por %p231, %p232
    %s234 = smul.u32 %s22, 4
    %s235 = sadd.s32 %s234, 5
    %s236 = smul.u32 %s29, 4
    %s237 = sadd.s32 %s236, 5
    %s238 = ssub.s32 %s21, %s33
    %s239 = ssub.s32 %s235, %s237
    %s240 = sor.u32 %s238, %s239
    %p241 = scmp.eq.s32.totalorder %s240, 0
    %s243 = sadd.s32 %s242, 1
    %s244 = scalar_select %p241, %s242, %s243
    %p247 = pneg %p241
    %p248 = scmp.eq.s32.totalorder %s14, 3
    %p249 = por %p247, %p248
    %p250 = scmp.ne.s32.totalorder %s242, %s245
    %p251 = scmp.eq.s32.totalorder %s14, 0
    %p252 = por %p250, %p251
    %p253 = scmp.ne.s32.totalorder %s242, %s245
    %p254 = scmp.eq.s32.totalorder %s19, 3
    %p255 = por %p253, %p254
    %p256 = scmp.ne.s32.totalorder %s245, %s246
    %p257 = scmp.eq.s32.totalorder %s19, 0
    %p258 = por %p256, %p257
    %p259 = scmp.ne.s32.totalorder %s245, %s246
    %p260 = scmp.eq.s32.totalorder %s20, 3
    %p261 = por %p259, %p260
    %p263 = scmp.ne.s32.totalorder %s246, %s262
    %p264 = scmp.eq.s32.totalorder %s20, 0
    %p265 = por %p263, %p264
    %s266 = ssub.s32 %s21, %s33
    %s267 = ssub.s32 %s22, %s29
    %s268 = sor.u32 %s266, %s267
    %p269 = scmp.eq.s32.totalorder %s268, 0
    %s271 = sadd.s32 %s270, 1
    %s272 = scalar_select %p269, %s270, %s271
    %p275 = pneg %p269
    %p276 = scmp.eq.s32.totalorder %s14, 3
    %p277 = por %p275, %p276
    %p278 = scmp.ne.s32.totalorder %s270, %s273
    %p279 = scmp.eq.s32.totalorder %s14, 0
    %p280 = por %p278, %p279
    %p281 = scmp.ne.s32.totalorder %s270, %s273
    %p282 = scmp.eq.s32.totalorder %s19, 3
    %p283 = por %p281, %p282
    %p284 = scmp.ne.s32.totalorder %s273, %s274
    %p285 = scmp.eq.s32.totalorder %s19, 0
    %p286 = por %p284, %p285
    %p287 = scmp.ne.s32.totalorder %s273, %s274
    %p288 = scmp.eq.s32.totalorder %s20, 3
    %p289 = por %p287, %p288
    %p291 = scmp.ne.s32.totalorder %s274, %s290
    %p292 = scmp.eq.s32.totalorder %s20, 0
    %p293 = por %p291, %p292
    %p294 = scmp.le.s32.totalorder 1, %s14
    %p295 = scmp.lt.s32.totalorder %s14, 5
    %p296 = pnand %p294, %p295
    %p297 = pneg %p296
    // Predicated region
    $region9: #{conv_bn_relu3d.1} parent=5 // pred_check
      _
    $region10: #{conv_bn_relu3d.1} parent=5 // pred_check_branch
      %299 = sbr.rel (%p296) target = $region12
    $region11: #{conv_bn_relu3d.1} parent=5 // pred_region
      %s300 = ssub.s32 %s14, 1
      // Predicated region
      $region13: #{conv_bn_relu3d.1} parent=11 // pred_check
        %p301 = pneg %p47
      $region14: #{conv_bn_relu3d.1} parent=11 // pred_check_branch
        %303 = sbr.rel (%p301) target = $region16
      $region15: #{conv_bn_relu3d.1} parent=11 // pred_region
        _
      $region16: #{conv_bn_relu3d.1} parent=11 // pred_fallthru
        _
      // Predicated region
      $region17: #{conv_bn_relu3d.1} parent=11 // pred_check
        %p304 = pneg %p68
      $region18: #{conv_bn_relu3d.1} parent=11 // pred_check_branch
        %306 = sbr.rel (%p304) target = $region20
      $region19: #{conv_bn_relu3d.1} parent=11 // pred_region
        _
      $region20: #{conv_bn_relu3d.1} parent=11 // pred_fallthru
        _
    $region12: #{conv_bn_relu3d.1} parent=5 // pred_fallthru
      _
    %p307 = scmp.lt.s32.totalorder %s14, 4
    // Predicated region
    $region21: #{conv_bn_relu3d.1} parent=5 // pred_check
      %p308 = pneg %p307
    $region22: #{conv_bn_relu3d.1} parent=5 // pred_check_branch
      %310 = sbr.rel (%p308) target = $region24
    $region23: #{conv_bn_relu3d.1} parent=5 // pred_region
      // Predicated region
      $region25: #{conv_bn_relu3d.1} parent=23 // pred_check
        %p311 = pneg %p92
      $region26: #{conv_bn_relu3d.1} parent=23 // pred_check_branch
        %313 = sbr.rel (%p311) target = $region28
      $region27: #{conv_bn_relu3d.1} parent=23 // pred_region
        %s314 = smul.u32 %s22, 4
        %p315 = scmp.lt.s32.totalorder %s21, 1
        %s316 = scalar_select %p315, %s21, 1
        %p317 = scmp.lt.s32.totalorder %s314, 9
        %s318 = scalar_select %p317, %s314, 9
        %s319 = smul.addr %s318, 3
        %s320 = smul.addr %s316, 30
        %s321 = sadd.s32 %s319, %s320
        %s322 = smul.addr %s321, 2
        %s323 = scalar_lea.vmem %s2, %s322
        %s324 = smul.u32 %s22, 4
      $region28: #{conv_bn_relu3d.1} parent=23 // pred_fallthru
        _
      // Predicated region
      $region29: #{conv_bn_relu3d.1} parent=23 // pred_check
        %p325 = pneg %p124
      $region30: #{conv_bn_relu3d.1} parent=23 // pred_check_branch
        %327 = sbr.rel (%p325) target = $region32
      $region31: #{conv_bn_relu3d.1} parent=23 // pred_region
        %s328 = smul.u32 %s22, 4
        %s329 = sadd.s32 %s328, 1
        %p330 = scmp.lt.s32.totalorder %s21, 1
        %s331 = scalar_select %p330, %s21, 1
        %p332 = scmp.lt.s32.totalorder %s329, 9
        %s333 = scalar_select %p332, %s329, 9
        %s334 = smul.addr %s333, 3
        %s335 = smul.addr %s331, 30
        %s336 = sadd.s32 %s334, %s335
        %s337 = smul.addr %s336, 2
        %s338 = scalar_lea.vmem %s3, %s337
        %s339 = smul.u32 %s22, 4
        %s340 = sadd.s32 %s339, 1
      $region32: #{conv_bn_relu3d.1} parent=23 // pred_fallthru
        _
      // Predicated region
      $region33: #{conv_bn_relu3d.1} parent=23 // pred_check
        %p341 = pneg %p156
      $region34: #{conv_bn_relu3d.1} parent=23 // pred_check_branch
        %343 = sbr.rel (%p341) target = $region36
      $region35: #{conv_bn_relu3d.1} parent=23 // pred_region
        %s344 = smul.u32 %s22, 4
        %s345 = sadd.s32 %s344, 2
        %p346 = scmp.lt.s32.totalorder %s21, 1
        %s347 = scalar_select %p346, %s21, 1
        %p348 = scmp.lt.s32.totalorder %s345, 9
        %s349 = scalar_select %p348, %s345, 9
        %s350 = smul.addr %s349, 3
        %s351 = smul.addr %s347, 30
        %s352 = sadd.s32 %s350, %s351
        %s353 = smul.addr %s352, 2
        %s354 = scalar_lea.vmem %s4, %s353
        %s355 = smul.u32 %s22, 4
        %s356 = sadd.s32 %s355, 2
      $region36: #{conv_bn_relu3d.1} parent=23 // pred_fallthru
        _
      // Predicated region
      $region37: #{conv_bn_relu3d.1} parent=23 // pred_check
        %p357 = pneg %p188
      $region38: #{conv_bn_relu3d.1} parent=23 // pred_check_branch
        %359 = sbr.rel (%p357) target = $region40
      $region39: #{conv_bn_relu3d.1} parent=23 // pred_region
        %s360 = smul.u32 %s22, 4
        %s361 = sadd.s32 %s360, 3
        %p362 = scmp.lt.s32.totalorder %s21, 1
        %s363 = scalar_select %p362, %s21, 1
        %p364 = scmp.lt.s32.totalorder %s361, 9
        %s365 = scalar_select %p364, %s361, 9
        %s366 = smul.addr %s365, 3
        %s367 = smul.addr %s363, 30
        %s368 = sadd.s32 %s366, %s367
        %s369 = smul.addr %s368, 2
        %s370 = scalar_lea.vmem %s5, %s369
        %s371 = smul.u32 %s22, 4
        %s372 = sadd.s32 %s371, 3
      $region40: #{conv_bn_relu3d.1} parent=23 // pred_fallthru
        _
      // Predicated region
      $region41: #{conv_bn_relu3d.1} parent=23 // pred_check
        %p373 = pneg %p220
      $region42: #{conv_bn_relu3d.1} parent=23 // pred_check_branch
        %375 = sbr.rel (%p373) target = $region44
      $region43: #{conv_bn_relu3d.1} parent=23 // pred_region
        %s376 = smul.u32 %s22, 4
        %s377 = sadd.s32 %s376, 4
        %p378 = scmp.lt.s32.totalorder %s21, 1
        %s379 = scalar_select %p378, %s21, 1
        %p380 = scmp.lt.s32.totalorder %s377, 9
        %s381 = scalar_select %p380, %s377, 9
        %s382 = smul.addr %s381, 3
        %s383 = smul.addr %s379, 30
        %s384 = sadd.s32 %s382, %s383
        %s385 = smul.addr %s384, 2
        %s386 = scalar_lea.vmem %s6, %s385
        %s387 = smul.u32 %s22, 4
        %s388 = sadd.s32 %s387, 4
      $region44: #{conv_bn_relu3d.1} parent=23 // pred_fallthru
        _
      // Predicated region
      $region45: #{conv_bn_relu3d.1} parent=23 // pred_check
        %p389 = pneg %p252
      $region46: #{conv_bn_relu3d.1} parent=23 // pred_check_branch
        %391 = sbr.rel (%p389) target = $region48
      $region47: #{conv_bn_relu3d.1} parent=23 // pred_region
        %s392 = smul.u32 %s22, 4
        %s393 = sadd.s32 %s392, 5
        %p394 = scmp.lt.s32.totalorder %s21, 1
        %s395 = scalar_select %p394, %s21, 1
        %p396 = scmp.lt.s32.totalorder %s393, 9
        %s397 = scalar_select %p396, %s393, 9
        %s398 = smul.addr %s397, 3
        %s399 = smul.addr %s395, 30
        %s400 = sadd.s32 %s398, %s399
        %s401 = smul.addr %s400, 2
        %s402 = scalar_lea.vmem %s7, %s401
        %s403 = smul.u32 %s22, 4
        %s404 = sadd.s32 %s403, 5
      $region48: #{conv_bn_relu3d.1} parent=23 // pred_fallthru
        _
    $region24: #{conv_bn_relu3d.1} parent=5 // pred_fallthru
      _
    %p405 = scmp.le.s32.totalorder 1, %s14
    %p406 = scmp.lt.s32.totalorder %s14, 5
    %p407 = pnand %p405, %p406
    %p408 = pneg %p407
    // Predicated region
    $region49: #{conv_bn_relu3d.1} parent=5 // pred_check
      _
    $region50: #{conv_bn_relu3d.1} parent=5 // pred_check_branch
      %410 = sbr.rel (%p407) target = $region52
    $region51: #{conv_bn_relu3d.1} parent=5 // pred_region
      %s411 = ssub.s32 %s14, 1
      %p412 = pneg %p47
      %p413 = pneg %p44
      %p414 = pneg %p68
      %p415 = pneg %p65
      %s416 = smul.u32 %s24, 4
      %p417 = scmp.lt.s32.totalorder %s23, 1
      %s418 = scalar_select %p417, %s23, 1
      %p419 = scmp.lt.s32.totalorder %s416, 9
      %s420 = scalar_select %p419, %s416, 9
      %s421 = smul.addr %s420, 3
      %s422 = smul.addr %s418, 30
      %s423 = sadd.s32 %s421, %s422
      %s424 = smul.addr %s423, 2
      %s425 = scalar_lea.vmem %s2, %s424
      %p426 = pneg %p98
      %p427 = pneg %p95
      %s428 = smul.u32 %s24, 4
      %s429 = sadd.s32 %s428, 1
      %p430 = scmp.lt.s32.totalorder %s23, 1
      %s431 = scalar_select %p430, %s23, 1
      %p432 = scmp.lt.s32.totalorder %s429, 9
      %s433 = scalar_select %p432, %s429, 9
      %s434 = smul.addr %s433, 3
      %s435 = smul.addr %s431, 30
      %s436 = sadd.s32 %s434, %s435
      %s437 = smul.addr %s436, 2
      %s438 = scalar_lea.vmem %s3, %s437
      %p439 = pneg %p130
      %p440 = pneg %p127
      %s441 = smul.u32 %s24, 4
      %s442 = sadd.s32 %s441, 2
      %p443 = scmp.lt.s32.totalorder %s23, 1
      %s444 = scalar_select %p443, %s23, 1
      %p445 = scmp.lt.s32.totalorder %s442, 9
      %s446 = scalar_select %p445, %s442, 9
      %s447 = smul.addr %s446, 3
      %s448 = smul.addr %s444, 30
      %s449 = sadd.s32 %s447, %s448
      %s450 = smul.addr %s449, 2
      %s451 = scalar_lea.vmem %s4, %s450
      %p452 = pneg %p162
      %p453 = pneg %p159
      %s454 = smul.u32 %s24, 4
      %s455 = sadd.s32 %s454, 3
      %p456 = scmp.lt.s32.totalorder %s23, 1
      %s457 = scalar_select %p456, %s23, 1
      %p458 = scmp.lt.s32.totalorder %s455, 9
      %s459 = scalar_select %p458, %s455, 9
      %s460 = smul.addr %s459, 3
      %s461 = smul.addr %s457, 30
      %s462 = sadd.s32 %s460, %s461
      %s463 = smul.addr %s462, 2
      %s464 = scalar_lea.vmem %s5, %s463
      %p465 = pneg %p194
      %p466 = pneg %p191
      %s467 = smul.u32 %s24, 4
      %s468 = sadd.s32 %s467, 4
      %p469 = scmp.lt.s32.totalorder %s23, 1
      %s470 = scalar_select %p469, %s23, 1
      %p471 = scmp.lt.s32.totalorder %s468, 9
      %s472 = scalar_select %p471, %s468, 9
      %s473 = smul.addr %s472, 3
      %s474 = smul.addr %s470, 30
      %s475 = sadd.s32 %s473, %s474
      %s476 = smul.addr %s475, 2
      %s477 = scalar_lea.vmem %s6, %s476
      %p478 = pneg %p226
      %p479 = pneg %p223
      %s480 = smul.u32 %s24, 4
      %s481 = sadd.s32 %s480, 5
      %p482 = scmp.lt.s32.totalorder %s23, 1
      %s483 = scalar_select %p482, %s23, 1
      %p484 = scmp.lt.s32.totalorder %s481, 9
      %s485 = scalar_select %p484, %s481, 9
      %s486 = smul.addr %s485, 3
      %s487 = smul.addr %s483, 30
      %s488 = sadd.s32 %s486, %s487
      %s489 = smul.addr %s488, 2
      %s490 = scalar_lea.vmem %s7, %s489
      %p491 = pneg %p258
      %p492 = pneg %p255
      %p493 = pneg %p286
      %p494 = pneg %p283
      %s495 = smul.u32 4, %s24
      %p496 = scmp.lt.s32.totalorder %s23, 1
      %s497 = scalar_select %p496, %s23, 1
      %p498 = scmp.lt.s32.totalorder %s495, 7
      %s499 = scalar_select %p498, %s495, 7
      %s500 = smul.addr %s499, 3
      %s501 = smul.addr %s497, 24
      %s502 = sadd.s32 %s500, %s501
      %s503 = smul.addr %s502, 8
      %s504 = scalar_lea.vmem %s8, %s503
      %s505 = smul.u32 %s24, 4
      %p506 = scmp.lt.s32.totalorder %s23, 1
      %s507 = scalar_select %p506, %s23, 1
      %p508 = scmp.lt.s32.totalorder %s505, 9
      %s509 = scalar_select %p508, %s505, 9
      %s510 = smul.addr %s509, 3
      %s511 = smul.addr %s507, 30
      %s512 = sadd.s32 %s510, %s511
      %s513 = smul.addr %s512, 2
      %s514 = scalar_lea.vmem %s2, %s513
      %s515 = smul.u32 %s24, 4
      %s516 = smul.u32 %s24, 4
      %s517 = sadd.s32 %s516, 1
      %p518 = scmp.lt.s32.totalorder %s23, 1
      %s519 = scalar_select %p518, %s23, 1
      %p520 = scmp.lt.s32.totalorder %s517, 9
      %s521 = scalar_select %p520, %s517, 9
      %s522 = smul.addr %s521, 3
      %s523 = smul.addr %s519, 30
      %s524 = sadd.s32 %s522, %s523
      %s525 = smul.addr %s524, 2
      %s526 = scalar_lea.vmem %s3, %s525
      %s527 = smul.u32 %s24, 4
      %s528 = sadd.s32 %s527, 1
      %s529 = smul.u32 %s24, 4
      %s530 = sadd.s32 %s529, 2
      %p531 = scmp.lt.s32.totalorder %s23, 1
      %s532 = scalar_select %p531, %s23, 1
      %p533 = scmp.lt.s32.totalorder %s530, 9
      %s534 = scalar_select %p533, %s530, 9
      %s535 = smul.addr %s534, 3
      %s536 = smul.addr %s532, 30
      %s537 = sadd.s32 %s535, %s536
      %s538 = smul.addr %s537, 2
      %s539 = scalar_lea.vmem %s4, %s538
      %s540 = smul.u32 %s24, 4
      %s541 = sadd.s32 %s540, 2
      %s542 = smul.u32 %s24, 4
      %s543 = sadd.s32 %s542, 3
      %p544 = scmp.lt.s32.totalorder %s23, 1
      %s545 = scalar_select %p544, %s23, 1
      %p546 = scmp.lt.s32.totalorder %s543, 9
      %s547 = scalar_select %p546, %s543, 9
      %s548 = smul.addr %s547, 3
      %s549 = smul.addr %s545, 30
      %s550 = sadd.s32 %s548, %s549
      %s551 = smul.addr %s550, 2
      %s552 = scalar_lea.vmem %s5, %s551
      %s553 = smul.u32 %s24, 4
      %s554 = sadd.s32 %s553, 3
      %s555 = smul.u32 %s24, 4
      %s556 = sadd.s32 %s555, 4
      %p557 = scmp.lt.s32.totalorder %s23, 1
      %s558 = scalar_select %p557, %s23, 1
      %p559 = scmp.lt.s32.totalorder %s556, 9
      %s560 = scalar_select %p559, %s556, 9
      %s561 = smul.addr %s560, 3
      %s562 = smul.addr %s558, 30
      %s563 = sadd.s32 %s561, %s562
      %s564 = smul.addr %s563, 2
      %s565 = scalar_lea.vmem %s6, %s564
      %s566 = smul.u32 %s24, 4
      %s567 = sadd.s32 %s566, 4
      %s568 = smul.u32 %s24, 4
      %s569 = sadd.s32 %s568, 5
      %p570 = scmp.lt.s32.totalorder %s23, 1
      %s571 = scalar_select %p570, %s23, 1
      %p572 = scmp.lt.s32.totalorder %s569, 9
      %s573 = scalar_select %p572, %s569, 9
      %s574 = smul.addr %s573, 3
      %s575 = smul.addr %s571, 30
      %s576 = sadd.s32 %s574, %s575
      %s577 = smul.addr %s576, 2
      %s578 = scalar_lea.vmem %s7, %s577
      %s579 = smul.u32 %s24, 4
      %s580 = sadd.s32 %s579, 5
      %s581 = smul.u32 4, %s24
      %p582 = scmp.lt.s32.totalorder %s23, 1
      %s583 = scalar_select %p582, %s23, 1
      %p584 = scmp.lt.s32.totalorder %s581, 7
      %s585 = scalar_select %p584, %s581, 7
      %s586 = smul.addr %s585, 3
      %s587 = smul.addr %s583, 24
      %s588 = sadd.s32 %s586, %s587
      %s589 = smul.addr %s588, 8
      %s590 = scalar_lea.vmem %s8, %s589
      %s591 = smul.u32 4, %s24
      %v593 = vld [vmem:[%s0] sm:$0xf]
      %v594 = vld [vmem:[%s1] sm:$0xff]
      %v595 = vld [vmem:[%s514] sm:$0x3f]
      %v597 = vcombine.high %v595, %v595
      %v599 = vunpack.c.l.s4 1983009808
      %v600 = vunpack.c.0.s8 %v599
      %v601 = vlaneseq
      %v602 = vshrl.u32 %v601, 7
      %v603 = vsub.s32 %v600, %v602
      %v604 = vrot.slane %v595, %v603
      %v606 = vunpack.c.l.s4 1983009808
      %v607 = vunpack.c.0.s8 %v606
      %v608 = vlaneseq
      %v609 = vshrl.u32 %v608, 7
      %v610 = vsub.s32 %v607, %v609
      %v611 = vrot.slane %v597, %v610
      %614 = vst [vmem:[#allocation2] sm:$0x33] %v604
      %vm615 = vcmask 254976
      %616 = vst.msk [vmem:[#allocation2 + $0x8] sm:$0x3] %vm615, %v611
      %v617 = vld [vmem:[%s514] sm:$0x3f]
      %v619 = vcombine.low %v617, %v617
      %v621 = vunpack.c.l.s4 1983009808
      %v622 = vunpack.c.0.s8 %v621
      %v623 = vlaneseq
      %v624 = vshrl.u32 %v623, 7
      %v625 = vsub.s32 %v622, %v624
      %v626 = vrot.slane %v619, %v625
      %v628 = vunpack.c.l.s4 1983009808
      %v629 = vunpack.c.0.s8 %v628
      %v630 = vlaneseq
      %v631 = vshrl.u32 %v630, 7
      %v632 = vsub.s32 %v629, %v631
      %v633 = vrot.slane %v617, %v632
      %634 = vrot.lane.b32.xlu0 %v626, 127
      %v635 = vpop.permute.xlu0 %634
      %636 = vrot.lane.b32.xlu0 %v633, 127
      %v637 = vpop.permute.xlu0 %636
      %v638 = vrot.slane %v635, 4
      %v639 = vrot.slane %v637, 4
      %vm640 = vcmask 1043456
      %v641 = vsel %vm640, %v638, %v639
      %vm642 = vcmask 1039360
      %v643 = vsel %vm642, %v635, %v641
      %646 = vst [vmem:[#allocation2] sm:$0xcc] %v643
      %vm647 = vcmask 257026
      %648 = vst.msk [vmem:[#allocation2 + $0x8] sm:$0xc] %vm647, %v637
      %v649 = vld [vmem:[%s514] sm:$0x3f]
      %v651 = vcombine.high %v649, %v649
      %v653 = vunpack.c.l.s4 1983009808
      %v654 = vunpack.c.0.s8 %v653
      %v655 = vlaneseq
      %v656 = vshrl.u32 %v655, 7
      %v657 = vsub.s32 %v654, %v656
      %v658 = vrot.slane %v649, %v657
      %v660 = vunpack.c.l.s4 1983009808
      %v661 = vunpack.c.0.s8 %v660
      %v662 = vlaneseq
      %v663 = vshrl.u32 %v662, 7
      %v664 = vsub.s32 %v661, %v663
      %v665 = vrot.slane %v651, %v664
      %666 = vrot.lane.b32.xlu0 %v658, 126
      %v667 = vpop.permute.xlu0 %666
      %668 = vrot.lane.b32.xlu0 %v665, 126
      %v669 = vpop.permute.xlu0 %668
      %v670 = vrot.slane %v667, 4
      %v671 = vrot.slane %v669, 4
      %v672 = vsel %vm640, %v670, %v671
      %vm673 = vcmask 1031168
      %v674 = vsel %vm673, %v667, %v672
      %677 = vst [vmem:[#allocation2 + $0xc] sm:$0x33] %v674
      %678 = vst.msk [vmem:[#allocation2 + $0x14] sm:$0x3] %vm615, %v669
      %v679 = vld [vmem:[%s514] sm:$0x3f]
      %v681 = vcombine.low %v679, %v679
      %v683 = vunpack.c.l.s4 1983009808
      %v684 = vunpack.c.0.s8 %v683
      %v685 = vlaneseq
      %v686 = vshrl.u32 %v685, 7
      %v687 = vsub.s32 %v684, %v686
      %v688 = vrot.slane %v681, %v687
      %v690 = vunpack.c.l.s4 1983009808
      %v691 = vunpack.c.0.s8 %v690
      %v692 = vlaneseq
      %v693 = vshrl.u32 %v692, 7
      %v694 = vsub.s32 %v691, %v693
      %v695 = vrot.slane %v679, %v694
      %696 = vrot.lane.b32.xlu0 %v688, 110
      %v697 = vpop.permute.xlu0 %696
      %698 = vrot.lane.b32.xlu0 %v695, 110
      %v699 = vpop.permute.xlu0 %698
      %v700 = vrot.slane %v697, 4
      %v701 = vrot.slane %v699, 4
      %v702 = vsel %vm640, %v700, %v701
      %vm703 = vcmask 900096
      %v704 = vsel %vm703, %v697, %v702
      %707 = vst [vmem:[#allocation2 + $0xc] sm:$0xcc] %v704
      %708 = vst.msk [vmem:[#allocation2 + $0x14] sm:$0xc] %vm647, %v699
      %v709 = vld [vmem:[%s514] sm:$0x3f]
      %v711 = vcombine.high %v709, %v709
      %v713 = vunpack.c.l.s4 1983009808
      %v714 = vunpack.c.0.s8 %v713
      %v715 = vlaneseq
      %v716 = vshrl.u32 %v715, 7
      %v717 = vsub.s32 %v714, %v716
      %v718 = vrot.slane %v709, %v717
      %v720 = vunpack.c.l.s4 1983009808
      %v721 = vunpack.c.0.s8 %v720
      %v722 = vlaneseq
      %v723 = vshrl.u32 %v722, 7
      %v724 = vsub.s32 %v721, %v723
      %v725 = vrot.slane %v711, %v724
      %726 = vrot.lane.b32.xlu0 %v718, 109
      %v727 = vpop.permute.xlu0 %726
      %728 = vrot.lane.b32.xlu0 %v725, 109
      %v729 = vpop.permute.xlu0 %728
      %v730 = vrot.slane %v727, 4
      %v731 = vrot.slane %v729, 4
      %v732 = vsel %vm640, %v730, %v731
      %vm733 = vcmask 891904
      %v734 = vsel %vm733, %v727, %v732
      %737 = vst [vmem:[#allocation2 + $0x18] sm:$0x33] %v734
      %738 = vst.msk [vmem:[#allocation2 + $0x20] sm:$0x3] %vm615, %v729
      %v739 = vld [vmem:[%s514] sm:$0x3f]
      %v741 = vcombine.low %v739, %v739
      %v743 = vunpack.c.l.s4 1983009808
      %v744 = vunpack.c.0.s8 %v743
      %v745 = vlaneseq
      %v746 = vshrl.u32 %v745, 7
      %v747 = vsub.s32 %v744, %v746
      %v748 = vrot.slane %v741, %v747
      %v750 = vunpack.c.l.s4 1983009808
      %v751 = vunpack.c.0.s8 %v750
      %v752 = vlaneseq
      %v753 = vshrl.u32 %v752, 7
      %v754 = vsub.s32 %v751, %v753
      %v755 = vrot.slane %v739, %v754
      %756 = vrot.lane.b32.xlu0 %v748, 108
      %v757 = vpop.permute.xlu0 %756
      %758 = vrot.lane.b32.xlu0 %v755, 108
      %v759 = vpop.permute.xlu0 %758
      %v760 = vrot.slane %v757, 4
      %v761 = vrot.slane %v759, 4
      %v762 = vsel %vm640, %v760, %v761
      %vm763 = vcmask 883712
      %v764 = vsel %vm763, %v757, %v762
      %767 = vst [vmem:[#allocation2 + $0x18] sm:$0xcc] %v764
      %768 = vst.msk [vmem:[#allocation2 + $0x20] sm:$0xc] %vm647, %v759
      %v769 = vld [vmem:[%s514] sm:$0x3f]
      %v771 = vcombine.high %v769, %v769
      %v773 = vunpack.c.l.s4 1983009808
      %v774 = vunpack.c.0.s8 %v773
      %v775 = vlaneseq
      %v776 = vshrl.u32 %v775, 7
      %v777 = vsub.s32 %v774, %v776
      %v778 = vrot.slane %v769, %v777
      %v780 = vunpack.c.l.s4 1983009808
      %v781 = vunpack.c.0.s8 %v780
      %v782 = vlaneseq
      %v783 = vshrl.u32 %v782, 7
      %v784 = vsub.s32 %v781, %v783
      %v785 = vrot.slane %v771, %v784
      %786 = vrot.lane.b32.xlu0 %v778, 92
      %v787 = vpop.permute.xlu0 %786
      %788 = vrot.lane.b32.xlu0 %v785, 92
      %v789 = vpop.permute.xlu0 %788
      %v790 = vrot.slane %v787, 4
      %v791 = vrot.slane %v789, 4
      %v792 = vsel %vm640, %v790, %v791
      %vm793 = vcmask 752640
      %v794 = vsel %vm793, %v787, %v792
      %797 = vst [vmem:[#allocation2 + $0x24] sm:$0x33] %v794
      %798 = vst.msk [vmem:[#allocation2 + $0x2c] sm:$0x3] %vm615, %v789
      %v799 = vld [vmem:[%s514] sm:$0x3f]
      %v801 = vcombine.low %v799, %v799
      %v803 = vunpack.c.l.s4 1983009808
      %v804 = vunpack.c.0.s8 %v803
      %v805 = vlaneseq
      %v806 = vshrl.u32 %v805, 7
      %v807 = vsub.s32 %v804, %v806
      %v808 = vrot.slane %v801, %v807
      %v810 = vunpack.c.l.s4 1983009808
      %v811 = vunpack.c.0.s8 %v810
      %v812 = vlaneseq
      %v813 = vshrl.u32 %v812, 7
      %v814 = vsub.s32 %v811, %v813
      %v815 = vrot.slane %v799, %v814
      %816 = vrot.lane.b32.xlu0 %v808, 91
      %v817 = vpop.permute.xlu0 %816
      %818 = vrot.lane.b32.xlu0 %v815, 91
      %v819 = vpop.permute.xlu0 %818
      %v820 = vrot.slane %v817, 4
      %v821 = vrot.slane %v819, 4
      %v822 = vsel %vm640, %v820, %v821
      %vm823 = vcmask 744448
      %v824 = vsel %vm823, %v817, %v822
      %827 = vst [vmem:[#allocation2 + $0x24] sm:$0xcc] %v824
      %828 = vst.msk [vmem:[#allocation2 + $0x2c] sm:$0xc] %vm647, %v819
      %v829 = vld [vmem:[%s514] sm:$0x3f]
      %v831 = vcombine.high %v829, %v829
      %v833 = vunpack.c.l.s4 1983009808
      %v834 = vunpack.c.0.s8 %v833
      %v835 = vlaneseq
      %v836 = vshrl.u32 %v835, 7
      %v837 = vsub.s32 %v834, %v836
      %v838 = vrot.slane %v829, %v837
      %v840 = vunpack.c.l.s4 1983009808
      %v841 = vunpack.c.0.s8 %v840
      %v842 = vlaneseq
      %v843 = vshrl.u32 %v842, 7
      %v844 = vsub.s32 %v841, %v843
      %v845 = vrot.slane %v831, %v844
      %846 = vrot.lane.b32.xlu0 %v838, 90
      %v847 = vpop.permute.xlu0 %846
      %848 = vrot.lane.b32.xlu0 %v845, 90
      %v849 = vpop.permute.xlu0 %848
      %v850 = vrot.slane %v847, 4
      %v851 = vrot.slane %v849, 4
      %v852 = vsel %vm640, %v850, %v851
      %vm853 = vcmask 736256
      %v854 = vsel %vm853, %v847, %v852
      %857 = vst [vmem:[#allocation2 + $0x30] sm:$0x33] %v854
      %858 = vst.msk [vmem:[#allocation2 + $0x38] sm:$0x3] %vm615, %v849
      %v859 = vld [vmem:[%s526] sm:$0x3f]
      %v861 = vcombine.low %v859, %v859
      %v863 = vunpack.c.l.s4 1983009808
      %v864 = vunpack.c.0.s8 %v863
      %v865 = vlaneseq
      %v866 = vshrl.u32 %v865, 7
      %v867 = vsub.s32 %v864, %v866
      %v868 = vrot.slane %v861, %v867
      %v870 = vunpack.c.l.s4 1983009808
      %v871 = vunpack.c.0.s8 %v870
      %v872 = vlaneseq
      %v873 = vshrl.u32 %v872, 7
      %v874 = vsub.s32 %v871, %v873
      %v875 = vrot.slane %v859, %v874
      %878 = vst [vmem:[#allocation2 + $0x30] sm:$0xcc] %v868
      %879 = vst.msk [vmem:[#allocation2 + $0x38] sm:$0xc] %vm647, %v875
      %v880 = vld [vmem:[%s526] sm:$0x3f]
      %v882 = vcombine.high %v880, %v880
      %v884 = vunpack.c.l.s4 1983009808
      %v885 = vunpack.c.0.s8 %v884
      %v886 = vlaneseq
      %v887 = vshrl.u32 %v886, 7
      %v888 = vsub.s32 %v885, %v887
      %v889 = vrot.slane %v880, %v888
      %v891 = vunpack.c.l.s4 1983009808
      %v892 = vunpack.c.0.s8 %v891
      %v893 = vlaneseq
      %v894 = vshrl.u32 %v893, 7
      %v895 = vsub.s32 %v892, %v894
      %v896 = vrot.slane %v882, %v895
      %897 = vrot.lane.b32.xlu0 %v889, 127
      %v898 = vpop.permute.xlu0 %897
      %899 = vrot.lane.b32.xlu0 %v896, 127
      %v900 = vpop.permute.xlu0 %899
      %v901 = vrot.slane %v898, 4
      %v902 = vrot.slane %v900, 4
      %v903 = vsel %vm640, %v901, %v902
      %v904 = vsel %vm642, %v898, %v903
      %907 = vst [vmem:[#allocation2 + $0x3c] sm:$0x33] %v904
      %908 = vst.msk [vmem:[#allocation2 + $0x44] sm:$0x3] %vm615, %v900
      %v909 = vld [vmem:[%s526] sm:$0x3f]
      %v911 = vcombine.low %v909, %v909
      %v913 = vunpack.c.l.s4 1983009808
      %v914 = vunpack.c.0.s8 %v913
      %v915 = vlaneseq
      %v916 = vshrl.u32 %v915, 7
      %v917 = vsub.s32 %v914, %v916
      %v918 = vrot.slane %v911, %v917
      %v920 = vunpack.c.l.s4 1983009808
      %v921 = vunpack.c.0.s8 %v920
      %v922 = vlaneseq
      %v923 = vshrl.u32 %v922, 7
      %v924 = vsub.s32 %v921, %v923
      %v925 = vrot.slane %v909, %v924
      %926 = vrot.lane.b32.xlu0 %v918, 126
      %v927 = vpop.permute.xlu0 %926
      %928 = vrot.lane.b32.xlu0 %v925, 126
      %v929 = vpop.permute.xlu0 %928
      %v930 = vrot.slane %v927, 4
      %v931 = vrot.slane %v929, 4
      %v932 = vsel %vm640, %v930, %v931
      %v933 = vsel %vm673, %v927, %v932
      %936 = vst [vmem:[#allocation2 + $0x3c] sm:$0xcc] %v933
      %937 = vst.msk [vmem:[#allocation2 + $0x44] sm:$0xc] %vm647, %v929
      %v938 = vld [vmem:[%s526] sm:$0x3f]
      %v940 = vcombine.high %v938, %v938
      %v942 = vunpack.c.l.s4 1983009808
      %v943 = vunpack.c.0.s8 %v942
      %v944 = vlaneseq
      %v945 = vshrl.u32 %v944, 7
      %v946 = vsub.s32 %v943, %v945
      %v947 = vrot.slane %v938, %v946
      %v949 = vunpack.c.l.s4 1983009808
      %v950 = vunpack.c.0.s8 %v949
      %v951 = vlaneseq
      %v952 = vshrl.u32 %v951, 7
      %v953 = vsub.s32 %v950, %v952
      %v954 = vrot.slane %v940, %v953
      %955 = vrot.lane.b32.xlu0 %v947, 110
      %v956 = vpop.permute.xlu0 %955
      %957 = vrot.lane.b32.xlu0 %v954, 110
      %v958 = vpop.permute.xlu0 %957
      %v959 = vrot.slane %v956, 4
      %v960 = vrot.slane %v958, 4
      %v961 = vsel %vm640, %v959, %v960
      %v962 = vsel %vm703, %v956, %v961
      %965 = vst [vmem:[#allocation2 + $0x48] sm:$0x33] %v962
      %966 = vst.msk [vmem:[#allocation2 + $0x50] sm:$0x3] %vm615, %v958
      %v967 = vld [vmem:[%s526] sm:$0x3f]
      %v969 = vcombine.low %v967, %v967
      %v971 = vunpack.c.l.s4 1983009808
      %v972 = vunpack.c.0.s8 %v971
      %v973 = vlaneseq
      %v974 = vshrl.u32 %v973, 7
      %v975 = vsub.s32 %v972, %v974
      %v976 = vrot.slane %v969, %v975
      %v978 = vunpack.c.l.s4 1983009808
      %v979 = vunpack.c.0.s8 %v978
      %v980 = vlaneseq
      %v981 = vshrl.u32 %v980, 7
      %v982 = vsub.s32 %v979, %v981
      %v983 = vrot.slane %v967, %v982
      %984 = vrot.lane.b32.xlu0 %v976, 109
      %v985 = vpop.permute.xlu0 %984
      %986 = vrot.lane.b32.xlu0 %v983, 109
      %v987 = vpop.permute.xlu0 %986
      %v988 = vrot.slane %v985, 4
      %v989 = vrot.slane %v987, 4
      %v990 = vsel %vm640, %v988, %v989
      %v991 = vsel %vm733, %v985, %v990
      %994 = vst [vmem:[#allocation2 + $0x48] sm:$0xcc] %v991
      %995 = vst.msk [vmem:[#allocation2 + $0x50] sm:$0xc] %vm647, %v987
      %v996 = vld [vmem:[%s526] sm:$0x3f]
      %v998 = vcombine.high %v996, %v996
      %v1000 = vunpack.c.l.s4 1983009808
      %v1001 = vunpack.c.0.s8 %v1000
      %v1002 = vlaneseq
      %v1003 = vshrl.u32 %v1002, 7
      %v1004 = vsub.s32 %v1001, %v1003
      %v1005 = vrot.slane %v996, %v1004
      %v1007 = vunpack.c.l.s4 1983009808
      %v1008 = vunpack.c.0.s8 %v1007
      %v1009 = vlaneseq
      %v1010 = vshrl.u32 %v1009, 7
      %v1011 = vsub.s32 %v1008, %v1010
      %v1012 = vrot.slane %v998, %v1011
      %1013 = vrot.lane.b32.xlu0 %v1005, 108
      %v1014 = vpop.permute.xlu0 %1013
      %1015 = vrot.lane.b32.xlu0 %v1012, 108
      %v1016 = vpop.permute.xlu0 %1015
      %v1017 = vrot.slane %v1014, 4
      %v1018 = vrot.slane %v1016, 4
      %v1019 = vsel %vm640, %v1017, %v1018
      %v1020 = vsel %vm763, %v1014, %v1019
      %1023 = vst [vmem:[#allocation2 + $0x54] sm:$0x33] %v1020
      %1024 = vst.msk [vmem:[#allocation2 + $0x5c] sm:$0x3] %vm615, %v1016
      %v1025 = vld [vmem:[%s526] sm:$0x3f]
      %v1027 = vcombine.low %v1025, %v1025
      %v1029 = vunpack.c.l.s4 1983009808
      %v1030 = vunpack.c.0.s8 %v1029
      %v1031 = vlaneseq
      %v1032 = vshrl.u32 %v1031, 7
      %v1033 = vsub.s32 %v1030, %v1032
      %v1034 = vrot.slane %v1027, %v1033
      %v1036 = vunpack.c.l.s4 1983009808
      %v1037 = vunpack.c.0.s8 %v1036
      %v1038 = vlaneseq
      %v1039 = vshrl.u32 %v1038, 7
      %v1040 = vsub.s32 %v1037, %v1039
      %v1041 = vrot.slane %v1025, %v1040
      %1042 = vrot.lane.b32.xlu0 %v1034, 92
      %v1043 = vpop.permute.xlu0 %1042
      %1044 = vrot.lane.b32.xlu0 %v1041, 92
      %v1045 = vpop.permute.xlu0 %1044
      %v1046 = vrot.slane %v1043, 4
      %v1047 = vrot.slane %v1045, 4
      %v1048 = vsel %vm640, %v1046, %v1047
      %v1049 = vsel %vm793, %v1043, %v1048
      %1052 = vst [vmem:[#allocation2 + $0x54] sm:$0xcc] %v1049
      %1053 = vst.msk [vmem:[#allocation2 + $0x5c] sm:$0xc] %vm647, %v1045
      %v1054 = vld [vmem:[%s526] sm:$0x3f]
      %v1056 = vcombine.high %v1054, %v1054
      %v1058 = vunpack.c.l.s4 1983009808
      %v1059 = vunpack.c.0.s8 %v1058
      %v1060 = vlaneseq
      %v1061 = vshrl.u32 %v1060, 7
      %v1062 = vsub.s32 %v1059, %v1061
      %v1063 = vrot.slane %v1054, %v1062
      %v1065 = vunpack.c.l.s4 1983009808
      %v1066 = vunpack.c.0.s8 %v1065
      %v1067 = vlaneseq
      %v1068 = vshrl.u32 %v1067, 7
      %v1069 = vsub.s32 %v1066, %v1068
      %v1070 = vrot.slane %v1056, %v1069
      %1071 = vrot.lane.b32.xlu0 %v1063, 91
      %v1072 = vpop.permute.xlu0 %1071
      %1073 = vrot.lane.b32.xlu0 %v1070, 91
      %v1074 = vpop.permute.xlu0 %1073
      %v1075 = vrot.slane %v1072, 4
      %v1076 = vrot.slane %v1074, 4
      %v1077 = vsel %vm640, %v1075, %v1076
      %v1078 = vsel %vm823, %v1072, %v1077
      %1081 = vst [vmem:[#allocation2 + $0x60] sm:$0x33] %v1078
      %1082 = vst.msk [vmem:[#allocation2 + $0x68] sm:$0x3] %vm615, %v1074
      %v1083 = vld [vmem:[%s526] sm:$0x3f]
      %v1085 = vcombine.low %v1083, %v1083
      %v1087 = vunpack.c.l.s4 1983009808
      %v1088 = vunpack.c.0.s8 %v1087
      %v1089 = vlaneseq
      %v1090 = vshrl.u32 %v1089, 7
      %v1091 = vsub.s32 %v1088, %v1090
      %v1092 = vrot.slane %v1085, %v1091
      %v1094 = vunpack.c.l.s4 1983009808
      %v1095 = vunpack.c.0.s8 %v1094
      %v1096 = vlaneseq
      %v1097 = vshrl.u32 %v1096, 7
      %v1098 = vsub.s32 %v1095, %v1097
      %v1099 = vrot.slane %v1083, %v1098
      %1100 = vrot.lane.b32.xlu0 %v1092, 90
      %v1101 = vpop.permute.xlu0 %1100
      %1102 = vrot.lane.b32.xlu0 %v1099, 90
      %v1103 = vpop.permute.xlu0 %1102
      %v1104 = vrot.slane %v1101, 4
      %v1105 = vrot.slane %v1103, 4
      %v1106 = vsel %vm640, %v1104, %v1105
      %v1107 = vsel %vm853, %v1101, %v1106
      %1110 = vst [vmem:[#allocation2 + $0x60] sm:$0xcc] %v1107
      %1111 = vst.msk [vmem:[#allocation2 + $0x68] sm:$0xc] %vm647, %v1103
      %v1112 = vld [vmem:[%s539] sm:$0x3f]
      %v1114 = vcombine.high %v1112, %v1112
      %v1116 = vunpack.c.l.s4 1983009808
      %v1117 = vunpack.c.0.s8 %v1116
      %v1118 = vlaneseq
      %v1119 = vshrl.u32 %v1118, 7
      %v1120 = vsub.s32 %v1117, %v1119
      %v1121 = vrot.slane %v1112, %v1120
      %v1123 = vunpack.c.l.s4 1983009808
      %v1124 = vunpack.c.0.s8 %v1123
      %v1125 = vlaneseq
      %v1126 = vshrl.u32 %v1125, 7
      %v1127 = vsub.s32 %v1124, %v1126
      %v1128 = vrot.slane %v1114, %v1127
      %1131 = vst [vmem:[#allocation2 + $0x6c] sm:$0x33] %v1121
      %1132 = vst.msk [vmem:[#allocation2 + $0x74] sm:$0x3] %vm615, %v1128
      %v1133 = vld [vmem:[%s539] sm:$0x3f]
      %v1135 = vcombine.low %v1133, %v1133
      %v1137 = vunpack.c.l.s4 1983009808
      %v1138 = vunpack.c.0.s8 %v1137
      %v1139 = vlaneseq
      %v1140 = vshrl.u32 %v1139, 7
      %v1141 = vsub.s32 %v1138, %v1140
      %v1142 = vrot.slane %v1135, %v1141
      %v1144 = vunpack.c.l.s4 1983009808
      %v1145 = vunpack.c.0.s8 %v1144
      %v1146 = vlaneseq
      %v1147 = vshrl.u32 %v1146, 7
      %v1148 = vsub.s32 %v1145, %v1147
      %v1149 = vrot.slane %v1133, %v1148
      %1150 = vrot.lane.b32.xlu0 %v1142, 127
      %v1151 = vpop.permute.xlu0 %1150
      %1152 = vrot.lane.b32.xlu0 %v1149, 127
      %v1153 = vpop.permute.xlu0 %1152
      %v1154 = vrot.slane %v1151, 4
      %v1155 = vrot.slane %v1153, 4
      %v1156 = vsel %vm640, %v1154, %v1155
      %v1157 = vsel %vm642, %v1151, %v1156
      %1160 = vst [vmem:[#allocation2 + $0x6c] sm:$0xcc] %v1157
      %1161 = vst.msk [vmem:[#allocation2 + $0x74] sm:$0xc] %vm647, %v1153
      %v1162 = vld [vmem:[%s539] sm:$0x3f]
      %v1164 = vcombine.high %v1162, %v1162
      %v1166 = vunpack.c.l.s4 1983009808
      %v1167 = vunpack.c.0.s8 %v1166
      %v1168 = vlaneseq
      %v1169 = vshrl.u32 %v1168, 7
      %v1170 = vsub.s32 %v1167, %v1169
      %v1171 = vrot.slane %v1162, %v1170
      %v1173 = vunpack.c.l.s4 1983009808
      %v1174 = vunpack.c.0.s8 %v1173
      %v1175 = vlaneseq
      %v1176 = vshrl.u32 %v1175, 7
      %v1177 = vsub.s32 %v1174, %v1176
      %v1178 = vrot.slane %v1164, %v1177
      %1179 = vrot.lane.b32.xlu0 %v1171, 126
      %v1180 = vpop.permute.xlu0 %1179
      %1181 = vrot.lane.b32.xlu0 %v1178, 126
      %v1182 = vpop.permute.xlu0 %1181
      %v1183 = vrot.slane %v1180, 4
      %v1184 = vrot.slane %v1182, 4
      %v1185 = vsel %vm640, %v1183, %v1184
      %v1186 = vsel %vm673, %v1180, %v1185
      %1189 = vst [vmem:[#allocation2 + $0x78] sm:$0x33] %v1186
      %1190 = vst.msk [vmem:[#allocation2 + $0x80] sm:$0x3] %vm615, %v1182
      %v1191 = vld [vmem:[%s539] sm:$0x3f]
      %v1193 = vcombine.low %v1191, %v1191
      %v1195 = vunpack.c.l.s4 1983009808
      %v1196 = vunpack.c.0.s8 %v1195
      %v1197 = vlaneseq
      %v1198 = vshrl.u32 %v1197, 7
      %v1199 = vsub.s32 %v1196, %v1198
      %v1200 = vrot.slane %v1193, %v1199
      %v1202 = vunpack.c.l.s4 1983009808
      %v1203 = vunpack.c.0.s8 %v1202
      %v1204 = vlaneseq
      %v1205 = vshrl.u32 %v1204, 7
      %v1206 = vsub.s32 %v1203, %v1205
      %v1207 = vrot.slane %v1191, %v1206
      %1208 = vrot.lane.b32.xlu0 %v1200, 110
      %v1209 = vpop.permute.xlu0 %1208
      %1210 = vrot.lane.b32.xlu0 %v1207, 110
      %v1211 = vpop.permute.xlu0 %1210
      %v1212 = vrot.slane %v1209, 4
      %v1213 = vrot.slane %v1211, 4
      %v1214 = vsel %vm640, %v1212, %v1213
      %v1215 = vsel %vm703, %v1209, %v1214
      %1218 = vst [vmem:[#allocation2 + $0x78] sm:$0xcc] %v1215
      %1219 = vst.msk [vmem:[#allocation2 + $0x80] sm:$0xc] %vm647, %v1211
      %v1220 = vld [vmem:[%s539] sm:$0x3f]
      %v1222 = vcombine.high %v1220, %v1220
      %v1224 = vunpack.c.l.s4 1983009808
      %v1225 = vunpack.c.0.s8 %v1224
      %v1226 = vlaneseq
      %v1227 = vshrl.u32 %v1226, 7
      %v1228 = vsub.s32 %v1225, %v1227
      %v1229 = vrot.slane %v1220, %v1228
      %v1231 = vunpack.c.l.s4 1983009808
      %v1232 = vunpack.c.0.s8 %v1231
      %v1233 = vlaneseq
      %v1234 = vshrl.u32 %v1233, 7
      %v1235 = vsub.s32 %v1232, %v1234
      %v1236 = vrot.slane %v1222, %v1235
      %1237 = vrot.lane.b32.xlu0 %v1229, 109
      %v1238 = vpop.permute.xlu0 %1237
      %1239 = vrot.lane.b32.xlu0 %v1236, 109
      %v1240 = vpop.permute.xlu0 %1239
      %v1241 = vrot.slane %v1238, 4
      %v1242 = vrot.slane %v1240, 4
      %v1243 = vsel %vm640, %v1241, %v1242
      %v1244 = vsel %vm733, %v1238, %v1243
      %1247 = vst [vmem:[#allocation2 + $0x84] sm:$0x33] %v1244
      %1248 = vst.msk [vmem:[#allocation2 + $0x8c] sm:$0x3] %vm615, %v1240
      %v1249 = vld [vmem:[%s539] sm:$0x3f]
      %v1251 = vcombine.low %v1249, %v1249
      %v1253 = vunpack.c.l.s4 1983009808
      %v1254 = vunpack.c.0.s8 %v1253
      %v1255 = vlaneseq
      %v1256 = vshrl.u32 %v1255, 7
      %v1257 = vsub.s32 %v1254, %v1256
      %v1258 = vrot.slane %v1251, %v1257
      %v1260 = vunpack.c.l.s4 1983009808
      %v1261 = vunpack.c.0.s8 %v1260
      %v1262 = vlaneseq
      %v1263 = vshrl.u32 %v1262, 7
      %v1264 = vsub.s32 %v1261, %v1263
      %v1265 = vrot.slane %v1249, %v1264
      %1266 = vrot.lane.b32.xlu0 %v1258, 108
      %v1267 = vpop.permute.xlu0 %1266
      %1268 = vrot.lane.b32.xlu0 %v1265, 108
      %v1269 = vpop.permute.xlu0 %1268
      %v1270 = vrot.slane %v1267, 4
      %v1271 = vrot.slane %v1269, 4
      %v1272 = vsel %vm640, %v1270, %v1271
      %v1273 = vsel %vm763, %v1267, %v1272
      %1276 = vst [vmem:[#allocation2 + $0x84] sm:$0xcc] %v1273
      %1277 = vst.msk [vmem:[#allocation2 + $0x8c] sm:$0xc] %vm647, %v1269
      %v1278 = vld [vmem:[%s539] sm:$0x3f]
      %v1280 = vcombine.high %v1278, %v1278
      %v1282 = vunpack.c.l.s4 1983009808
      %v1283 = vunpack.c.0.s8 %v1282
      %v1284 = vlaneseq
      %v1285 = vshrl.u32 %v1284, 7
      %v1286 = vsub.s32 %v1283, %v1285
      %v1287 = vrot.slane %v1278, %v1286
      %v1289 = vunpack.c.l.s4 1983009808
      %v1290 = vunpack.c.0.s8 %v1289
      %v1291 = vlaneseq
      %v1292 = vshrl.u32 %v1291, 7
      %v1293 = vsub.s32 %v1290, %v1292
      %v1294 = vrot.slane %v1280, %v1293
      %1295 = vrot.lane.b32.xlu0 %v1287, 92
      %v1296 = vpop.permute.xlu0 %1295
      %1297 = vrot.lane.b32.xlu0 %v1294, 92
      %v1298 = vpop.permute.xlu0 %1297
      %v1299 = vrot.slane %v1296, 4
      %v1300 = vrot.slane %v1298, 4
      %v1301 = vsel %vm640, %v1299, %v1300
      %v1302 = vsel %vm793, %v1296, %v1301
      %1305 = vst [vmem:[#allocation2 + $0x90] sm:$0x33] %v1302
      %1306 = vst.msk [vmem:[#allocation2 + $0x98] sm:$0x3] %vm615, %v1298
      %v1307 = vld [vmem:[%s539] sm:$0x3f]
      %v1309 = vcombine.low %v1307, %v1307
      %v1311 = vunpack.c.l.s4 1983009808
      %v1312 = vunpack.c.0.s8 %v1311
      %v1313 = vlaneseq
      %v1314 = vshrl.u32 %v1313, 7
      %v1315 = vsub.s32 %v1312, %v1314
      %v1316 = vrot.slane %v1309, %v1315
      %v1318 = vunpack.c.l.s4 1983009808
      %v1319 = vunpack.c.0.s8 %v1318
      %v1320 = vlaneseq
      %v1321 = vshrl.u32 %v1320, 7
      %v1322 = vsub.s32 %v1319, %v1321
      %v1323 = vrot.slane %v1307, %v1322
      %1324 = vrot.lane.b32.xlu0 %v1316, 91
      %v1325 = vpop.permute.xlu0 %1324
      %1326 = vrot.lane.b32.xlu0 %v1323, 91
      %v1327 = vpop.permute.xlu0 %1326
      %v1328 = vrot.slane %v1325, 4
      %v1329 = vrot.slane %v1327, 4
      %v1330 = vsel %vm640, %v1328, %v1329
      %v1331 = vsel %vm823, %v1325, %v1330
      %1334 = vst [vmem:[#allocation2 + $0x90] sm:$0xcc] %v1331
      %1335 = vst.msk [vmem:[#allocation2 + $0x98] sm:$0xc] %vm647, %v1327
      %v1336 = vld [vmem:[%s539] sm:$0x3f]
      %v1338 = vcombine.high %v1336, %v1336
      %v1340 = vunpack.c.l.s4 1983009808
      %v1341 = vunpack.c.0.s8 %v1340
      %v1342 = vlaneseq
      %v1343 = vshrl.u32 %v1342, 7
      %v1344 = vsub.s32 %v1341, %v1343
      %v1345 = vrot.slane %v1336, %v1344
      %v1347 = vunpack.c.l.s4 1983009808
      %v1348 = vunpack.c.0.s8 %v1347
      %v1349 = vlaneseq
      %v1350 = vshrl.u32 %v1349, 7
      %v1351 = vsub.s32 %v1348, %v1350
      %v1352 = vrot.slane %v1338, %v1351
      %1353 = vrot.lane.b32.xlu0 %v1345, 90
      %v1354 = vpop.permute.xlu0 %1353
      %1355 = vrot.lane.b32.xlu0 %v1352, 90
      %v1356 = vpop.permute.xlu0 %1355
      %v1357 = vrot.slane %v1354, 4
      %v1358 = vrot.slane %v1356, 4
      %v1359 = vsel %vm640, %v1357, %v1358
      %v1360 = vsel %vm853, %v1354, %v1359
      %1363 = vst [vmem:[#allocation2 + $0x9c] sm:$0x33] %v1360
      %1364 = vst.msk [vmem:[#allocation2 + $0xa4] sm:$0x3] %vm615, %v1356
      %v1365 = vld [vmem:[#allocation2] sm:$0xff]
      %v1366 = vld [vmem:[#allocation2 + $0x8] sm:$0xf]
      %v1367 = vld [vmem:[#allocation2 + $0xc] sm:$0xff]
      %v1368 = vld [vmem:[#allocation2 + $0x14] sm:$0xf]
      %v1369 = vld [vmem:[#allocation2 + $0x18] sm:$0xff]
      %v1370 = vld [vmem:[#allocation2 + $0x20] sm:$0xf]
      %v1371 = vld [vmem:[#allocation2 + $0x24] sm:$0xff]
      %v1372 = vld [vmem:[#allocation2 + $0x2c] sm:$0xf]
      %v1373 = vld [vmem:[#allocation2 + $0x30] sm:$0xff]
      %v1374 = vld [vmem:[#allocation2 + $0x38] sm:$0xf]
      %v1375 = vld [vmem:[#allocation2 + $0x3c] sm:$0xff]
      %v1376 = vld [vmem:[#allocation2 + $0x44] sm:$0xf]
      %v1377 = vld [vmem:[#allocation2 + $0x48] sm:$0xff]
      %v1378 = vld [vmem:[#allocation2 + $0x50] sm:$0xf]
      %v1379 = vld [vmem:[#allocation2 + $0x54] sm:$0xff]
      %v1380 = vld [vmem:[#allocation2 + $0x5c] sm:$0xf]
      %v1381 = vld [vmem:[#allocation2 + $0x60] sm:$0xff]
      %v1382 = vld [vmem:[#allocation2 + $0x68] sm:$0xf]
      %v1383 = vld [vmem:[#allocation2 + $0x6c] sm:$0xff]
      %v1384 = vld [vmem:[#allocation2 + $0x74] sm:$0xf]
      %v1385 = vld [vmem:[#allocation2 + $0x78] sm:$0xff]
      %v1386 = vld [vmem:[#allocation2 + $0x80] sm:$0xf]
      %v1387 = vld [vmem:[#allocation2 + $0x84] sm:$0xff]
      %v1388 = vld [vmem:[#allocation2 + $0x8c] sm:$0xf]
      %v1389 = vld [vmem:[#allocation2 + $0x90] sm:$0xff]
      %v1390 = vld [vmem:[#allocation2 + $0x98] sm:$0xf]
      %v1391 = vld [vmem:[#allocation2 + $0x9c] sm:$0x33]
      %v1392 = vld [vmem:[#allocation2 + $0xa4] sm:$0x3]
      %1394 = vset.pattern.permute.xlu0 0
      %1395 = vperm.xlu0 %1394, %v594
      %v1396 = vpop.permute.xlu0 %1395
      %v1426 = vunpack.c.l.b16 %v1365
      %v1427 = vunpack.c.h.b16 %v1365
      %v1428 = vunpack.c.l.b16 %v1366
      %v1429 = vunpack.c.l.b16 %v1367
      %v1430 = vunpack.c.h.b16 %v1367
      %v1431 = vunpack.c.l.b16 %v1368
      %v1432 = vunpack.c.l.b16 %v1369
      %v1433 = vunpack.c.h.b16 %v1369
      %v1434 = vunpack.c.l.b16 %v1370
      %v1435 = vunpack.c.l.b16 %v1371
      %v1436 = vunpack.c.h.b16 %v1371
      %v1437 = vunpack.c.l.b16 %v1372
      %v1438 = vunpack.c.l.b16 %v1373
      %v1439 = vunpack.c.h.b16 %v1373
      %v1440 = vunpack.c.l.b16 %v1374
      %v1441 = vunpack.c.l.b16 %v1375
      %v1442 = vunpack.c.h.b16 %v1375
      %v1443 = vunpack.c.l.b16 %v1376
      %v1444 = vunpack.c.l.b16 %v1377
      %v1445 = vunpack.c.h.b16 %v1377
      %v1446 = vunpack.c.l.b16 %v1378
      %v1447 = vunpack.c.l.b16 %v1379
      %v1448 = vunpack.c.h.b16 %v1379
      %v1449 = vunpack.c.l.b16 %v1380
      %v1450 = vunpack.c.l.b16 %v1381
      %v1451 = vunpack.c.h.b16 %v1381
      %v1452 = vunpack.c.l.b16 %v1382
      %v1453 = vunpack.c.l.b16 %v1383
      %v1454 = vunpack.c.h.b16 %v1383
      %v1455 = vunpack.c.l.b16 %v1384
      %v1456 = vunpack.c.l.b16 %v1385
      %v1457 = vunpack.c.h.b16 %v1385
      %v1458 = vunpack.c.l.b16 %v1386
      %v1459 = vunpack.c.l.b16 %v1387
      %v1460 = vunpack.c.h.b16 %v1387
      %v1461 = vunpack.c.l.b16 %v1388
      %v1462 = vunpack.c.l.b16 %v1389
      %v1463 = vunpack.c.h.b16 %v1389
      %v1464 = vunpack.c.l.b16 %v1390
      %v1465 = vunpack.c.l.b16 %v1391
      %v1466 = vunpack.c.h.b16 %v1391
      %v1467 = vunpack.c.l.b16 %v1392
      %v1468 = vpack.c.b16 %v1429, %v1426
      %v1469 = vpack.c.b16 %v1430, %v1427
      %v1470 = vpack.c.b16 %v1431, %v1428
      %v1471 = vpack.c.b16 %v1435, %v1432
      %v1472 = vpack.c.b16 %v1436, %v1433
      %v1473 = vpack.c.b16 %v1437, %v1434
      %v1474 = vpack.c.b16 %v1441, %v1438
      %v1475 = vpack.c.b16 %v1442, %v1439
      %v1476 = vpack.c.b16 %v1443, %v1440
      %v1477 = vpack.c.b16 %v1447, %v1444
      %v1478 = vpack.c.b16 %v1448, %v1445
      %v1479 = vpack.c.b16 %v1449, %v1446
      %v1480 = vpack.c.b16 %v1453, %v1450
      %v1481 = vpack.c.b16 %v1454, %v1451
      %v1482 = vpack.c.b16 %v1455, %v1452
      %v1483 = vpack.c.b16 %v1459, %v1456
      %v1484 = vpack.c.b16 %v1460, %v1457
      %v1485 = vpack.c.b16 %v1461, %v1458
      %v1486 = vpack.c.b16 %v1465, %v1462
      %v1487 = vpack.c.b16 %v1466, %v1463
      %v1488 = vpack.c.b16 %v1467, %v1464
      %vm1507 = vcmask 883712
      %v1509 = vsel %vm1507, %v593, 0
      %vm1511 = vcmask 1045504
      %v1513 = vsel %vm1511, %v1486, 0
      %v1516 = vsel %vm1511, %v1487, 0
      %v1519 = vsel %vm1511, %v1488, 0
      %1521 = vmatprep.subr.bf16.mxu0 %v1469
      %1522 = vmatpush1.bf16.msra.mxu0 %v1468
      %1523 = vmatprep.subr.bf16.mxu0 %v1472
      %1524 = vmatpush1.bf16.msra.mxu0 %v1471
      %1525 = vmatprep.subr.bf16.mxu0 %v1475
      %1526 = vmatpush1.bf16.msra.mxu0 %v1474
      %1527 = vmatprep.subr.bf16.mxu0 %v1478
      %1528 = vmatpush1.bf16.msra.mxu0 %v1477
      %1529 = vmatprep.subr.bf16.mxu0 %v1481
      %1530 = vmatpush1.bf16.msra.mxu0 %v1480
      %1531 = vmatprep.subr.bf16.mxu0 %v1484
      %1532 = vmatpush1.bf16.msra.mxu0 %v1483
      %1533 = vmatprep.subr.bf16.mxu0 %v1516
      %1534 = vmatpush1.bf16.msra.mxu0 %v1513
      %1535 = vmatprep.subr.bf16.mxu0 0
      %1536 = vmatpush1.bf16.msra.mxu0 0
      %1537 = vmatprep.subr.bf16.mxu0 0
      %1538 = vmatpush1.bf16.msra.mxu0 0
      %1539 = vmatprep.subr.bf16.mxu0 0
      %1540 = vmatpush1.bf16.msra.mxu0 0
      %1541 = vmatprep.subr.bf16.mxu0 0
      %1542 = vmatpush1.bf16.msra.mxu0 0
      %1543 = vmatprep.subr.bf16.mxu0 0
      %1544 = vmatpush1.bf16.msra.mxu0 0
      %1545 = vmatprep.subr.bf16.mxu0 0
      %1546 = vmatpush1.bf16.msra.mxu0 0
      %1547 = vmatprep.subr.bf16.mxu0 0
      %1548 = vmatpush1.bf16.msra.mxu0 0
      %1549 = vmatprep.subr.bf16.mxu0 0
      %1550 = vmatpush1.bf16.msra.mxu0 0
      %1551 = vmatprep.subr.bf16.mxu0 0
      %1552 = vmatpush1.bf16.msra.mxu0 0
      %1553 = vmatprep.mubr.bf16.mxu0 0
      %1554 = vmatmul.mubr.bf16.gmra.mrb[0].mxu0 %v1509
      %v1555 = vpop.f32.mrb[0].mxu0
      %v1556 = vadd.f32 %v1396, %v1555
      %v1557 = vpop.f32.mrb[0].mxu0
      %v1558 = vadd.f32 %v1396, %v1557
      %v1559 = vpop.f32.mrb[0].mxu0
      %v1560 = vpop.f32.mrb[0].mxu0
      %1561 = vdwg.mxu0
      %1562 = vmatprep.subr.bf16.mxu0 0
      %1563 = vmatpush1.bf16.msra.mxu0 %v1470
      %1564 = vmatprep.subr.bf16.mxu0 0
      %1565 = vmatpush1.bf16.msra.mxu0 %v1473
      %1566 = vmatprep.subr.bf16.mxu0 0
      %1567 = vmatpush1.bf16.msra.mxu0 %v1476
      %1568 = vmatprep.subr.bf16.mxu0 0
      %1569 = vmatpush1.bf16.msra.mxu0 %v1479
      %1570 = vmatprep.subr.bf16.mxu0 0
      %1571 = vmatpush1.bf16.msra.mxu0 %v1482
      %1572 = vmatprep.subr.bf16.mxu0 0
      %1573 = vmatpush1.bf16.msra.mxu0 %v1485
      %1574 = vmatprep.subr.bf16.mxu0 0
      %1575 = vmatpush1.bf16.msra.mxu0 %v1519
      %1576 = vmatprep.subr.bf16.mxu0 0
      %1577 = vmatpush1.bf16.msra.mxu0 0
      %1578 = vmatprep.subr.bf16.mxu0 0
      %1579 = vmatpush1.bf16.msra.mxu0 0
      %1580 = vmatprep.subr.bf16.mxu0 0
      %1581 = vmatpush1.bf16.msra.mxu0 0
      %1582 = vmatprep.subr.bf16.mxu0 0
      %1583 = vmatpush1.bf16.msra.mxu0 0
      %1584 = vmatprep.subr.bf16.mxu0 0
      %1585 = vmatpush1.bf16.msra.mxu0 0
      %1586 = vmatprep.subr.bf16.mxu0 0
      %1587 = vmatpush1.bf16.msra.mxu0 0
      %1588 = vmatprep.subr.bf16.mxu0 0
      %1589 = vmatpush1.bf16.msra.mxu0 0
      %1590 = vmatprep.subr.bf16.mxu0 0
      %1591 = vmatpush1.bf16.msra.mxu0 0
      %1592 = vmatprep.subr.bf16.mxu0 0
      %1593 = vmatpush1.bf16.msra.mxu0 0
      %1594 = vmatprep.mubr.bf16.mxu0 0
      %1595 = vmatmul.mubr.bf16.gmra.mrb[0].mxu0 %v1509
      %v1596 = vpop.f32.mrb[0].mxu0
      %v1597 = vadd.f32 %v1396, %v1596
      %v1598 = vpop.f32.mrb[0].mxu0
      %v1599 = vpop.f32.mrb[0].mxu0
      %v1600 = vpop.f32.mrb[0].mxu0
      %1601 = vdwg.mxu0
      %vm1602 = vcmp.gt.f32.partialorder %v1556, 0.0
      %vm1603 = vcmp.gt.f32.partialorder %v1558, 0.0
      %vm1604 = vcmp.gt.f32.partialorder %v1597, 0.0
      %v1605 = vmul.f32 %v1556, 0.01
      %v1606 = vmul.f32 %v1558, 0.01
      %v1607 = vmul.f32 %v1597, 0.01
      %v1608 = vsel %vm1602, %v1556, %v1605
      %v1609 = vsel %vm1603, %v1558, %v1606
      %v1610 = vsel %vm1604, %v1597, %v1607
      %1611 = vst [vmem:[%s590] sm:$0xff] %v1608
      %1612 = vst [vmem:[%s590 + $0x8] sm:$0xff] %v1609
      %vm1613 = vcmask 261120
      %1614 = vst.msk [vmem:[%s590 + $0x10] sm:$0xff] %vm1613, %v1610
      %v1615 = vld [vmem:[%s526] sm:$0x3f]
      %v1617 = vcombine.high %v1615, %v1615
      %v1619 = vunpack.c.l.s4 1983009808
      %v1620 = vunpack.c.0.s8 %v1619
      %v1621 = vlaneseq
      %v1622 = vshrl.u32 %v1621, 7
      %v1623 = vsub.s32 %v1620, %v1622
      %v1624 = vrot.slane %v1615, %v1623
      %v1626 = vunpack.c.l.s4 1983009808
      %v1627 = vunpack.c.0.s8 %v1626
      %v1628 = vlaneseq
      %v1629 = vshrl.u32 %v1628, 7
      %v1630 = vsub.s32 %v1627, %v1629
      %v1631 = vrot.slane %v1617, %v1630
      %1634 = vst [vmem:[#allocation2] sm:$0x33] %v1624
      %1635 = vst.msk [vmem:[#allocation2 + $0x8] sm:$0x3] %vm615, %v1631
      %v1636 = vld [vmem:[%s526] sm:$0x3f]
      %v1638 = vcombine.low %v1636, %v1636
      %v1640 = vunpack.c.l.s4 1983009808
      %v1641 = vunpack.c.0.s8 %v1640
      %v1642 = vlaneseq
      %v1643 = vshrl.u32 %v1642, 7
      %v1644 = vsub.s32 %v1641, %v1643
      %v1645 = vrot.slane %v1638, %v1644
      %v1647 = vunpack.c.l.s4 1983009808
      %v1648 = vunpack.c.0.s8 %v1647
      %v1649 = vlaneseq
      %v1650 = vshrl.u32 %v1649, 7
      %v1651 = vsub.s32 %v1648, %v1650
      %v1652 = vrot.slane %v1636, %v1651
      %1653 = vrot.lane.b32.xlu0 %v1645, 127
      %v1654 = vpop.permute.xlu0 %1653
      %1655 = vrot.lane.b32.xlu0 %v1652, 127
      %v1656 = vpop.permute.xlu0 %1655
      %v1657 = vrot.slane %v1654, 4
      %v1658 = vrot.slane %v1656, 4
      %v1659 = vsel %vm640, %v1657, %v1658
      %v1660 = vsel %vm642, %v1654, %v1659
      %1663 = vst [vmem:[#allocation2] sm:$0xcc] %v1660
      %1664 = vst.msk [vmem:[#allocation2 + $0x8] sm:$0xc] %vm647, %v1656
      %v1665 = vld [vmem:[%s526] sm:$0x3f]
      %v1667 = vcombine.high %v1665, %v1665
      %v1669 = vunpack.c.l.s4 1983009808
      %v1670 = vunpack.c.0.s8 %v1669
      %v1671 = vlaneseq
      %v1672 = vshrl.u32 %v1671, 7
      %v1673 = vsub.s32 %v1670, %v1672
      %v1674 = vrot.slane %v1665, %v1673
      %v1676 = vunpack.c.l.s4 1983009808
      %v1677 = vunpack.c.0.s8 %v1676
      %v1678 = vlaneseq
      %v1679 = vshrl.u32 %v1678, 7
      %v1680 = vsub.s32 %v1677, %v1679
      %v1681 = vrot.slane %v1667, %v1680
      %1682 = vrot.lane.b32.xlu0 %v1674, 126
      %v1683 = vpop.permute.xlu0 %1682
      %1684 = vrot.lane.b32.xlu0 %v1681, 126
      %v1685 = vpop.permute.xlu0 %1684
      %v1686 = vrot.slane %v1683, 4
      %v1687 = vrot.slane %v1685, 4
      %v1688 = vsel %vm640, %v1686, %v1687
      %v1689 = vsel %vm673, %v1683, %v1688
      %1692 = vst [vmem:[#allocation2 + $0xc] sm:$0x33] %v1689
      %1693 = vst.msk [vmem:[#allocation2 + $0x14] sm:$0x3] %vm615, %v1685
      %v1694 = vld [vmem:[%s526] sm:$0x3f]
      %v1696 = vcombine.low %v1694, %v1694
      %v1698 = vunpack.c.l.s4 1983009808
      %v1699 = vunpack.c.0.s8 %v1698
      %v1700 = vlaneseq
      %v1701 = vshrl.u32 %v1700, 7
      %v1702 = vsub.s32 %v1699, %v1701
      %v1703 = vrot.slane %v1696, %v1702
      %v1705 = vunpack.c.l.s4 1983009808
      %v1706 = vunpack.c.0.s8 %v1705
      %v1707 = vlaneseq
      %v1708 = vshrl.u32 %v1707, 7
      %v1709 = vsub.s32 %v1706, %v1708
      %v1710 = vrot.slane %v1694, %v1709
      %1711 = vrot.lane.b32.xlu0 %v1703, 110
      %v1712 = vpop.permute.xlu0 %1711
      %1713 = vrot.lane.b32.xlu0 %v1710, 110
      %v1714 = vpop.permute.xlu0 %1713
      %v1715 = vrot.slane %v1712, 4
      %v1716 = vrot.slane %v1714, 4
      %v1717 = vsel %vm640, %v1715, %v1716
      %v1718 = vsel %vm703, %v1712, %v1717
      %1721 = vst [vmem:[#allocation2 + $0xc] sm:$0xcc] %v1718
      %1722 = vst.msk [vmem:[#allocation2 + $0x14] sm:$0xc] %vm647, %v1714
      %v1723 = vld [vmem:[%s526] sm:$0x3f]
      %v1725 = vcombine.high %v1723, %v1723
      %v1727 = vunpack.c.l.s4 1983009808
      %v1728 = vunpack.c.0.s8 %v1727
      %v1729 = vlaneseq
      %v1730 = vshrl.u32 %v1729, 7
      %v1731 = vsub.s32 %v1728, %v1730
      %v1732 = vrot.slane %v1723, %v1731
      %v1734 = vunpack.c.l.s4 1983009808
      %v1735 = vunpack.c.0.s8 %v1734
      %v1736 = vlaneseq
      %v1737 = vshrl.u32 %v1736, 7
      %v1738 = vsub.s32 %v1735, %v1737
      %v1739 = vrot.slane %v1725, %v1738
      %1740 = vrot.lane.b32.xlu0 %v1732, 109
      %v1741 = vpop.permute.xlu0 %1740
      %1742 = vrot.lane.b32.xlu0 %v1739, 109
      %v1743 = vpop.permute.xlu0 %1742
      %v1744 = vrot.slane %v1741, 4
      %v1745 = vrot.slane %v1743, 4
      %v1746 = vsel %vm640, %v1744, %v1745
      %v1747 = vsel %vm733, %v1741, %v1746
      %1750 = vst [vmem:[#allocation2 + $0x18] sm:$0x33] %v1747
      %1751 = vst.msk [vmem:[#allocation2 + $0x20] sm:$0x3] %vm615, %v1743
      %v1752 = vld [vmem:[%s526] sm:$0x3f]
      %v1754 = vcombine.low %v1752, %v1752
      %v1756 = vunpack.c.l.s4 1983009808
      %v1757 = vunpack.c.0.s8 %v1756
      %v1758 = vlaneseq
      %v1759 = vshrl.u32 %v1758, 7
      %v1760 = vsub.s32 %v1757, %v1759
      %v1761 = vrot.slane %v1754, %v1760
      %v1763 = vunpack.c.l.s4 1983009808
      %v1764 = vunpack.c.0.s8 %v1763
      %v1765 = vlaneseq
      %v1766 = vshrl.u32 %v1765, 7
      %v1767 = vsub.s32 %v1764, %v1766
      %v1768 = vrot.slane %v1752, %v1767
      %1769 = vrot.lane.b32.xlu0 %v1761, 108
      %v1770 = vpop.permute.xlu0 %1769
      %1771 = vrot.lane.b32.xlu0 %v1768, 108
      %v1772 = vpop.permute.xlu0 %1771
      %v1773 = vrot.slane %v1770, 4
      %v1774 = vrot.slane %v1772, 4
      %v1775 = vsel %vm640, %v1773, %v1774
      %v1776 = vsel %vm763, %v1770, %v1775
      %1779 = vst [vmem:[#allocation2 + $0x18] sm:$0xcc] %v1776
      %1780 = vst.msk [vmem:[#allocation2 + $0x20] sm:$0xc] %vm647, %v1772
      %v1781 = vld [vmem:[%s526] sm:$0x3f]
      %v1783 = vcombine.high %v1781, %v1781
      %v1785 = vunpack.c.l.s4 1983009808
      %v1786 = vunpack.c.0.s8 %v1785
      %v1787 = vlaneseq
      %v1788 = vshrl.u32 %v1787, 7
      %v1789 = vsub.s32 %v1786, %v1788
      %v1790 = vrot.slane %v1781, %v1789
      %v1792 = vunpack.c.l.s4 1983009808
      %v1793 = vunpack.c.0.s8 %v1792
      %v1794 = vlaneseq
      %v1795 = vshrl.u32 %v1794, 7
      %v1796 = vsub.s32 %v1793, %v1795
      %v1797 = vrot.slane %v1783, %v1796
      %1798 = vrot.lane.b32.xlu0 %v1790, 92
      %v1799 = vpop.permute.xlu0 %1798
      %1800 = vrot.lane.b32.xlu0 %v1797, 92
      %v1801 = vpop.permute.xlu0 %1800
      %v1802 = vrot.slane %v1799, 4
      %v1803 = vrot.slane %v1801, 4
      %v1804 = vsel %vm640, %v1802, %v1803
      %v1805 = vsel %vm793, %v1799, %v1804
      %1808 = vst [vmem:[#allocation2 + $0x24] sm:$0x33] %v1805
      %1809 = vst.msk [vmem:[#allocation2 + $0x2c] sm:$0x3] %vm615, %v1801
      %v1810 = vld [vmem:[%s526] sm:$0x3f]
      %v1812 = vcombine.low %v1810, %v1810
      %v1814 = vunpack.c.l.s4 1983009808
      %v1815 = vunpack.c.0.s8 %v1814
      %v1816 = vlaneseq
      %v1817 = vshrl.u32 %v1816, 7
      %v1818 = vsub.s32 %v1815, %v1817
      %v1819 = vrot.slane %v1812, %v1818
      %v1821 = vunpack.c.l.s4 1983009808
      %v1822 = vunpack.c.0.s8 %v1821
      %v1823 = vlaneseq
      %v1824 = vshrl.u32 %v1823, 7
      %v1825 = vsub.s32 %v1822, %v1824
      %v1826 = vrot.slane %v1810, %v1825
      %1827 = vrot.lane.b32.xlu0 %v1819, 91
      %v1828 = vpop.permute.xlu0 %1827
      %1829 = vrot.lane.b32.xlu0 %v1826, 91
      %v1830 = vpop.permute.xlu0 %1829
      %v1831 = vrot.slane %v1828, 4
      %v1832 = vrot.slane %v1830, 4
      %v1833 = vsel %vm640, %v1831, %v1832
      %v1834 = vsel %vm823, %v1828, %v1833
      %1837 = vst [vmem:[#allocation2 + $0x24] sm:$0xcc] %v1834
      %1838 = vst.msk [vmem:[#allocation2 + $0x2c] sm:$0xc] %vm647, %v1830
      %v1839 = vld [vmem:[%s526] sm:$0x3f]
      %v1841 = vcombine.high %v1839, %v1839
      %v1843 = vunpack.c.l.s4 1983009808
      %v1844 = vunpack.c.0.s8 %v1843
      %v1845 = vlaneseq
      %v1846 = vshrl.u32 %v1845, 7
      %v1847 = vsub.s32 %v1844, %v1846
      %v1848 = vrot.slane %v1839, %v1847
      %v1850 = vunpack.c.l.s4 1983009808
      %v1851 = vunpack.c.0.s8 %v1850
      %v1852 = vlaneseq
      %v1853 = vshrl.u32 %v1852, 7
      %v1854 = vsub.s32 %v1851, %v1853
      %v1855 = vrot.slane %v1841, %v1854
      %1856 = vrot.lane.b32.xlu0 %v1848, 90
      %v1857 = vpop.permute.xlu0 %1856
      %1858 = vrot.lane.b32.xlu0 %v1855, 90
      %v1859 = vpop.permute.xlu0 %1858
      %v1860 = vrot.slane %v1857, 4
      %v1861 = vrot.slane %v1859, 4
      %v1862 = vsel %vm640, %v1860, %v1861
      %v1863 = vsel %vm853, %v1857, %v1862
      %1866 = vst [vmem:[#allocation2 + $0x30] sm:$0x33] %v1863
      %1867 = vst.msk [vmem:[#allocation2 + $0x38] sm:$0x3] %vm615, %v1859
      %v1868 = vld [vmem:[%s539] sm:$0x3f]
      %v1870 = vcombine.low %v1868, %v1868
      %v1872 = vunpack.c.l.s4 1983009808
      %v1873 = vunpack.c.0.s8 %v1872
      %v1874 = vlaneseq
      %v1875 = vshrl.u32 %v1874, 7
      %v1876 = vsub.s32 %v1873, %v1875
      %v1877 = vrot.slane %v1870, %v1876
      %v1879 = vunpack.c.l.s4 1983009808
      %v1880 = vunpack.c.0.s8 %v1879
      %v1881 = vlaneseq
      %v1882 = vshrl.u32 %v1881, 7
      %v1883 = vsub.s32 %v1880, %v1882
      %v1884 = vrot.slane %v1868, %v1883
      %1887 = vst [vmem:[#allocation2 + $0x30] sm:$0xcc] %v1877
      %1888 = vst.msk [vmem:[#allocation2 + $0x38] sm:$0xc] %vm647, %v1884
      %v1889 = vld [vmem:[%s539] sm:$0x3f]
      %v1891 = vcombine.high %v1889, %v1889
      %v1893 = vunpack.c.l.s4 1983009808
      %v1894 = vunpack.c.0.s8 %v1893
      %v1895 = vlaneseq
      %v1896 = vshrl.u32 %v1895, 7
      %v1897 = vsub.s32 %v1894, %v1896
      %v1898 = vrot.slane %v1889, %v1897
      %v1900 = vunpack.c.l.s4 1983009808
      %v1901 = vunpack.c.0.s8 %v1900
      %v1902 = vlaneseq
      %v1903 = vshrl.u32 %v1902, 7
      %v1904 = vsub.s32 %v1901, %v1903
      %v1905 = vrot.slane %v1891, %v1904
      %1906 = vrot.lane.b32.xlu0 %v1898, 127
      %v1907 = vpop.permute.xlu0 %1906
      %1908 = vrot.lane.b32.xlu0 %v1905, 127
      %v1909 = vpop.permute.xlu0 %1908
      %v1910 = vrot.slane %v1907, 4
      %v1911 = vrot.slane %v1909, 4
      %v1912 = vsel %vm640, %v1910, %v1911
      %v1913 = vsel %vm642, %v1907, %v1912
      %1916 = vst [vmem:[#allocation2 + $0x3c] sm:$0x33] %v1913
      %1917 = vst.msk [vmem:[#allocation2 + $0x44] sm:$0x3] %vm615, %v1909
      %v1918 = vld [vmem:[%s539] sm:$0x3f]
      %v1920 = vcombine.low %v1918, %v1918
      %v1922 = vunpack.c.l.s4 1983009808
      %v1923 = vunpack.c.0.s8 %v1922
      %v1924 = vlaneseq
      %v1925 = vshrl.u32 %v1924, 7
      %v1926 = vsub.s32 %v1923, %v1925
      %v1927 = vrot.slane %v1920, %v1926
      %v1929 = vunpack.c.l.s4 1983009808
      %v1930 = vunpack.c.0.s8 %v1929
      %v1931 = vlaneseq
      %v1932 = vshrl.u32 %v1931, 7
      %v1933 = vsub.s32 %v1930, %v1932
      %v1934 = vrot.slane %v1918, %v1933
      %1935 = vrot.lane.b32.xlu0 %v1927, 126
      %v1936 = vpop.permute.xlu0 %1935
      %1937 = vrot.lane.b32.xlu0 %v1934, 126
      %v1938 = vpop.permute.xlu0 %1937
      %v1939 = vrot.slane %v1936, 4
      %v1940 = vrot.slane %v1938, 4
      %v1941 = vsel %vm640, %v1939, %v1940
      %v1942 = vsel %vm673, %v1936, %v1941
      %1945 = vst [vmem:[#allocation2 + $0x3c] sm:$0xcc] %v1942
      %1946 = vst.msk [vmem:[#allocation2 + $0x44] sm:$0xc] %vm647, %v1938
      %v1947 = vld [vmem:[%s539] sm:$0x3f]
      %v1949 = vcombine.high %v1947, %v1947
      %v1951 = vunpack.c.l.s4 1983009808
      %v1952 = vunpack.c.0.s8 %v1951
      %v1953 = vlaneseq
      %v1954 = vshrl.u32 %v1953, 7
      %v1955 = vsub.s32 %v1952, %v1954
      %v1956 = vrot.slane %v1947, %v1955
      %v1958 = vunpack.c.l.s4 1983009808
      %v1959 = vunpack.c.0.s8 %v1958
      %v1960 = vlaneseq
      %v1961 = vshrl.u32 %v1960, 7
      %v1962 = vsub.s32 %v1959, %v1961
      %v1963 = vrot.slane %v1949, %v1962
      %1964 = vrot.lane.b32.xlu0 %v1956, 110
      %v1965 = vpop.permute.xlu0 %1964
      %1966 = vrot.lane.b32.xlu0 %v1963, 110
      %v1967 = vpop.permute.xlu0 %1966
      %v1968 = vrot.slane %v1965, 4
      %v1969 = vrot.slane %v1967, 4
      %v1970 = vsel %vm640, %v1968, %v1969
      %v1971 = vsel %vm703, %v1965, %v1970
      %1974 = vst [vmem:[#allocation2 + $0x48] sm:$0x33] %v1971
      %1975 = vst.msk [vmem:[#allocation2 + $0x50] sm:$0x3] %vm615, %v1967
      %v1976 = vld [vmem:[%s539] sm:$0x3f]
      %v1978 = vcombine.low %v1976, %v1976
      %v1980 = vunpack.c.l.s4 1983009808
      %v1981 = vunpack.c.0.s8 %v1980
      %v1982 = vlaneseq
      %v1983 = vshrl.u32 %v1982, 7
      %v1984 = vsub.s32 %v1981, %v1983
      %v1985 = vrot.slane %v1978, %v1984
      %v1987 = vunpack.c.l.s4 1983009808
      %v1988 = vunpack.c.0.s8 %v1987
      %v1989 = vlaneseq
      %v1990 = vshrl.u32 %v1989, 7
      %v1991 = vsub.s32 %v1988, %v1990
      %v1992 = vrot.slane %v1976, %v1991
      %1993 = vrot.lane.b32.xlu0 %v1985, 109
      %v1994 = vpop.permute.xlu0 %1993
      %1995 = vrot.lane.b32.xlu0 %v1992, 109
      %v1996 = vpop.permute.xlu0 %1995
      %v1997 = vrot.slane %v1994, 4
      %v1998 = vrot.slane %v1996, 4
      %v1999 = vsel %vm640, %v1997, %v1998
      %v2000 = vsel %vm733, %v1994, %v1999
      %2003 = vst [vmem:[#allocation2 + $0x48] sm:$0xcc] %v2000
      %2004 = vst.msk [vmem:[#allocation2 + $0x50] sm:$0xc] %vm647, %v1996
      %v2005 = vld [vmem:[%s539] sm:$0x3f]
      %v2007 = vcombine.high %v2005, %v2005
      %v2009 = vunpack.c.l.s4 1983009808
      %v2010 = vunpack.c.0.s8 %v2009
      %v2011 = vlaneseq
      %v2012 = vshrl.u32 %v2011, 7
      %v2013 = vsub.s32 %v2010, %v2012
      %v2014 = vrot.slane %v2005, %v2013
      %v2016 = vunpack.c.l.s4 1983009808
      %v2017 = vunpack.c.0.s8 %v2016
      %v2018 = vlaneseq
      %v2019 = vshrl.u32 %v2018, 7
      %v2020 = vsub.s32 %v2017, %v2019
      %v2021 = vrot.slane %v2007, %v2020
      %2022 = vrot.lane.b32.xlu0 %v2014, 108
      %v2023 = vpop.permute.xlu0 %2022
      %2024 = vrot.lane.b32.xlu0 %v2021, 108
      %v2025 = vpop.permute.xlu0 %2024
      %v2026 = vrot.slane %v2023, 4
      %v2027 = vrot.slane %v2025, 4
      %v2028 = vsel %vm640, %v2026, %v2027
      %v2029 = vsel %vm763, %v2023, %v2028
      %2032 = vst [vmem:[#allocation2 + $0x54] sm:$0x33] %v2029
      %2033 = vst.msk [vmem:[#allocation2 + $0x5c] sm:$0x3] %vm615, %v2025
      %v2034 = vld [vmem:[%s539] sm:$0x3f]
      %v2036 = vcombine.low %v2034, %v2034
      %v2038 = vunpack.c.l.s4 1983009808
      %v2039 = vunpack.c.0.s8 %v2038
      %v2040 = vlaneseq
      %v2041 = vshrl.u32 %v2040, 7
      %v2042 = vsub.s32 %v2039, %v2041
      %v2043 = vrot.slane %v2036, %v2042
      %v2045 = vunpack.c.l.s4 1983009808
      %v2046 = vunpack.c.0.s8 %v2045
      %v2047 = vlaneseq
      %v2048 = vshrl.u32 %v2047, 7
      %v2049 = vsub.s32 %v2046, %v2048
      %v2050 = vrot.slane %v2034, %v2049
      %2051 = vrot.lane.b32.xlu0 %v2043, 92
      %v2052 = vpop.permute.xlu0 %2051
      %2053 = vrot.lane.b32.xlu0 %v2050, 92
      %v2054 = vpop.permute.xlu0 %2053
      %v2055 = vrot.slane %v2052, 4
      %v2056 = vrot.slane %v2054, 4
      %v2057 = vsel %vm640, %v2055, %v2056
      %v2058 = vsel %vm793, %v2052, %v2057
      %2061 = vst [vmem:[#allocation2 + $0x54] sm:$0xcc] %v2058
      %2062 = vst.msk [vmem:[#allocation2 + $0x5c] sm:$0xc] %vm647, %v2054
      %v2063 = vld [vmem:[%s539] sm:$0x3f]
      %v2065 = vcombine.high %v2063, %v2063
      %v2067 = vunpack.c.l.s4 1983009808
      %v2068 = vunpack.c.0.s8 %v2067
      %v2069 = vlaneseq
      %v2070 = vshrl.u32 %v2069, 7
      %v2071 = vsub.s32 %v2068, %v2070
      %v2072 = vrot.slane %v2063, %v2071
      %v2074 = vunpack.c.l.s4 1983009808
      %v2075 = vunpack.c.0.s8 %v2074
      %v2076 = vlaneseq
      %v2077 = vshrl.u32 %v2076, 7
      %v2078 = vsub.s32 %v2075, %v2077
      %v2079 = vrot.slane %v2065, %v2078
      %2080 = vrot.lane.b32.xlu0 %v2072, 91
      %v2081 = vpop.permute.xlu0 %2080
      %2082 = vrot.lane.b32.xlu0 %v2079, 91
      %v2083 = vpop.permute.xlu0 %2082
      %v2084 = vrot.slane %v2081, 4
      %v2085 = vrot.slane %v2083, 4
      %v2086 = vsel %vm640, %v2084, %v2085
      %v2087 = vsel %vm823, %v2081, %v2086
      %2090 = vst [vmem:[#allocation2 + $0x60] sm:$0x33] %v2087
      %2091 = vst.msk [vmem:[#allocation2 + $0x68] sm:$0x3] %vm615, %v2083
      %v2092 = vld [vmem:[%s539] sm:$0x3f]
      %v2094 = vcombine.low %v2092, %v2092
      %v2096 = vunpack.c.l.s4 1983009808
      %v2097 = vunpack.c.0.s8 %v2096
      %v2098 = vlaneseq
      %v2099 = vshrl.u32 %v2098, 7
      %v2100 = vsub.s32 %v2097, %v2099
      %v2101 = vrot.slane %v2094, %v2100
      %v2103 = vunpack.c.l.s4 1983009808
      %v2104 = vunpack.c.0.s8 %v2103
      %v2105 = vlaneseq
      %v2106 = vshrl.u32 %v2105, 7
      %v2107 = vsub.s32 %v2104, %v2106
      %v2108 = vrot.slane %v2092, %v2107
      %2109 = vrot.lane.b32.xlu0 %v2101, 90
      %v2110 = vpop.permute.xlu0 %2109
      %2111 = vrot.lane.b32.xlu0 %v2108, 90
      %v2112 = vpop.permute.xlu0 %2111
      %v2113 = vrot.slane %v2110, 4
      %v2114 = vrot.slane %v2112, 4
      %v2115 = vsel %vm640, %v2113, %v2114
      %v2116 = vsel %vm853, %v2110, %v2115
      %2119 = vst [vmem:[#allocation2 + $0x60] sm:$0xcc] %v2116
      %2120 = vst.msk [vmem:[#allocation2 + $0x68] sm:$0xc] %vm647, %v2112
      %v2121 = vld [vmem:[%s552] sm:$0x3f]
      %v2123 = vcombine.high %v2121, %v2121
      %v2125 = vunpack.c.l.s4 1983009808
      %v2126 = vunpack.c.0.s8 %v2125
      %v2127 = vlaneseq
      %v2128 = vshrl.u32 %v2127, 7
      %v2129 = vsub.s32 %v2126, %v2128
      %v2130 = vrot.slane %v2121, %v2129
      %v2132 = vunpack.c.l.s4 1983009808
      %v2133 = vunpack.c.0.s8 %v2132
      %v2134 = vlaneseq
      %v2135 = vshrl.u32 %v2134, 7
      %v2136 = vsub.s32 %v2133, %v2135
      %v2137 = vrot.slane %v2123, %v2136
      %2140 = vst [vmem:[#allocation2 + $0x6c] sm:$0x33] %v2130
      %2141 = vst.msk [vmem:[#allocation2 + $0x74] sm:$0x3] %vm615, %v2137
      %v2142 = vld [vmem:[%s552] sm:$0x3f]
      %v2144 = vcombine.low %v2142, %v2142
      %v2146 = vunpack.c.l.s4 1983009808
      %v2147 = vunpack.c.0.s8 %v2146
      %v2148 = vlaneseq
      %v2149 = vshrl.u32 %v2148, 7
      %v2150 = vsub.s32 %v2147, %v2149
      %v2151 = vrot.slane %v2144, %v2150
      %v2153 = vunpack.c.l.s4 1983009808
      %v2154 = vunpack.c.0.s8 %v2153
      %v2155 = vlaneseq
      %v2156 = vshrl.u32 %v2155, 7
      %v2157 = vsub.s32 %v2154, %v2156
      %v2158 = vrot.slane %v2142, %v2157
      %2159 = vrot.lane.b32.xlu0 %v2151, 127
      %v2160 = vpop.permute.xlu0 %2159
      %2161 = vrot.lane.b32.xlu0 %v2158, 127
      %v2162 = vpop.permute.xlu0 %2161
      %v2163 = vrot.slane %v2160, 4
      %v2164 = vrot.slane %v2162, 4
      %v2165 = vsel %vm640, %v2163, %v2164
      %v2166 = vsel %vm642, %v2160, %v2165
      %2169 = vst [vmem:[#allocation2 + $0x6c] sm:$0xcc] %v2166
      %2170 = vst.msk [vmem:[#allocation2 + $0x74] sm:$0xc] %vm647, %v2162
      %v2171 = vld [vmem:[%s552] sm:$0x3f]
      %v2173 = vcombine.high %v2171, %v2171
      %v2175 = vunpack.c.l.s4 1983009808
      %v2176 = vunpack.c.0.s8 %v2175
      %v2177 = vlaneseq
      %v2178 = vshrl.u32 %v2177, 7
      %v2179 = vsub.s32 %v2176, %v2178
      %v2180 = vrot.slane %v2171, %v2179
      %v2182 = vunpack.c.l.s4 1983009808
      %v2183 = vunpack.c.0.s8 %v2182
      %v2184 = vlaneseq
      %v2185 = vshrl.u32 %v2184, 7
      %v2186 = vsub.s32 %v2183, %v2185
      %v2187 = vrot.slane %v2173, %v2186
      %2188 = vrot.lane.b32.xlu0 %v2180, 126
      %v2189 = vpop.permute.xlu0 %2188
      %2190 = vrot.lane.b32.xlu0 %v2187, 126
      %v2191 = vpop.permute.xlu0 %2190
      %v2192 = vrot.slane %v2189, 4
      %v2193 = vrot.slane %v2191, 4
      %v2194 = vsel %vm640, %v2192, %v2193
      %v2195 = vsel %vm673, %v2189, %v2194
      %2198 = vst [vmem:[#allocation2 + $0x78] sm:$0x33] %v2195
      %2199 = vst.msk [vmem:[#allocation2 + $0x80] sm:$0x3] %vm615, %v2191
      %v2200 = vld [vmem:[%s552] sm:$0x3f]
      %v2202 = vcombine.low %v2200, %v2200
      %v2204 = vunpack.c.l.s4 1983009808
      %v2205 = vunpack.c.0.s8 %v2204
      %v2206 = vlaneseq
      %v2207 = vshrl.u32 %v2206, 7
      %v2208 = vsub.s32 %v2205, %v2207
      %v2209 = vrot.slane %v2202, %v2208
      %v2211 = vunpack.c.l.s4 1983009808
      %v2212 = vunpack.c.0.s8 %v2211
      %v2213 = vlaneseq
      %v2214 = vshrl.u32 %v2213, 7
      %v2215 = vsub.s32 %v2212, %v2214
      %v2216 = vrot.slane %v2200, %v2215
      %2217 = vrot.lane.b32.xlu0 %v2209, 110
      %v2218 = vpop.permute.xlu0 %2217
      %2219 = vrot.lane.b32.xlu0 %v2216, 110
      %v2220 = vpop.permute.xlu0 %2219
      %v2221 = vrot.slane %v2218, 4
      %v2222 = vrot.slane %v2220, 4
      %v2223 = vsel %vm640, %v2221, %v2222
      %v2224 = vsel %vm703, %v2218, %v2223
      %2227 = vst [vmem:[#allocation2 + $0x78] sm:$0xcc] %v2224
      %2228 = vst.msk [vmem:[#allocation2 + $0x80] sm:$0xc] %vm647, %v2220
      %v2229 = vld [vmem:[%s552] sm:$0x3f]
      %v2231 = vcombine.high %v2229, %v2229
      %v2233 = vunpack.c.l.s4 1983009808
      %v2234 = vunpack.c.0.s8 %v2233
      %v2235 = vlaneseq
      %v2236 = vshrl.u32 %v2235, 7
      %v2237 = vsub.s32 %v2234, %v2236
      %v2238 = vrot.slane %v2229, %v2237
      %v2240 = vunpack.c.l.s4 1983009808
      %v2241 = vunpack.c.0.s8 %v2240
      %v2242 = vlaneseq
      %v2243 = vshrl.u32 %v2242, 7
      %v2244 = vsub.s32 %v2241, %v2243
      %v2245 = vrot.slane %v2231, %v2244
      %2246 = vrot.lane.b32.xlu0 %v2238, 109
      %v2247 = vpop.permute.xlu0 %2246
      %2248 = vrot.lane.b32.xlu0 %v2245, 109
      %v2249 = vpop.permute.xlu0 %2248
      %v2250 = vrot.slane %v2247, 4
      %v2251 = vrot.slane %v2249, 4
      %v2252 = vsel %vm640, %v2250, %v2251
      %v2253 = vsel %vm733, %v2247, %v2252
      %2256 = vst [vmem:[#allocation2 + $0x84] sm:$0x33] %v2253
      %2257 = vst.msk [vmem:[#allocation2 + $0x8c] sm:$0x3] %vm615, %v2249
      %v2258 = vld [vmem:[%s552] sm:$0x3f]
      %v2260 = vcombine.low %v2258, %v2258
      %v2262 = vunpack.c.l.s4 1983009808
      %v2263 = vunpack.c.0.s8 %v2262
      %v2264 = vlaneseq
      %v2265 = vshrl.u32 %v2264, 7
      %v2266 = vsub.s32 %v2263, %v2265
      %v2267 = vrot.slane %v2260, %v2266
      %v2269 = vunpack.c.l.s4 1983009808
      %v2270 = vunpack.c.0.s8 %v2269
      %v2271 = vlaneseq
      %v2272 = vshrl.u32 %v2271, 7
      %v2273 = vsub.s32 %v2270, %v2272
      %v2274 = vrot.slane %v2258, %v2273
      %2275 = vrot.lane.b32.xlu0 %v2267, 108
      %v2276 = vpop.permute.xlu0 %2275
      %2277 = vrot.lane.b32.xlu0 %v2274, 108
      %v2278 = vpop.permute.xlu0 %2277
      %v2279 = vrot.slane %v2276, 4
      %v2280 = vrot.slane %v2278, 4
      %v2281 = vsel %vm640, %v2279, %v2280
      %v2282 = vsel %vm763, %v2276, %v2281
      %2285 = vst [vmem:[#allocation2 + $0x84] sm:$0xcc] %v2282
      %2286 = vst.msk [vmem:[#allocation2 + $0x8c] sm:$0xc] %vm647, %v2278
      %v2287 = vld [vmem:[%s552] sm:$0x3f]
      %v2289 = vcombine.high %v2287, %v2287
      %v2291 = vunpack.c.l.s4 1983009808
      %v2292 = vunpack.c.0.s8 %v2291
      %v2293 = vlaneseq
      %v2294 = vshrl.u32 %v2293, 7
      %v2295 = vsub.s32 %v2292, %v2294
      %v2296 = vrot.slane %v2287, %v2295
      %v2298 = vunpack.c.l.s4 1983009808
      %v2299 = vunpack.c.0.s8 %v2298
      %v2300 = vlaneseq
      %v2301 = vshrl.u32 %v2300, 7
      %v2302 = vsub.s32 %v2299, %v2301
      %v2303 = vrot.slane %v2289, %v2302
      %2304 = vrot.lane.b32.xlu0 %v2296, 92
      %v2305 = vpop.permute.xlu0 %2304
      %2306 = vrot.lane.b32.xlu0 %v2303, 92
      %v2307 = vpop.permute.xlu0 %2306
      %v2308 = vrot.slane %v2305, 4
      %v2309 = vrot.slane %v2307, 4
      %v2310 = vsel %vm640, %v2308, %v2309
      %v2311 = vsel %vm793, %v2305, %v2310
      %2314 = vst [vmem:[#allocation2 + $0x90] sm:$0x33] %v2311
      %2315 = vst.msk [vmem:[#allocation2 + $0x98] sm:$0x3] %vm615, %v2307
      %v2316 = vld [vmem:[%s552] sm:$0x3f]
      %v2318 = vcombine.low %v2316, %v2316
      %v2320 = vunpack.c.l.s4 1983009808
      %v2321 = vunpack.c.0.s8 %v2320
      %v2322 = vlaneseq
      %v2323 = vshrl.u32 %v2322, 7
      %v2324 = vsub.s32 %v2321, %v2323
      %v2325 = vrot.slane %v2318, %v2324
      %v2327 = vunpack.c.l.s4 1983009808
      %v2328 = vunpack.c.0.s8 %v2327
      %v2329 = vlaneseq
      %v2330 = vshrl.u32 %v2329, 7
      %v2331 = vsub.s32 %v2328, %v2330
      %v2332 = vrot.slane %v2316, %v2331
      %2333 = vrot.lane.b32.xlu0 %v2325, 91
      %v2334 = vpop.permute.xlu0 %2333
      %2335 = vrot.lane.b32.xlu0 %v2332, 91
      %v2336 = vpop.permute.xlu0 %2335
      %v2337 = vrot.slane %v2334, 4
      %v2338 = vrot.slane %v2336, 4
      %v2339 = vsel %vm640, %v2337, %v2338
      %v2340 = vsel %vm823, %v2334, %v2339
      %2343 = vst [vmem:[#allocation2 + $0x90] sm:$0xcc] %v2340
      %2344 = vst.msk [vmem:[#allocation2 + $0x98] sm:$0xc] %vm647, %v2336
      %v2345 = vld [vmem:[%s552] sm:$0x3f]
      %v2347 = vcombine.high %v2345, %v2345
      %v2349 = vunpack.c.l.s4 1983009808
      %v2350 = vunpack.c.0.s8 %v2349
      %v2351 = vlaneseq
      %v2352 = vshrl.u32 %v2351, 7
      %v2353 = vsub.s32 %v2350, %v2352
      %v2354 = vrot.slane %v2345, %v2353
      %v2356 = vunpack.c.l.s4 1983009808
      %v2357 = vunpack.c.0.s8 %v2356
      %v2358 = vlaneseq
      %v2359 = vshrl.u32 %v2358, 7
      %v2360 = vsub.s32 %v2357, %v2359
      %v2361 = vrot.slane %v2347, %v2360
      %2362 = vrot.lane.b32.xlu0 %v2354, 90
      %v2363 = vpop.permute.xlu0 %2362
      %2364 = vrot.lane.b32.xlu0 %v2361, 90
      %v2365 = vpop.permute.xlu0 %2364
      %v2366 = vrot.slane %v2363, 4
      %v2367 = vrot.slane %v2365, 4
      %v2368 = vsel %vm640, %v2366, %v2367
      %v2369 = vsel %vm853, %v2363, %v2368
      %2372 = vst [vmem:[#allocation2 + $0x9c] sm:$0x33] %v2369
      %2373 = vst.msk [vmem:[#allocation2 + $0xa4] sm:$0x3] %vm615, %v2365
      %v2374 = vld [vmem:[#allocation2] sm:$0xff]
      %v2375 = vld [vmem:[#allocation2 + $0x8] sm:$0xf]
      %v2376 = vld [vmem:[#allocation2 + $0xc] sm:$0xff]
      %v2377 = vld [vmem:[#allocation2 + $0x14] sm:$0xf]
      %v2378 = vld [vmem:[#allocation2 + $0x18] sm:$0xff]
      %v2379 = vld [vmem:[#allocation2 + $0x20] sm:$0xf]
      %v2380 = vld [vmem:[#allocation2 + $0x24] sm:$0xff]
      %v2381 = vld [vmem:[#allocation2 + $0x2c] sm:$0xf]
      %v2382 = vld [vmem:[#allocation2 + $0x30] sm:$0xff]
      %v2383 = vld [vmem:[#allocation2 + $0x38] sm:$0xf]
      %v2384 = vld [vmem:[#allocation2 + $0x3c] sm:$0xff]
      %v2385 = vld [vmem:[#allocation2 + $0x44] sm:$0xf]
      %v2386 = vld [vmem:[#allocation2 + $0x48] sm:$0xff]
      %v2387 = vld [vmem:[#allocation2 + $0x50] sm:$0xf]
      %v2388 = vld [vmem:[#allocation2 + $0x54] sm:$0xff]
      %v2389 = vld [vmem:[#allocation2 + $0x5c] sm:$0xf]
      %v2390 = vld [vmem:[#allocation2 + $0x60] sm:$0xff]
      %v2391 = vld [vmem:[#allocation2 + $0x68] sm:$0xf]
      %v2392 = vld [vmem:[#allocation2 + $0x6c] sm:$0xff]
      %v2393 = vld [vmem:[#allocation2 + $0x74] sm:$0xf]
      %v2394 = vld [vmem:[#allocation2 + $0x78] sm:$0xff]
      %v2395 = vld [vmem:[#allocation2 + $0x80] sm:$0xf]
      %v2396 = vld [vmem:[#allocation2 + $0x84] sm:$0xff]
      %v2397 = vld [vmem:[#allocation2 + $0x8c] sm:$0xf]
      %v2398 = vld [vmem:[#allocation2 + $0x90] sm:$0xff]
      %v2399 = vld [vmem:[#allocation2 + $0x98] sm:$0xf]
      %v2400 = vld [vmem:[#allocation2 + $0x9c] sm:$0x33]
      %v2401 = vld [vmem:[#allocation2 + $0xa4] sm:$0x3]
      %v2430 = vunpack.c.l.b16 %v2374
      %v2431 = vunpack.c.h.b16 %v2374
      %v2432 = vunpack.c.l.b16 %v2375
      %v2433 = vunpack.c.l.b16 %v2376
      %v2434 = vunpack.c.h.b16 %v2376
      %v2435 = vunpack.c.l.b16 %v2377
      %v2436 = vunpack.c.l.b16 %v2378
      %v2437 = vunpack.c.h.b16 %v2378
      %v2438 = vunpack.c.l.b16 %v2379
      %v2439 = vunpack.c.l.b16 %v2380
      %v2440 = vunpack.c.h.b16 %v2380
      %v2441 = vunpack.c.l.b16 %v2381
      %v2442 = vunpack.c.l.b16 %v2382
      %v2443 = vunpack.c.h.b16 %v2382
      %v2444 = vunpack.c.l.b16 %v2383
      %v2445 = vunpack.c.l.b16 %v2384
      %v2446 = vunpack.c.h.b16 %v2384
      %v2447 = vunpack.c.l.b16 %v2385
      %v2448 = vunpack.c.l.b16 %v2386
      %v2449 = vunpack.c.h.b16 %v2386
      %v2450 = vunpack.c.l.b16 %v2387
      %v2451 = vunpack.c.l.b16 %v2388
      %v2452 = vunpack.c.h.b16 %v2388
      %v2453 = vunpack.c.l.b16 %v2389
      %v2454 = vunpack.c.l.b16 %v2390
      %v2455 = vunpack.c.h.b16 %v2390
      %v2456 = vunpack.c.l.b16 %v2391
      %v2457 = vunpack.c.l.b16 %v2392
      %v2458 = vunpack.c.h.b16 %v2392
      %v2459 = vunpack.c.l.b16 %v2393
      %v2460 = vunpack.c.l.b16 %v2394
      %v2461 = vunpack.c.h.b16 %v2394
      %v2462 = vunpack.c.l.b16 %v2395
      %v2463 = vunpack.c.l.b16 %v2396
      %v2464 = vunpack.c.h.b16 %v2396
      %v2465 = vunpack.c.l.b16 %v2397
      %v2466 = vunpack.c.l.b16 %v2398
      %v2467 = vunpack.c.h.b16 %v2398
      %v2468 = vunpack.c.l.b16 %v2399
      %v2469 = vunpack.c.l.b16 %v2400
      %v2470 = vunpack.c.h.b16 %v2400
      %v2471 = vunpack.c.l.b16 %v2401
      %v2472 = vpack.c.b16 %v2433, %v2430
      %v2473 = vpack.c.b16 %v2434, %v2431
      %v2474 = vpack.c.b16 %v2435, %v2432
      %v2475 = vpack.c.b16 %v2439, %v2436
      %v2476 = vpack.c.b16 %v2440, %v2437
      %v2477 = vpack.c.b16 %v2441, %v2438
      %v2478 = vpack.c.b16 %v2445, %v2442
      %v2479 = vpack.c.b16 %v2446, %v2443
      %v2480 = vpack.c.b16 %v2447, %v2444
      %v2481 = vpack.c.b16 %v2451, %v2448
      %v2482 = vpack.c.b16 %v2452, %v2449
      %v2483 = vpack.c.b16 %v2453, %v2450
      %v2484 = vpack.c.b16 %v2457, %v2454
      %v2485 = vpack.c.b16 %v2458, %v2455
      %v2486 = vpack.c.b16 %v2459, %v2456
      %v2487 = vpack.c.b16 %v2463, %v2460
      %v2488 = vpack.c.b16 %v2464, %v2461
      %v2489 = vpack.c.b16 %v2465, %v2462
      %v2490 = vpack.c.b16 %v2469, %v2466
      %v2491 = vpack.c.b16 %v2470, %v2467
      %v2492 = vpack.c.b16 %v2471, %v2468
      %v2512 = vsel %vm1511, %v2490, 0
      %v2515 = vsel %vm1511, %v2491, 0
      %v2518 = vsel %vm1511, %v2492, 0
      %2520 = vmatprep.subr.bf16.mxu0 %v2473
      %2521 = vmatpush1.bf16.msra.mxu0 %v2472
      %2522 = vmatprep.subr.bf16.mxu0 %v2476
      %2523 = vmatpush1.bf16.msra.mxu0 %v2475
      %2524 = vmatprep.subr.bf16.mxu0 %v2479
      %2525 = vmatpush1.bf16.msra.mxu0 %v2478
      %2526 = vmatprep.subr.bf16.mxu0 %v2482
      %2527 = vmatpush1.bf16.msra.mxu0 %v2481
      %2528 = vmatprep.subr.bf16.mxu0 %v2485
      %2529 = vmatpush1.bf16.msra.mxu0 %v2484
      %2530 = vmatprep.subr.bf16.mxu0 %v2488
      %2531 = vmatpush1.bf16.msra.mxu0 %v2487
      %2532 = vmatprep.subr.bf16.mxu0 %v2515
      %2533 = vmatpush1.bf16.msra.mxu0 %v2512
      %2534 = vmatprep.subr.bf16.mxu0 0
      %2535 = vmatpush1.bf16.msra.mxu0 0
      %2536 = vmatprep.subr.bf16.mxu0 0
      %2537 = vmatpush1.bf16.msra.mxu0 0
      %2538 = vmatprep.subr.bf16.mxu0 0
      %2539 = vmatpush1.bf16.msra.mxu0 0
      %2540 = vmatprep.subr.bf16.mxu0 0
      %2541 = vmatpush1.bf16.msra.mxu0 0
      %2542 = vmatprep.subr.bf16.mxu0 0
      %2543 = vmatpush1.bf16.msra.mxu0 0
      %2544 = vmatprep.subr.bf16.mxu0 0
      %2545 = vmatpush1.bf16.msra.mxu0 0
      %2546 = vmatprep.subr.bf16.mxu0 0
      %2547 = vmatpush1.bf16.msra.mxu0 0
      %2548 = vmatprep.subr.bf16.mxu0 0
      %2549 = vmatpush1.bf16.msra.mxu0 0
      %2550 = vmatprep.subr.bf16.mxu0 0
      %2551 = vmatpush1.bf16.msra.mxu0 0
      %2552 = vmatprep.mubr.bf16.mxu0 0
      %2553 = vmatmul.mubr.bf16.gmra.mrb[0].mxu0 %v1509
      %v2554 = vpop.f32.mrb[0].mxu0
      %v2555 = vadd.f32 %v1396, %v2554
      %v2556 = vpop.f32.mrb[0].mxu0
      %v2557 = vadd.f32 %v1396, %v2556
      %v2558 = vpop.f32.mrb[0].mxu0
      %v2559 = vpop.f32.mrb[0].mxu0
      %2560 = vdwg.mxu0
      %2561 = vmatprep.subr.bf16.mxu0 0
      %2562 = vmatpush1.bf16.msra.mxu0 %v2474
      %2563 = vmatprep.subr.bf16.mxu0 0
      %2564 = vmatpush1.bf16.msra.mxu0 %v2477
      %2565 = vmatprep.subr.bf16.mxu0 0
      %2566 = vmatpush1.bf16.msra.mxu0 %v2480
      %2567 = vmatprep.subr.bf16.mxu0 0
      %2568 = vmatpush1.bf16.msra.mxu0 %v2483
      %2569 = vmatprep.subr.bf16.mxu0 0
      %2570 = vmatpush1.bf16.msra.mxu0 %v2486
      %2571 = vmatprep.subr.bf16.mxu0 0
      %2572 = vmatpush1.bf16.msra.mxu0 %v2489
      %2573 = vmatprep.subr.bf16.mxu0 0
      %2574 = vmatpush1.bf16.msra.mxu0 %v2518
      %2575 = vmatprep.subr.bf16.mxu0 0
      %2576 = vmatpush1.bf16.msra.mxu0 0
      %2577 = vmatprep.subr.bf16.mxu0 0
      %2578 = vmatpush1.bf16.msra.mxu0 0
      %2579 = vmatprep.subr.bf16.mxu0 0
      %2580 = vmatpush1.bf16.msra.mxu0 0
      %2581 = vmatprep.subr.bf16.mxu0 0
      %2582 = vmatpush1.bf16.msra.mxu0 0
      %2583 = vmatprep.subr.bf16.mxu0 0
      %2584 = vmatpush1.bf16.msra.mxu0 0
      %2585 = vmatprep.subr.bf16.mxu0 0
      %2586 = vmatpush1.bf16.msra.mxu0 0
      %2587 = vmatprep.subr.bf16.mxu0 0
      %2588 = vmatpush1.bf16.msra.mxu0 0
      %2589 = vmatprep.subr.bf16.mxu0 0
      %2590 = vmatpush1.bf16.msra.mxu0 0
      %2591 = vmatprep.subr.bf16.mxu0 0
      %2592 = vmatpush1.bf16.msra.mxu0 0
      %2593 = vmatprep.mubr.bf16.mxu0 0
      %2594 = vmatmul.mubr.bf16.gmra.mrb[0].mxu0 %v1509
      %v2595 = vpop.f32.mrb[0].mxu0
      %v2596 = vadd.f32 %v1396, %v2595
      %v2597 = vpop.f32.mrb[0].mxu0
      %v2598 = vpop.f32.mrb[0].mxu0
      %v2599 = vpop.f32.mrb[0].mxu0
      %2600 = vdwg.mxu0
      %vm2601 = vcmp.gt.f32.partialorder %v2555, 0.0
      %vm2602 = vcmp.gt.f32.partialorder %v2557, 0.0
      %vm2603 = vcmp.gt.f32.partialorder %v2596, 0.0
      %v2604 = vmul.f32 %v2555, 0.01
      %v2605 = vmul.f32 %v2557, 0.01
      %v2606 = vmul.f32 %v2596, 0.01
      %v2607 = vsel %vm2601, %v2555, %v2604
      %v2608 = vsel %vm2602, %v2557, %v2605
      %v2609 = vsel %vm2603, %v2596, %v2606
      %s2610 = scalar_lea.vmem %s590, 24
      %2611 = vst [vmem:[%s2610] sm:$0xff] %v2607
      %2612 = vst [vmem:[%s2610 + $0x8] sm:$0xff] %v2608
      %2613 = vst.msk [vmem:[%s2610 + $0x10] sm:$0xff] %vm1613, %v2609
      %v2614 = vld [vmem:[%s539] sm:$0x3f]
      %v2616 = vcombine.high %v2614, %v2614
      %v2618 = vunpack.c.l.s4 1983009808
      %v2619 = vunpack.c.0.s8 %v2618
      %v2620 = vlaneseq
      %v2621 = vshrl.u32 %v2620, 7
      %v2622 = vsub.s32 %v2619, %v2621
      %v2623 = vrot.slane %v2614, %v2622
      %v2625 = vunpack.c.l.s4 1983009808
      %v2626 = vunpack.c.0.s8 %v2625
      %v2627 = vlaneseq
      %v2628 = vshrl.u32 %v2627, 7
      %v2629 = vsub.s32 %v2626, %v2628
      %v2630 = vrot.slane %v2616, %v2629
      %2633 = vst [vmem:[#allocation2] sm:$0x33] %v2623
      %2634 = vst.msk [vmem:[#allocation2 + $0x8] sm:$0x3] %vm615, %v2630
      %v2635 = vld [vmem:[%s539] sm:$0x3f]
      %v2637 = vcombine.low %v2635, %v2635
      %v2639 = vunpack.c.l.s4 1983009808
      %v2640 = vunpack.c.0.s8 %v2639
      %v2641 = vlaneseq
      %v2642 = vshrl.u32 %v2641, 7
      %v2643 = vsub.s32 %v2640, %v2642
      %v2644 = vrot.slane %v2637, %v2643
      %v2646 = vunpack.c.l.s4 1983009808
      %v2647 = vunpack.c.0.s8 %v2646
      %v2648 = vlaneseq
      %v2649 = vshrl.u32 %v2648, 7
      %v2650 = vsub.s32 %v2647, %v2649
      %v2651 = vrot.slane %v2635, %v2650
      %2652 = vrot.lane.b32.xlu0 %v2644, 127
      %v2653 = vpop.permute.xlu0 %2652
      %2654 = vrot.lane.b32.xlu0 %v2651, 127
      %v2655 = vpop.permute.xlu0 %2654
      %v2656 = vrot.slane %v2653, 4
      %v2657 = vrot.slane %v2655, 4
      %v2658 = vsel %vm640, %v2656, %v2657
      %v2659 = vsel %vm642, %v2653, %v2658
      %2662 = vst [vmem:[#allocation2] sm:$0xcc] %v2659
      %2663 = vst.msk [vmem:[#allocation2 + $0x8] sm:$0xc] %vm647, %v2655
      %v2664 = vld [vmem:[%s539] sm:$0x3f]
      %v2666 = vcombine.high %v2664, %v2664
      %v2668 = vunpack.c.l.s4 1983009808
      %v2669 = vunpack.c.0.s8 %v2668
      %v2670 = vlaneseq
      %v2671 = vshrl.u32 %v2670, 7
      %v2672 = vsub.s32 %v2669, %v2671
      %v2673 = vrot.slane %v2664, %v2672
      %v2675 = vunpack.c.l.s4 1983009808
      %v2676 = vunpack.c.0.s8 %v2675
      %v2677 = vlaneseq
      %v2678 = vshrl.u32 %v2677, 7
      %v2679 = vsub.s32 %v2676, %v2678
      %v2680 = vrot.slane %v2666, %v2679
      %2681 = vrot.lane.b32.xlu0 %v2673, 126
      %v2682 = vpop.permute.xlu0 %2681
      %2683 = vrot.lane.b32.xlu0 %v2680, 126
      %v2684 = vpop.permute.xlu0 %2683
      %v2685 = vrot.slane %v2682, 4
      %v2686 = vrot.slane %v2684, 4
      %v2687 = vsel %vm640, %v2685, %v2686
      %v2688 = vsel %vm673, %v2682, %v2687
      %2691 = vst [vmem:[#allocation2 + $0xc] sm:$0x33] %v2688
      %2692 = vst.msk [vmem:[#allocation2 + $0x14] sm:$0x3] %vm615, %v2684
      %v2693 = vld [vmem:[%s539] sm:$0x3f]
      %v2695 = vcombine.low %v2693, %v2693
      %v2697 = vunpack.c.l.s4 1983009808
      %v2698 = vunpack.c.0.s8 %v2697
      %v2699 = vlaneseq
      %v2700 = vshrl.u32 %v2699, 7
      %v2701 = vsub.s32 %v2698, %v2700
      %v2702 = vrot.slane %v2695, %v2701
      %v2704 = vunpack.c.l.s4 1983009808
      %v2705 = vunpack.c.0.s8 %v2704
      %v2706 = vlaneseq
      %v2707 = vshrl.u32 %v2706, 7
      %v2708 = vsub.s32 %v2705, %v2707
      %v2709 = vrot.slane %v2693, %v2708
      %2710 = vrot.lane.b32.xlu0 %v2702, 110
      %v2711 = vpop.permute.xlu0 %2710
      %2712 = vrot.lane.b32.xlu0 %v2709, 110
      %v2713 = vpop.permute.xlu0 %2712
      %v2714 = vrot.slane %v2711, 4
      %v2715 = vrot.slane %v2713, 4
      %v2716 = vsel %vm640, %v2714, %v2715
      %v2717 = vsel %vm703, %v2711, %v2716
      %2720 = vst [vmem:[#allocation2 + $0xc] sm:$0xcc] %v2717
      %2721 = vst.msk [vmem:[#allocation2 + $0x14] sm:$0xc] %vm647, %v2713
      %v2722 = vld [vmem:[%s539] sm:$0x3f]
      %v2724 = vcombine.high %v2722, %v2722
      %v2726 = vunpack.c.l.s4 1983009808
      %v2727 = vunpack.c.0.s8 %v2726
      %v2728 = vlaneseq
      %v2729 = vshrl.u32 %v2728, 7
      %v2730 = vsub.s32 %v2727, %v2729
      %v2731 = vrot.slane %v2722, %v2730
      %v2733 = vunpack.c.l.s4 1983009808
      %v2734 = vunpack.c.0.s8 %v2733
      %v2735 = vlaneseq
      %v2736 = vshrl.u32 %v2735, 7
      %v2737 = vsub.s32 %v2734, %v2736
      %v2738 = vrot.slane %v2724, %v2737
      %2739 = vrot.lane.b32.xlu0 %v2731, 109
      %v2740 = vpop.permute.xlu0 %2739
      %2741 = vrot.lane.b32.xlu0 %v2738, 109
      %v2742 = vpop.permute.xlu0 %2741
      %v2743 = vrot.slane %v2740, 4
      %v2744 = vrot.slane %v2742, 4
      %v2745 = vsel %vm640, %v2743, %v2744
      %v2746 = vsel %vm733, %v2740, %v2745
      %2749 = vst [vmem:[#allocation2 + $0x18] sm:$0x33] %v2746
      %2750 = vst.msk [vmem:[#allocation2 + $0x20] sm:$0x3] %vm615, %v2742
      %v2751 = vld [vmem:[%s539] sm:$0x3f]
      %v2753 = vcombine.low %v2751, %v2751
      %v2755 = vunpack.c.l.s4 1983009808
      %v2756 = vunpack.c.0.s8 %v2755
      %v2757 = vlaneseq
      %v2758 = vshrl.u32 %v2757, 7
      %v2759 = vsub.s32 %v2756, %v2758
      %v2760 = vrot.slane %v2753, %v2759
      %v2762 = vunpack.c.l.s4 1983009808
      %v2763 = vunpack.c.0.s8 %v2762
      %v2764 = vlaneseq
      %v2765 = vshrl.u32 %v2764, 7
      %v2766 = vsub.s32 %v2763, %v2765
      %v2767 = vrot.slane %v2751, %v2766
      %2768 = vrot.lane.b32.xlu0 %v2760, 108
      %v2769 = vpop.permute.xlu0 %2768
      %2770 = vrot.lane.b32.xlu0 %v2767, 108
      %v2771 = vpop.permute.xlu0 %2770
      %v2772 = vrot.slane %v2769, 4
      %v2773 = vrot.slane %v2771, 4
      %v2774 = vsel %vm640, %v2772, %v2773
      %v2775 = vsel %vm763, %v2769, %v2774
      %2778 = vst [vmem:[#allocation2 + $0x18] sm:$0xcc] %v2775
      %2779 = vst.msk [vmem:[#allocation2 + $0x20] sm:$0xc] %vm647, %v2771
      %v2780 = vld [vmem:[%s539] sm:$0x3f]
      %v2782 = vcombine.high %v2780, %v2780
      %v2784 = vunpack.c.l.s4 1983009808
      %v2785 = vunpack.c.0.s8 %v2784
      %v2786 = vlaneseq
      %v2787 = vshrl.u32 %v2786, 7
      %v2788 = vsub.s32 %v2785, %v2787
      %v2789 = vrot.slane %v2780, %v2788
      %v2791 = vunpack.c.l.s4 1983009808
      %v2792 = vunpack.c.0.s8 %v2791
      %v2793 = vlaneseq
      %v2794 = vshrl.u32 %v2793, 7
      %v2795 = vsub.s32 %v2792, %v2794
      %v2796 = vrot.slane %v2782, %v2795
      %2797 = vrot.lane.b32.xlu0 %v2789, 92
      %v2798 = vpop.permute.xlu0 %2797
      %2799 = vrot.lane.b32.xlu0 %v2796, 92
      %v2800 = vpop.permute.xlu0 %2799
      %v2801 = vrot.slane %v2798, 4
      %v2802 = vrot.slane %v2800, 4
      %v2803 = vsel %vm640, %v2801, %v2802
      %v2804 = vsel %vm793, %v2798, %v2803
      %2807 = vst [vmem:[#allocation2 + $0x24] sm:$0x33] %v2804
      %2808 = vst.msk [vmem:[#allocation2 + $0x2c] sm:$0x3] %vm615, %v2800
      %v2809 = vld [vmem:[%s539] sm:$0x3f]
      %v2811 = vcombine.low %v2809, %v2809
      %v2813 = vunpack.c.l.s4 1983009808
      %v2814 = vunpack.c.0.s8 %v2813
      %v2815 = vlaneseq
      %v2816 = vshrl.u32 %v2815, 7
      %v2817 = vsub.s32 %v2814, %v2816
      %v2818 = vrot.slane %v2811, %v2817
      %v2820 = vunpack.c.l.s4 1983009808
      %v2821 = vunpack.c.0.s8 %v2820
      %v2822 = vlaneseq
      %v2823 = vshrl.u32 %v2822, 7
      %v2824 = vsub.s32 %v2821, %v2823
      %v2825 = vrot.slane %v2809, %v2824
      %2826 = vrot.lane.b32.xlu0 %v2818, 91
      %v2827 = vpop.permute.xlu0 %2826
      %2828 = vrot.lane.b32.xlu0 %v2825, 91
      %v2829 = vpop.permute.xlu0 %2828
      %v2830 = vrot.slane %v2827, 4
      %v2831 = vrot.slane %v2829, 4
      %v2832 = vsel %vm640, %v2830, %v2831
      %v2833 = vsel %vm823, %v2827, %v2832
      %2836 = vst [vmem:[#allocation2 + $0x24] sm:$0xcc] %v2833
      %2837 = vst.msk [vmem:[#allocation2 + $0x2c] sm:$0xc] %vm647, %v2829
      %v2838 = vld [vmem:[%s539] sm:$0x3f]
      %v2840 = vcombine.high %v2838, %v2838
      %v2842 = vunpack.c.l.s4 1983009808
      %v2843 = vunpack.c.0.s8 %v2842
      %v2844 = vlaneseq
      %v2845 = vshrl.u32 %v2844, 7
      %v2846 = vsub.s32 %v2843, %v2845
      %v2847 = vrot.slane %v2838, %v2846
      %v2849 = vunpack.c.l.s4 1983009808
      %v2850 = vunpack.c.0.s8 %v2849
      %v2851 = vlaneseq
      %v2852 = vshrl.u32 %v2851, 7
      %v2853 = vsub.s32 %v2850, %v2852
      %v2854 = vrot.slane %v2840, %v2853
      %2855 = vrot.lane.b32.xlu0 %v2847, 90
      %v2856 = vpop.permute.xlu0 %2855
      %2857 = vrot.lane.b32.xlu0 %v2854, 90
      %v2858 = vpop.permute.xlu0 %2857
      %v2859 = vrot.slane %v2856, 4
      %v2860 = vrot.slane %v2858, 4
      %v2861 = vsel %vm640, %v2859, %v2860
      %v2862 = vsel %vm853, %v2856, %v2861
      %2865 = vst [vmem:[#allocation2 + $0x30] sm:$0x33] %v2862
      %2866 = vst.msk [vmem:[#allocation2 + $0x38] sm:$0x3] %vm615, %v2858
      %v2867 = vld [vmem:[%s552] sm:$0x3f]
      %v2869 = vcombine.low %v2867, %v2867
      %v2871 = vunpack.c.l.s4 1983009808
      %v2872 = vunpack.c.0.s8 %v2871
      %v2873 = vlaneseq
      %v2874 = vshrl.u32 %v2873, 7
      %v2875 = vsub.s32 %v2872, %v2874
      %v2876 = vrot.slane %v2869, %v2875
      %v2878 = vunpack.c.l.s4 1983009808
      %v2879 = vunpack.c.0.s8 %v2878
      %v2880 = vlaneseq
      %v2881 = vshrl.u32 %v2880, 7
      %v2882 = vsub.s32 %v2879, %v2881
      %v2883 = vrot.slane %v2867, %v2882
      %2886 = vst [vmem:[#allocation2 + $0x30] sm:$0xcc] %v2876
      %2887 = vst.msk [vmem:[#allocation2 + $0x38] sm:$0xc] %vm647, %v2883
      %v2888 = vld [vmem:[%s552] sm:$0x3f]
      %v2890 = vcombine.high %v2888, %v2888
      %v2892 = vunpack.c.l.s4 1983009808
      %v2893 = vunpack.c.0.s8 %v2892
      %v2894 = vlaneseq
      %v2895 = vshrl.u32 %v2894, 7
      %v2896 = vsub.s32 %v2893, %v2895
      %v2897 = vrot.slane %v2888, %v2896
      %v2899 = vunpack.c.l.s4 1983009808
      %v2900 = vunpack.c.0.s8 %v2899
      %v2901 = vlaneseq
      %v2902 = vshrl.u32 %v2901, 7
      %v2903 = vsub.s32 %v2900, %v2902
      %v2904 = vrot.slane %v2890, %v2903
      %2905 = vrot.lane.b32.xlu0 %v2897, 127
      %v2906 = vpop.permute.xlu0 %2905
      %2907 = vrot.lane.b32.xlu0 %v2904, 127
      %v2908 = vpop.permute.xlu0 %2907
      %v2909 = vrot.slane %v2906, 4
      %v2910 = vrot.slane %v2908, 4
      %v2911 = vsel %vm640, %v2909, %v2910
      %v2912 = vsel %vm642, %v2906, %v2911
      %2915 = vst [vmem:[#allocation2 + $0x3c] sm:$0x33] %v2912
      %2916 = vst.msk [vmem:[#allocation2 + $0x44] sm:$0x3] %vm615, %v2908
      %v2917 = vld [vmem:[%s552] sm:$0x3f]
      %v2919 = vcombine.low %v2917, %v2917
      %v2921 = vunpack.c.l.s4 1983009808
      %v2922 = vunpack.c.0.s8 %v2921
      %v2923 = vlaneseq
      %v2924 = vshrl.u32 %v2923, 7
      %v2925 = vsub.s32 %v2922, %v2924
      %v2926 = vrot.slane %v2919, %v2925
      %v2928 = vunpack.c.l.s4 1983009808
      %v2929 = vunpack.c.0.s8 %v2928
      %v2930 = vlaneseq
      %v2931 = vshrl.u32 %v2930, 7
      %v2932 = vsub.s32 %v2929, %v2931
      %v2933 = vrot.slane %v2917, %v2932
      %2934 = vrot.lane.b32.xlu0 %v2926, 126
      %v2935 = vpop.permute.xlu0 %2934
      %2936 = vrot.lane.b32.xlu0 %v2933, 126
      %v2937 = vpop.permute.xlu0 %2936
      %v2938 = vrot.slane %v2935, 4
      %v2939 = vrot.slane %v2937, 4
      %v2940 = vsel %vm640, %v2938, %v2939
      %v2941 = vsel %vm673, %v2935, %v2940
      %2944 = vst [vmem:[#allocation2 + $0x3c] sm:$0xcc] %v2941
      %2945 = vst.msk [vmem:[#allocation2 + $0x44] sm:$0xc] %vm647, %v2937
      %v2946 = vld [vmem:[%s552] sm:$0x3f]
      %v2948 = vcombine.high %v2946, %v2946
      %v2950 = vunpack.c.l.s4 1983009808
      %v2951 = vunpack.c.0.s8 %v2950
      %v2952 = vlaneseq
      %v2953 = vshrl.u32 %v2952, 7
      %v2954 = vsub.s32 %v2951, %v2953
      %v2955 = vrot.slane %v2946, %v2954
      %v2957 = vunpack.c.l.s4 1983009808
      %v2958 = vunpack.c.0.s8 %v2957
      %v2959 = vlaneseq
      %v2960 = vshrl.u32 %v2959, 7
      %v2961 = vsub.s32 %v2958, %v2960
      %v2962 = vrot.slane %v2948, %v2961
      %2963 = vrot.lane.b32.xlu0 %v2955, 110
      %v2964 = vpop.permute.xlu0 %2963
      %2965 = vrot.lane.b32.xlu0 %v2962, 110
      %v2966 = vpop.permute.xlu0 %2965
      %v2967 = vrot.slane %v2964, 4
      %v2968 = vrot.slane %v2966, 4
      %v2969 = vsel %vm640, %v2967, %v2968
      %v2970 = vsel %vm703, %v2964, %v2969
      %2973 = vst [vmem:[#allocation2 + $0x48] sm:$0x33] %v2970
      %2974 = vst.msk [vmem:[#allocation2 + $0x50] sm:$0x3] %vm615, %v2966
      %v2975 = vld [vmem:[%s552] sm:$0x3f]
      %v2977 = vcombine.low %v2975, %v2975
      %v2979 = vunpack.c.l.s4 1983009808
      %v2980 = vunpack.c.0.s8 %v2979
      %v2981 = vlaneseq
      %v2982 = vshrl.u32 %v2981, 7
      %v2983 = vsub.s32 %v2980, %v2982
      %v2984 = vrot.slane %v2977, %v2983
      %v2986 = vunpack.c.l.s4 1983009808
      %v2987 = vunpack.c.0.s8 %v2986
      %v2988 = vlaneseq
      %v2989 = vshrl.u32 %v2988, 7
      %v2990 = vsub.s32 %v2987, %v2989
      %v2991 = vrot.slane %v2975, %v2990
      %2992 = vrot.lane.b32.xlu0 %v2984, 109
      %v2993 = vpop.permute.xlu0 %2992
      %2994 = vrot.lane.b32.xlu0 %v2991, 109
      %v2995 = vpop.permute.xlu0 %2994
      %v2996 = vrot.slane %v2993, 4
      %v2997 = vrot.slane %v2995, 4
      %v2998 = vsel %vm640, %v2996, %v2997
      %v2999 = vsel %vm733, %v2993, %v2998
      %3002 = vst [vmem:[#allocation2 + $0x48] sm:$0xcc] %v2999
      %3003 = vst.msk [vmem:[#allocation2 + $0x50] sm:$0xc] %vm647, %v2995
      %v3004 = vld [vmem:[%s552] sm:$0x3f]
      %v3006 = vcombine.high %v3004, %v3004
      %v3008 = vunpack.c.l.s4 1983009808
      %v3009 = vunpack.c.0.s8 %v3008
      %v3010 = vlaneseq
      %v3011 = vshrl.u32 %v3010, 7
      %v3012 = vsub.s32 %v3009, %v3011
      %v3013 = vrot.slane %v3004, %v3012
      %v3015 = vunpack.c.l.s4 1983009808
      %v3016 = vunpack.c.0.s8 %v3015
      %v3017 = vlaneseq
      %v3018 = vshrl.u32 %v3017, 7
      %v3019 = vsub.s32 %v3016, %v3018
      %v3020 = vrot.slane %v3006, %v3019
      %3021 = vrot.lane.b32.xlu0 %v3013, 108
      %v3022 = vpop.permute.xlu0 %3021
      %3023 = vrot.lane.b32.xlu0 %v3020, 108
      %v3024 = vpop.permute.xlu0 %3023
      %v3025 = vrot.slane %v3022, 4
      %v3026 = vrot.slane %v3024, 4
      %v3027 = vsel %vm640, %v3025, %v3026
      %v3028 = vsel %vm763, %v3022, %v3027
      %3031 = vst [vmem:[#allocation2 + $0x54] sm:$0x33] %v3028
      %3032 = vst.msk [vmem:[#allocation2 + $0x5c] sm:$0x3] %vm615, %v3024
      %v3033 = vld [vmem:[%s552] sm:$0x3f]
      %v3035 = vcombine.low %v3033, %v3033
      %v3037 = vunpack.c.l.s4 1983009808
      %v3038 = vunpack.c.0.s8 %v3037
      %v3039 = vlaneseq
      %v3040 = vshrl.u32 %v3039, 7
      %v3041 = vsub.s32 %v3038, %v3040
      %v3042 = vrot.slane %v3035, %v3041
      %v3044 = vunpack.c.l.s4 1983009808
      %v3045 = vunpack.c.0.s8 %v3044
      %v3046 = vlaneseq
      %v3047 = vshrl.u32 %v3046, 7
      %v3048 = vsub.s32 %v3045, %v3047
      %v3049 = vrot.slane %v3033, %v3048
      %3050 = vrot.lane.b32.xlu0 %v3042, 92
      %v3051 = vpop.permute.xlu0 %3050
      %3052 = vrot.lane.b32.xlu0 %v3049, 92
      %v3053 = vpop.permute.xlu0 %3052
      %v3054 = vrot.slane %v3051, 4
      %v3055 = vrot.slane %v3053, 4
      %v3056 = vsel %vm640, %v3054, %v3055
      %v3057 = vsel %vm793, %v3051, %v3056
      %3060 = vst [vmem:[#allocation2 + $0x54] sm:$0xcc] %v3057
      %3061 = vst.msk [vmem:[#allocation2 + $0x5c] sm:$0xc] %vm647, %v3053
      %v3062 = vld [vmem:[%s552] sm:$0x3f]
      %v3064 = vcombine.high %v3062, %v3062
      %v3066 = vunpack.c.l.s4 1983009808
      %v3067 = vunpack.c.0.s8 %v3066
      %v3068 = vlaneseq
      %v3069 = vshrl.u32 %v3068, 7
      %v3070 = vsub.s32 %v3067, %v3069
      %v3071 = vrot.slane %v3062, %v3070
      %v3073 = vunpack.c.l.s4 1983009808
      %v3074 = vunpack.c.0.s8 %v3073
      %v3075 = vlaneseq
      %v3076 = vshrl.u32 %v3075, 7
      %v3077 = vsub.s32 %v3074, %v3076
      %v3078 = vrot.slane %v3064, %v3077
      %3079 = vrot.lane.b32.xlu0 %v3071, 91
      %v3080 = vpop.permute.xlu0 %3079
      %3081 = vrot.lane.b32.xlu0 %v3078, 91
      %v3082 = vpop.permute.xlu0 %3081
      %v3083 = vrot.slane %v3080, 4
      %v3084 = vrot.slane %v3082, 4
      %v3085 = vsel %vm640, %v3083, %v3084
      %v3086 = vsel %vm823, %v3080, %v3085
      %3089 = vst [vmem:[#allocation2 + $0x60] sm:$0x33] %v3086
      %3090 = vst.msk [vmem:[#allocation2 + $0x68] sm:$0x3] %vm615, %v3082
      %v3091 = vld [vmem:[%s552] sm:$0x3f]
      %v3093 = vcombine.low %v3091, %v3091
      %v3095 = vunpack.c.l.s4 1983009808
      %v3096 = vunpack.c.0.s8 %v3095
      %v3097 = vlaneseq
      %v3098 = vshrl.u32 %v3097, 7
      %v3099 = vsub.s32 %v3096, %v3098
      %v3100 = vrot.slane %v3093, %v3099
      %v3102 = vunpack.c.l.s4 1983009808
      %v3103 = vunpack.c.0.s8 %v3102
      %v3104 = vlaneseq
      %v3105 = vshrl.u32 %v3104, 7
      %v3106 = vsub.s32 %v3103, %v3105
      %v3107 = vrot.slane %v3091, %v3106
      %3108 = vrot.lane.b32.xlu0 %v3100, 90
      %v3109 = vpop.permute.xlu0 %3108
      %3110 = vrot.lane.b32.xlu0 %v3107, 90
      %v3111 = vpop.permute.xlu0 %3110
      %v3112 = vrot.slane %v3109, 4
      %v3113 = vrot.slane %v3111, 4
      %v3114 = vsel %vm640, %v3112, %v3113
      %v3115 = vsel %vm853, %v3109, %v3114
      %3118 = vst [vmem:[#allocation2 + $0x60] sm:$0xcc] %v3115
      %3119 = vst.msk [vmem:[#allocation2 + $0x68] sm:$0xc] %vm647, %v3111
      %v3120 = vld [vmem:[%s565] sm:$0x3f]
      %v3122 = vcombine.high %v3120, %v3120
      %v3124 = vunpack.c.l.s4 1983009808
      %v3125 = vunpack.c.0.s8 %v3124
      %v3126 = vlaneseq
      %v3127 = vshrl.u32 %v3126, 7
      %v3128 = vsub.s32 %v3125, %v3127
      %v3129 = vrot.slane %v3120, %v3128
      %v3131 = vunpack.c.l.s4 1983009808
      %v3132 = vunpack.c.0.s8 %v3131
      %v3133 = vlaneseq
      %v3134 = vshrl.u32 %v3133, 7
      %v3135 = vsub.s32 %v3132, %v3134
      %v3136 = vrot.slane %v3122, %v3135
      %3139 = vst [vmem:[#allocation2 + $0x6c] sm:$0x33] %v3129
      %3140 = vst.msk [vmem:[#allocation2 + $0x74] sm:$0x3] %vm615, %v3136
      %v3141 = vld [vmem:[%s565] sm:$0x3f]
      %v3143 = vcombine.low %v3141, %v3141
      %v3145 = vunpack.c.l.s4 1983009808
      %v3146 = vunpack.c.0.s8 %v3145
      %v3147 = vlaneseq
      %v3148 = vshrl.u32 %v3147, 7
      %v3149 = vsub.s32 %v3146, %v3148
      %v3150 = vrot.slane %v3143, %v3149
      %v3152 = vunpack.c.l.s4 1983009808
      %v3153 = vunpack.c.0.s8 %v3152
      %v3154 = vlaneseq
      %v3155 = vshrl.u32 %v3154, 7
      %v3156 = vsub.s32 %v3153, %v3155
      %v3157 = vrot.slane %v3141, %v3156
      %3158 = vrot.lane.b32.xlu0 %v3150, 127
      %v3159 = vpop.permute.xlu0 %3158
      %3160 = vrot.lane.b32.xlu0 %v3157, 127
      %v3161 = vpop.permute.xlu0 %3160
      %v3162 = vrot.slane %v3159, 4
      %v3163 = vrot.slane %v3161, 4
      %v3164 = vsel %vm640, %v3162, %v3163
      %v3165 = vsel %vm642, %v3159, %v3164
      %3168 = vst [vmem:[#allocation2 + $0x6c] sm:$0xcc] %v3165
      %3169 = vst.msk [vmem:[#allocation2 + $0x74] sm:$0xc] %vm647, %v3161
      %v3170 = vld [vmem:[%s565] sm:$0x3f]
      %v3172 = vcombine.high %v3170, %v3170
      %v3174 = vunpack.c.l.s4 1983009808
      %v3175 = vunpack.c.0.s8 %v3174
      %v3176 = vlaneseq
      %v3177 = vshrl.u32 %v3176, 7
      %v3178 = vsub.s32 %v3175, %v3177
      %v3179 = vrot.slane %v3170, %v3178
      %v3181 = vunpack.c.l.s4 1983009808
      %v3182 = vunpack.c.0.s8 %v3181
      %v3183 = vlaneseq
      %v3184 = vshrl.u32 %v3183, 7
      %v3185 = vsub.s32 %v3182, %v3184
      %v3186 = vrot.slane %v3172, %v3185
      %3187 = vrot.lane.b32.xlu0 %v3179, 126
      %v3188 = vpop.permute.xlu0 %3187
      %3189 = vrot.lane.b32.xlu0 %v3186, 126
      %v3190 = vpop.permute.xlu0 %3189
      %v3191 = vrot.slane %v3188, 4
      %v3192 = vrot.slane %v3190, 4
      %v3193 = vsel %vm640, %v3191, %v3192
      %v3194 = vsel %vm673, %v3188, %v3193
      %3197 = vst [vmem:[#allocation2 + $0x78] sm:$0x33] %v3194
      %3198 = vst.msk [vmem:[#allocation2 + $0x80] sm:$0x3] %vm615, %v3190
      %v3199 = vld [vmem:[%s565] sm:$0x3f]
      %v3201 = vcombine.low %v3199, %v3199
      %v3203 = vunpack.c.l.s4 1983009808
      %v3204 = vunpack.c.0.s8 %v3203
      %v3205 = vlaneseq
      %v3206 = vshrl.u32 %v3205, 7
      %v3207 = vsub.s32 %v3204, %v3206
      %v3208 = vrot.slane %v3201, %v3207
      %v3210 = vunpack.c.l.s4 1983009808
      %v3211 = vunpack.c.0.s8 %v3210
      %v3212 = vlaneseq
      %v3213 = vshrl.u32 %v3212, 7
      %v3214 = vsub.s32 %v3211, %v3213
      %v3215 = vrot.slane %v3199, %v3214
      %3216 = vrot.lane.b32.xlu0 %v3208, 110
      %v3217 = vpop.permute.xlu0 %3216
      %3218 = vrot.lane.b32.xlu0 %v3215, 110
      %v3219 = vpop.permute.xlu0 %3218
      %v3220 = vrot.slane %v3217, 4
      %v3221 = vrot.slane %v3219, 4
      %v3222 = vsel %vm640, %v3220, %v3221
      %v3223 = vsel %vm703, %v3217, %v3222
      %3226 = vst [vmem:[#allocation2 + $0x78] sm:$0xcc] %v3223
      %3227 = vst.msk [vmem:[#allocation2 + $0x80] sm:$0xc] %vm647, %v3219
      %v3228 = vld [vmem:[%s565] sm:$0x3f]
      %v3230 = vcombine.high %v3228, %v3228
      %v3232 = vunpack.c.l.s4 1983009808
      %v3233 = vunpack.c.0.s8 %v3232
      %v3234 = vlaneseq
      %v3235 = vshrl.u32 %v3234, 7
      %v3236 = vsub.s32 %v3233, %v3235
      %v3237 = vrot.slane %v3228, %v3236
      %v3239 = vunpack.c.l.s4 1983009808
      %v3240 = vunpack.c.0.s8 %v3239
      %v3241 = vlaneseq
      %v3242 = vshrl.u32 %v3241, 7
      %v3243 = vsub.s32 %v3240, %v3242
      %v3244 = vrot.slane %v3230, %v3243
      %3245 = vrot.lane.b32.xlu0 %v3237, 109
      %v3246 = vpop.permute.xlu0 %3245
      %3247 = vrot.lane.b32.xlu0 %v3244, 109
      %v3248 = vpop.permute.xlu0 %3247
      %v3249 = vrot.slane %v3246, 4
      %v3250 = vrot.slane %v3248, 4
      %v3251 = vsel %vm640, %v3249, %v3250
      %v3252 = vsel %vm733, %v3246, %v3251
      %3255 = vst [vmem:[#allocation2 + $0x84] sm:$0x33] %v3252
      %3256 = vst.msk [vmem:[#allocation2 + $0x8c] sm:$0x3] %vm615, %v3248
      %v3257 = vld [vmem:[%s565] sm:$0x3f]
      %v3259 = vcombine.low %v3257, %v3257
      %v3261 = vunpack.c.l.s4 1983009808
      %v3262 = vunpack.c.0.s8 %v3261
      %v3263 = vlaneseq
      %v3264 = vshrl.u32 %v3263, 7
      %v3265 = vsub.s32 %v3262, %v3264
      %v3266 = vrot.slane %v3259, %v3265
      %v3268 = vunpack.c.l.s4 1983009808
      %v3269 = vunpack.c.0.s8 %v3268
      %v3270 = vlaneseq
      %v3271 = vshrl.u32 %v3270, 7
      %v3272 = vsub.s32 %v3269, %v3271
      %v3273 = vrot.slane %v3257, %v3272
      %3274 = vrot.lane.b32.xlu0 %v3266, 108
      %v3275 = vpop.permute.xlu0 %3274
      %3276 = vrot.lane.b32.xlu0 %v3273, 108
      %v3277 = vpop.permute.xlu0 %3276
      %v3278 = vrot.slane %v3275, 4
      %v3279 = vrot.slane %v3277, 4
      %v3280 = vsel %vm640, %v3278, %v3279
      %v3281 = vsel %vm763, %v3275, %v3280
      %3284 = vst [vmem:[#allocation2 + $0x84] sm:$0xcc] %v3281
      %3285 = vst.msk [vmem:[#allocation2 + $0x8c] sm:$0xc] %vm647, %v3277
      %v3286 = vld [vmem:[%s565] sm:$0x3f]
      %v3288 = vcombine.high %v3286, %v3286
      %v3290 = vunpack.c.l.s4 1983009808
      %v3291 = vunpack.c.0.s8 %v3290
      %v3292 = vlaneseq
      %v3293 = vshrl.u32 %v3292, 7
      %v3294 = vsub.s32 %v3291, %v3293
      %v3295 = vrot.slane %v3286, %v3294
      %v3297 = vunpack.c.l.s4 1983009808
      %v3298 = vunpack.c.0.s8 %v3297
      %v3299 = vlaneseq
      %v3300 = vshrl.u32 %v3299, 7
      %v3301 = vsub.s32 %v3298, %v3300
      %v3302 = vrot.slane %v3288, %v3301
      %3303 = vrot.lane.b32.xlu0 %v3295, 92
      %v3304 = vpop.permute.xlu0 %3303
      %3305 = vrot.lane.b32.xlu0 %v3302, 92
      %v3306 = vpop.permute.xlu0 %3305
      %v3307 = vrot.slane %v3304, 4
      %v3308 = vrot.slane %v3306, 4
      %v3309 = vsel %vm640, %v3307, %v3308
      %v3310 = vsel %vm793, %v3304, %v3309
      %3313 = vst [vmem:[#allocation2 + $0x90] sm:$0x33] %v3310
      %3314 = vst.msk [vmem:[#allocation2 + $0x98] sm:$0x3] %vm615, %v3306
      %v3315 = vld [vmem:[%s565] sm:$0x3f]
      %v3317 = vcombine.low %v3315, %v3315
      %v3319 = vunpack.c.l.s4 1983009808
      %v3320 = vunpack.c.0.s8 %v3319
      %v3321 = vlaneseq
      %v3322 = vshrl.u32 %v3321, 7
      %v3323 = vsub.s32 %v3320, %v3322
      %v3324 = vrot.slane %v3317, %v3323
      %v3326 = vunpack.c.l.s4 1983009808
      %v3327 = vunpack.c.0.s8 %v3326
      %v3328 = vlaneseq
      %v3329 = vshrl.u32 %v3328, 7
      %v3330 = vsub.s32 %v3327, %v3329
      %v3331 = vrot.slane %v3315, %v3330
      %3332 = vrot.lane.b32.xlu0 %v3324, 91
      %v3333 = vpop.permute.xlu0 %3332
      %3334 = vrot.lane.b32.xlu0 %v3331, 91
      %v3335 = vpop.permute.xlu0 %3334
      %v3336 = vrot.slane %v3333, 4
      %v3337 = vrot.slane %v3335, 4
      %v3338 = vsel %vm640, %v3336, %v3337
      %v3339 = vsel %vm823, %v3333, %v3338
      %3342 = vst [vmem:[#allocation2 + $0x90] sm:$0xcc] %v3339
      %3343 = vst.msk [vmem:[#allocation2 + $0x98] sm:$0xc] %vm647, %v3335
      %v3344 = vld [vmem:[%s565] sm:$0x3f]
      %v3346 = vcombine.high %v3344, %v3344
      %v3348 = vunpack.c.l.s4 1983009808
      %v3349 = vunpack.c.0.s8 %v3348
      %v3350 = vlaneseq
      %v3351 = vshrl.u32 %v3350, 7
      %v3352 = vsub.s32 %v3349, %v3351
      %v3353 = vrot.slane %v3344, %v3352
      %v3355 = vunpack.c.l.s4 1983009808
      %v3356 = vunpack.c.0.s8 %v3355
      %v3357 = vlaneseq
      %v3358 = vshrl.u32 %v3357, 7
      %v3359 = vsub.s32 %v3356, %v3358
      %v3360 = vrot.slane %v3346, %v3359
      %3361 = vrot.lane.b32.xlu0 %v3353, 90
      %v3362 = vpop.permute.xlu0 %3361
      %3363 = vrot.lane.b32.xlu0 %v3360, 90
      %v3364 = vpop.permute.xlu0 %3363
      %v3365 = vrot.slane %v3362, 4
      %v3366 = vrot.slane %v3364, 4
      %v3367 = vsel %vm640, %v3365, %v3366
      %v3368 = vsel %vm853, %v3362, %v3367
      %3371 = vst [vmem:[#allocation2 + $0x9c] sm:$0x33] %v3368
      %3372 = vst.msk [vmem:[#allocation2 + $0xa4] sm:$0x3] %vm615, %v3364
      %v3373 = vld [vmem:[#allocation2] sm:$0xff]
      %v3374 = vld [vmem:[#allocation2 + $0x8] sm:$0xf]
      %v3375 = vld [vmem:[#allocation2 + $0xc] sm:$0xff]
      %v3376 = vld [vmem:[#allocation2 + $0x14] sm:$0xf]
      %v3377 = vld [vmem:[#allocation2 + $0x18] sm:$0xff]
      %v3378 = vld [vmem:[#allocation2 + $0x20] sm:$0xf]
      %v3379 = vld [vmem:[#allocation2 + $0x24] sm:$0xff]
      %v3380 = vld [vmem:[#allocation2 + $0x2c] sm:$0xf]
      %v3381 = vld [vmem:[#allocation2 + $0x30] sm:$0xff]
      %v3382 = vld [vmem:[#allocation2 + $0x38] sm:$0xf]
      %v3383 = vld [vmem:[#allocation2 + $0x3c] sm:$0xff]
      %v3384 = vld [vmem:[#allocation2 + $0x44] sm:$0xf]
      %v3385 = vld [vmem:[#allocation2 + $0x48] sm:$0xff]
      %v3386 = vld [vmem:[#allocation2 + $0x50] sm:$0xf]
      %v3387 = vld [vmem:[#allocation2 + $0x54] sm:$0xff]
      %v3388 = vld [vmem:[#allocation2 + $0x5c] sm:$0xf]
      %v3389 = vld [vmem:[#allocation2 + $0x60] sm:$0xff]
      %v3390 = vld [vmem:[#allocation2 + $0x68] sm:$0xf]
      %v3391 = vld [vmem:[#allocation2 + $0x6c] sm:$0xff]
      %v3392 = vld [vmem:[#allocation2 + $0x74] sm:$0xf]
      %v3393 = vld [vmem:[#allocation2 + $0x78] sm:$0xff]
      %v3394 = vld [vmem:[#allocation2 + $0x80] sm:$0xf]
      %v3395 = vld [vmem:[#allocation2 + $0x84] sm:$0xff]
      %v3396 = vld [vmem:[#allocation2 + $0x8c] sm:$0xf]
      %v3397 = vld [vmem:[#allocation2 + $0x90] sm:$0xff]
      %v3398 = vld [vmem:[#allocation2 + $0x98] sm:$0xf]
      %v3399 = vld [vmem:[#allocation2 + $0x9c] sm:$0x33]
      %v3400 = vld [vmem:[#allocation2 + $0xa4] sm:$0x3]
      %v3429 = vunpack.c.l.b16 %v3373
      %v3430 = vunpack.c.h.b16 %v3373
      %v3431 = vunpack.c.l.b16 %v3374
      %v3432 = vunpack.c.l.b16 %v3375
      %v3433 = vunpack.c.h.b16 %v3375
      %v3434 = vunpack.c.l.b16 %v3376
      %v3435 = vunpack.c.l.b16 %v3377
      %v3436 = vunpack.c.h.b16 %v3377
      %v3437 = vunpack.c.l.b16 %v3378
      %v3438 = vunpack.c.l.b16 %v3379
      %v3439 = vunpack.c.h.b16 %v3379
      %v3440 = vunpack.c.l.b16 %v3380
      %v3441 = vunpack.c.l.b16 %v3381
      %v3442 = vunpack.c.h.b16 %v3381
      %v3443 = vunpack.c.l.b16 %v3382
      %v3444 = vunpack.c.l.b16 %v3383
      %v3445 = vunpack.c.h.b16 %v3383
      %v3446 = vunpack.c.l.b16 %v3384
      %v3447 = vunpack.c.l.b16 %v3385
      %v3448 = vunpack.c.h.b16 %v3385
      %v3449 = vunpack.c.l.b16 %v3386
      %v3450 = vunpack.c.l.b16 %v3387
      %v3451 = vunpack.c.h.b16 %v3387
      %v3452 = vunpack.c.l.b16 %v3388
      %v3453 = vunpack.c.l.b16 %v3389
      %v3454 = vunpack.c.h.b16 %v3389
      %v3455 = vunpack.c.l.b16 %v3390
      %v3456 = vunpack.c.l.b16 %v3391
      %v3457 = vunpack.c.h.b16 %v3391
      %v3458 = vunpack.c.l.b16 %v3392
      %v3459 = vunpack.c.l.b16 %v3393
      %v3460 = vunpack.c.h.b16 %v3393
      %v3461 = vunpack.c.l.b16 %v3394
      %v3462 = vunpack.c.l.b16 %v3395
      %v3463 = vunpack.c.h.b16 %v3395
      %v3464 = vunpack.c.l.b16 %v3396
      %v3465 = vunpack.c.l.b16 %v3397
      %v3466 = vunpack.c.h.b16 %v3397
      %v3467 = vunpack.c.l.b16 %v3398
      %v3468 = vunpack.c.l.b16 %v3399
      %v3469 = vunpack.c.h.b16 %v3399
      %v3470 = vunpack.c.l.b16 %v3400
      %v3471 = vpack.c.b16 %v3432, %v3429
      %v3472 = vpack.c.b16 %v3433, %v3430
      %v3473 = vpack.c.b16 %v3434, %v3431
      %v3474 = vpack.c.b16 %v3438, %v3435
      %v3475 = vpack.c.b16 %v3439, %v3436
      %v3476 = vpack.c.b16 %v3440, %v3437
      %v3477 = vpack.c.b16 %v3444, %v3441
      %v3478 = vpack.c.b16 %v3445, %v3442
      %v3479 = vpack.c.b16 %v3446, %v3443
      %v3480 = vpack.c.b16 %v3450, %v3447
      %v3481 = vpack.c.b16 %v3451, %v3448
      %v3482 = vpack.c.b16 %v3452, %v3449
      %v3483 = vpack.c.b16 %v3456, %v3453
      %v3484 = vpack.c.b16 %v3457, %v3454
      %v3485 = vpack.c.b16 %v3458, %v3455
      %v3486 = vpack.c.b16 %v3462, %v3459
      %v3487 = vpack.c.b16 %v3463, %v3460
      %v3488 = vpack.c.b16 %v3464, %v3461
      %v3489 = vpack.c.b16 %v3468, %v3465
      %v3490 = vpack.c.b16 %v3469, %v3466
      %v3491 = vpack.c.b16 %v3470, %v3467
      %v3511 = vsel %vm1511, %v3489, 0
      %v3514 = vsel %vm1511, %v3490, 0
      %v3517 = vsel %vm1511, %v3491, 0
      %3519 = vmatprep.subr.bf16.mxu0 %v3472
      %3520 = vmatpush1.bf16.msra.mxu0 %v3471
      %3521 = vmatprep.subr.bf16.mxu0 %v3475
      %3522 = vmatpush1.bf16.msra.mxu0 %v3474
      %3523 = vmatprep.subr.bf16.mxu0 %v3478
      %3524 = vmatpush1.bf16.msra.mxu0 %v3477
      %3525 = vmatprep.subr.bf16.mxu0 %v3481
      %3526 = vmatpush1.bf16.msra.mxu0 %v3480
      %3527 = vmatprep.subr.bf16.mxu0 %v3484
      %3528 = vmatpush1.bf16.msra.mxu0 %v3483
      %3529 = vmatprep.subr.bf16.mxu0 %v3487
      %3530 = vmatpush1.bf16.msra.mxu0 %v3486
      %3531 = vmatprep.subr.bf16.mxu0 %v3514
      %3532 = vmatpush1.bf16.msra.mxu0 %v3511
      %3533 = vmatprep.subr.bf16.mxu0 0
      %3534 = vmatpush1.bf16.msra.mxu0 0
      %3535 = vmatprep.subr.bf16.mxu0 0
      %3536 = vmatpush1.bf16.msra.mxu0 0
      %3537 = vmatprep.subr.bf16.mxu0 0
      %3538 = vmatpush1.bf16.msra.mxu0 0
      %3539 = vmatprep.subr.bf16.mxu0 0
      %3540 = vmatpush1.bf16.msra.mxu0 0
      %3541 = vmatprep.subr.bf16.mxu0 0
      %3542 = vmatpush1.bf16.msra.mxu0 0
      %3543 = vmatprep.subr.bf16.mxu0 0
      %3544 = vmatpush1.bf16.msra.mxu0 0
      %3545 = vmatprep.subr.bf16.mxu0 0
      %3546 = vmatpush1.bf16.msra.mxu0 0
      %3547 = vmatprep.subr.bf16.mxu0 0
      %3548 = vmatpush1.bf16.msra.mxu0 0
      %3549 = vmatprep.subr.bf16.mxu0 0
      %3550 = vmatpush1.bf16.msra.mxu0 0
      %3551 = vmatprep.mubr.bf16.mxu0 0
      %3552 = vmatmul.mubr.bf16.gmra.mrb[0].mxu0 %v1509
      %v3553 = vpop.f32.mrb[0].mxu0
      %v3554 = vadd.f32 %v1396, %v3553
      %v3555 = vpop.f32.mrb[0].mxu0
      %v3556 = vadd.f32 %v1396, %v3555
      %v3557 = vpop.f32.mrb[0].mxu0
      %v3558 = vpop.f32.mrb[0].mxu0
      %3559 = vdwg.mxu0
      %3560 = vmatprep.subr.bf16.mxu0 0
      %3561 = vmatpush1.bf16.msra.mxu0 %v3473
      %3562 = vmatprep.subr.bf16.mxu0 0
      %3563 = vmatpush1.bf16.msra.mxu0 %v3476
      %3564 = vmatprep.subr.bf16.mxu0 0
      %3565 = vmatpush1.bf16.msra.mxu0 %v3479
      %3566 = vmatprep.subr.bf16.mxu0 0
      %3567 = vmatpush1.bf16.msra.mxu0 %v3482
      %3568 = vmatprep.subr.bf16.mxu0 0
      %3569 = vmatpush1.bf16.msra.mxu0 %v3485
      %3570 = vmatprep.subr.bf16.mxu0 0
      %3571 = vmatpush1.bf16.msra.mxu0 %v3488
      %3572 = vmatprep.subr.bf16.mxu0 0
      %3573 = vmatpush1.bf16.msra.mxu0 %v3517
      %3574 = vmatprep.subr.bf16.mxu0 0
      %3575 = vmatpush1.bf16.msra.mxu0 0
      %3576 = vmatprep.subr.bf16.mxu0 0
      %3577 = vmatpush1.bf16.msra.mxu0 0
      %3578 = vmatprep.subr.bf16.mxu0 0
      %3579 = vmatpush1.bf16.msra.mxu0 0
      %3580 = vmatprep.subr.bf16.mxu0 0
      %3581 = vmatpush1.bf16.msra.mxu0 0
      %3582 = vmatprep.subr.bf16.mxu0 0
      %3583 = vmatpush1.bf16.msra.mxu0 0
      %3584 = vmatprep.subr.bf16.mxu0 0
      %3585 = vmatpush1.bf16.msra.mxu0 0
      %3586 = vmatprep.subr.bf16.mxu0 0
      %3587 = vmatpush1.bf16.msra.mxu0 0
      %3588 = vmatprep.subr.bf16.mxu0 0
      %3589 = vmatpush1.bf16.msra.mxu0 0
      %3590 = vmatprep.subr.bf16.mxu0 0
      %3591 = vmatpush1.bf16.msra.mxu0 0
      %3592 = vmatprep.mubr.bf16.mxu0 0
      %3593 = vmatmul.mubr.bf16.gmra.mrb[0].mxu0 %v1509
      %v3594 = vpop.f32.mrb[0].mxu0
      %v3595 = vadd.f32 %v1396, %v3594
      %v3596 = vpop.f32.mrb[0].mxu0
      %v3597 = vpop.f32.mrb[0].mxu0
      %v3598 = vpop.f32.mrb[0].mxu0
      %3599 = vdwg.mxu0
      %vm3600 = vcmp.gt.f32.partialorder %v3554, 0.0
      %vm3601 = vcmp.gt.f32.partialorder %v3556, 0.0
      %vm3602 = vcmp.gt.f32.partialorder %v3595, 0.0
      %v3603 = vmul.f32 %v3554, 0.01
      %v3604 = vmul.f32 %v3556, 0.01
      %v3605 = vmul.f32 %v3595, 0.01
      %v3606 = vsel %vm3600, %v3554, %v3603
      %v3607 = vsel %vm3601, %v3556, %v3604
      %v3608 = vsel %vm3602, %v3595, %v3605
      %s3609 = scalar_lea.vmem %s590, 48
      %3610 = vst [vmem:[%s3609] sm:$0xff] %v3606
      %3611 = vst [vmem:[%s3609 + $0x8] sm:$0xff] %v3607
      %3612 = vst.msk [vmem:[%s3609 + $0x10] sm:$0xff] %vm1613, %v3608
      %v3613 = vld [vmem:[%s552] sm:$0x3f]
      %v3615 = vcombine.high %v3613, %v3613
      %v3617 = vunpack.c.l.s4 1983009808
      %v3618 = vunpack.c.0.s8 %v3617
      %v3619 = vlaneseq
      %v3620 = vshrl.u32 %v3619, 7
      %v3621 = vsub.s32 %v3618, %v3620
      %v3622 = vrot.slane %v3613, %v3621
      %v3624 = vunpack.c.l.s4 1983009808
      %v3625 = vunpack.c.0.s8 %v3624
      %v3626 = vlaneseq
      %v3627 = vshrl.u32 %v3626, 7
      %v3628 = vsub.s32 %v3625, %v3627
      %v3629 = vrot.slane %v3615, %v3628
      %3632 = vst [vmem:[#allocation2] sm:$0x33] %v3622
      %3633 = vst.msk [vmem:[#allocation2 + $0x8] sm:$0x3] %vm615, %v3629
      %v3634 = vld [vmem:[%s552] sm:$0x3f]
      %v3636 = vcombine.low %v3634, %v3634
      %v3638 = vunpack.c.l.s4 1983009808
      %v3639 = vunpack.c.0.s8 %v3638
      %v3640 = vlaneseq
      %v3641 = vshrl.u32 %v3640, 7
      %v3642 = vsub.s32 %v3639, %v3641
      %v3643 = vrot.slane %v3636, %v3642
      %v3645 = vunpack.c.l.s4 1983009808
      %v3646 = vunpack.c.0.s8 %v3645
      %v3647 = vlaneseq
      %v3648 = vshrl.u32 %v3647, 7
      %v3649 = vsub.s32 %v3646, %v3648
      %v3650 = vrot.slane %v3634, %v3649
      %3651 = vrot.lane.b32.xlu0 %v3643, 127
      %v3652 = vpop.permute.xlu0 %3651
      %3653 = vrot.lane.b32.xlu0 %v3650, 127
      %v3654 = vpop.permute.xlu0 %3653
      %v3655 = vrot.slane %v3652, 4
      %v3656 = vrot.slane %v3654, 4
      %v3657 = vsel %vm640, %v3655, %v3656
      %v3658 = vsel %vm642, %v3652, %v3657
      %3661 = vst [vmem:[#allocation2] sm:$0xcc] %v3658
      %3662 = vst.msk [vmem:[#allocation2 + $0x8] sm:$0xc] %vm647, %v3654
      %v3663 = vld [vmem:[%s552] sm:$0x3f]
      %v3665 = vcombine.high %v3663, %v3663
      %v3667 = vunpack.c.l.s4 1983009808
      %v3668 = vunpack.c.0.s8 %v3667
      %v3669 = vlaneseq
      %v3670 = vshrl.u32 %v3669, 7
      %v3671 = vsub.s32 %v3668, %v3670
      %v3672 = vrot.slane %v3663, %v3671
      %v3674 = vunpack.c.l.s4 1983009808
      %v3675 = vunpack.c.0.s8 %v3674
      %v3676 = vlaneseq
      %v3677 = vshrl.u32 %v3676, 7
      %v3678 = vsub.s32 %v3675, %v3677
      %v3679 = vrot.slane %v3665, %v3678
      %3680 = vrot.lane.b32.xlu0 %v3672, 126
      %v3681 = vpop.permute.xlu0 %3680
      %3682 = vrot.lane.b32.xlu0 %v3679, 126
      %v3683 = vpop.permute.xlu0 %3682
      %v3684 = vrot.slane %v3681, 4
      %v3685 = vrot.slane %v3683, 4
      %v3686 = vsel %vm640, %v3684, %v3685
      %v3687 = vsel %vm673, %v3681, %v3686
      %3690 = vst [vmem:[#allocation2 + $0xc] sm:$0x33] %v3687
      %3691 = vst.msk [vmem:[#allocation2 + $0x14] sm:$0x3] %vm615, %v3683
      %v3692 = vld [vmem:[%s552] sm:$0x3f]
      %v3694 = vcombine.low %v3692, %v3692
      %v3696 = vunpack.c.l.s4 1983009808
      %v3697 = vunpack.c.0.s8 %v3696
      %v3698 = vlaneseq
      %v3699 = vshrl.u32 %v3698, 7
      %v3700 = vsub.s32 %v3697, %v3699
      %v3701 = vrot.slane %v3694, %v3700
      %v3703 = vunpack.c.l.s4 1983009808
      %v3704 = vunpack.c.0.s8 %v3703
      %v3705 = vlaneseq
      %v3706 = vshrl.u32 %v3705, 7
      %v3707 = vsub.s32 %v3704, %v3706
      %v3708 = vrot.slane %v3692, %v3707
      %3709 = vrot.lane.b32.xlu0 %v3701, 110
      %v3710 = vpop.permute.xlu0 %3709
      %3711 = vrot.lane.b32.xlu0 %v3708, 110
      %v3712 = vpop.permute.xlu0 %3711
      %v3713 = vrot.slane %v3710, 4
      %v3714 = vrot.slane %v3712, 4
      %v3715 = vsel %vm640, %v3713, %v3714
      %v3716 = vsel %vm703, %v3710, %v3715
      %3719 = vst [vmem:[#allocation2 + $0xc] sm:$0xcc] %v3716
      %3720 = vst.msk [vmem:[#allocation2 + $0x14] sm:$0xc] %vm647, %v3712
      %v3721 = vld [vmem:[%s552] sm:$0x3f]
      %v3723 = vcombine.high %v3721, %v3721
      %v3725 = vunpack.c.l.s4 1983009808
      %v3726 = vunpack.c.0.s8 %v3725
      %v3727 = vlaneseq
      %v3728 = vshrl.u32 %v3727, 7
      %v3729 = vsub.s32 %v3726, %v3728
      %v3730 = vrot.slane %v3721, %v3729
      %v3732 = vunpack.c.l.s4 1983009808
      %v3733 = vunpack.c.0.s8 %v3732
      %v3734 = vlaneseq
      %v3735 = vshrl.u32 %v3734, 7
      %v3736 = vsub.s32 %v3733, %v3735
      %v3737 = vrot.slane %v3723, %v3736
      %3738 = vrot.lane.b32.xlu0 %v3730, 109
      %v3739 = vpop.permute.xlu0 %3738
      %3740 = vrot.lane.b32.xlu0 %v3737, 109
      %v3741 = vpop.permute.xlu0 %3740
      %v3742 = vrot.slane %v3739, 4
      %v3743 = vrot.slane %v3741, 4
      %v3744 = vsel %vm640, %v3742, %v3743
      %v3745 = vsel %vm733, %v3739, %v3744
      %3748 = vst [vmem:[#allocation2 + $0x18] sm:$0x33] %v3745
      %3749 = vst.msk [vmem:[#allocation2 + $0x20] sm:$0x3] %vm615, %v3741
      %v3750 = vld [vmem:[%s552] sm:$0x3f]
      %v3752 = vcombine.low %v3750, %v3750
      %v3754 = vunpack.c.l.s4 1983009808
      %v3755 = vunpack.c.0.s8 %v3754
      %v3756 = vlaneseq
      %v3757 = vshrl.u32 %v3756, 7
      %v3758 = vsub.s32 %v3755, %v3757
      %v3759 = vrot.slane %v3752, %v3758
      %v3761 = vunpack.c.l.s4 1983009808
      %v3762 = vunpack.c.0.s8 %v3761
      %v3763 = vlaneseq
      %v3764 = vshrl.u32 %v3763, 7
      %v3765 = vsub.s32 %v3762, %v3764
      %v3766 = vrot.slane %v3750, %v3765
      %3767 = vrot.lane.b32.xlu0 %v3759, 108
      %v3768 = vpop.permute.xlu0 %3767
      %3769 = vrot.lane.b32.xlu0 %v3766, 108
      %v3770 = vpop.permute.xlu0 %3769
      %v3771 = vrot.slane %v3768, 4
      %v3772 = vrot.slane %v3770, 4
      %v3773 = vsel %vm640, %v3771, %v3772
      %v3774 = vsel %vm763, %v3768, %v3773
      %3777 = vst [vmem:[#allocation2 + $0x18] sm:$0xcc] %v3774
      %3778 = vst.msk [vmem:[#allocation2 + $0x20] sm:$0xc] %vm647, %v3770
      %v3779 = vld [vmem:[%s552] sm:$0x3f]
      %v3781 = vcombine.high %v3779, %v3779
      %v3783 = vunpack.c.l.s4 1983009808
      %v3784 = vunpack.c.0.s8 %v3783
      %v3785 = vlaneseq
      %v3786 = vshrl.u32 %v3785, 7
      %v3787 = vsub.s32 %v3784, %v3786
      %v3788 = vrot.slane %v3779, %v3787
      %v3790 = vunpack.c.l.s4 1983009808
      %v3791 = vunpack.c.0.s8 %v3790
      %v3792 = vlaneseq
      %v3793 = vshrl.u32 %v3792, 7
      %v3794 = vsub.s32 %v3791, %v3793
      %v3795 = vrot.slane %v3781, %v3794
      %3796 = vrot.lane.b32.xlu0 %v3788, 92
      %v3797 = vpop.permute.xlu0 %3796
      %3798 = vrot.lane.b32.xlu0 %v3795, 92
      %v3799 = vpop.permute.xlu0 %3798
      %v3800 = vrot.slane %v3797, 4
      %v3801 = vrot.slane %v3799, 4
      %v3802 = vsel %vm640, %v3800, %v3801
      %v3803 = vsel %vm793, %v3797, %v3802
      %3806 = vst [vmem:[#allocation2 + $0x24] sm:$0x33] %v3803
      %3807 = vst.msk [vmem:[#allocation2 + $0x2c] sm:$0x3] %vm615, %v3799
      %v3808 = vld [vmem:[%s552] sm:$0x3f]
      %v3810 = vcombine.low %v3808, %v3808
      %v3812 = vunpack.c.l.s4 1983009808
      %v3813 = vunpack.c.0.s8 %v3812
      %v3814 = vlaneseq
      %v3815 = vshrl.u32 %v3814, 7
      %v3816 = vsub.s32 %v3813, %v3815
      %v3817 = vrot.slane %v3810, %v3816
      %v3819 = vunpack.c.l.s4 1983009808
      %v3820 = vunpack.c.0.s8 %v3819
      %v3821 = vlaneseq
      %v3822 = vshrl.u32 %v3821, 7
      %v3823 = vsub.s32 %v3820, %v3822
      %v3824 = vrot.slane %v3808, %v3823
      %3825 = vrot.lane.b32.xlu0 %v3817, 91
      %v3826 = vpop.permute.xlu0 %3825
      %3827 = vrot.lane.b32.xlu0 %v3824, 91
      %v3828 = vpop.permute.xlu0 %3827
      %v3829 = vrot.slane %v3826, 4
      %v3830 = vrot.slane %v3828, 4
      %v3831 = vsel %vm640, %v3829, %v3830
      %v3832 = vsel %vm823, %v3826, %v3831
      %3835 = vst [vmem:[#allocation2 + $0x24] sm:$0xcc] %v3832
      %3836 = vst.msk [vmem:[#allocation2 + $0x2c] sm:$0xc] %vm647, %v3828
      %v3837 = vld [vmem:[%s552] sm:$0x3f]
      %v3839 = vcombine.high %v3837, %v3837
      %v3841 = vunpack.c.l.s4 1983009808
      %v3842 = vunpack.c.0.s8 %v3841
      %v3843 = vlaneseq
      %v3844 = vshrl.u32 %v3843, 7
      %v3845 = vsub.s32 %v3842, %v3844
      %v3846 = vrot.slane %v3837, %v3845
      %v3848 = vunpack.c.l.s4 1983009808
      %v3849 = vunpack.c.0.s8 %v3848
      %v3850 = vlaneseq
      %v3851 = vshrl.u32 %v3850, 7
      %v3852 = vsub.s32 %v3849, %v3851
      %v3853 = vrot.slane %v3839, %v3852
      %3854 = vrot.lane.b32.xlu0 %v3846, 90
      %v3855 = vpop.permute.xlu0 %3854
      %3856 = vrot.lane.b32.xlu0 %v3853, 90
      %v3857 = vpop.permute.xlu0 %3856
      %v3858 = vrot.slane %v3855, 4
      %v3859 = vrot.slane %v3857, 4
      %v3860 = vsel %vm640, %v3858, %v3859
      %v3861 = vsel %vm853, %v3855, %v3860
      %3864 = vst [vmem:[#allocation2 + $0x30] sm:$0x33] %v3861
      %3865 = vst.msk [vmem:[#allocation2 + $0x38] sm:$0x3] %vm615, %v3857
      %v3866 = vld [vmem:[%s565] sm:$0x3f]
      %v3868 = vcombine.low %v3866, %v3866
      %v3870 = vunpack.c.l.s4 1983009808
      %v3871 = vunpack.c.0.s8 %v3870
      %v3872 = vlaneseq
      %v3873 = vshrl.u32 %v3872, 7
      %v3874 = vsub.s32 %v3871, %v3873
      %v3875 = vrot.slane %v3868, %v3874
      %v3877 = vunpack.c.l.s4 1983009808
      %v3878 = vunpack.c.0.s8 %v3877
      %v3879 = vlaneseq
      %v3880 = vshrl.u32 %v3879, 7
      %v3881 = vsub.s32 %v3878, %v3880
      %v3882 = vrot.slane %v3866, %v3881
      %3885 = vst [vmem:[#allocation2 + $0x30] sm:$0xcc] %v3875
      %3886 = vst.msk [vmem:[#allocation2 + $0x38] sm:$0xc] %vm647, %v3882
      %v3887 = vld [vmem:[%s565] sm:$0x3f]
      %v3889 = vcombine.high %v3887, %v3887
      %v3891 = vunpack.c.l.s4 1983009808
      %v3892 = vunpack.c.0.s8 %v3891
      %v3893 = vlaneseq
      %v3894 = vshrl.u32 %v3893, 7
      %v3895 = vsub.s32 %v3892, %v3894
      %v3896 = vrot.slane %v3887, %v3895
      %v3898 = vunpack.c.l.s4 1983009808
      %v3899 = vunpack.c.0.s8 %v3898
      %v3900 = vlaneseq
      %v3901 = vshrl.u32 %v3900, 7
      %v3902 = vsub.s32 %v3899, %v3901
      %v3903 = vrot.slane %v3889, %v3902
      %3904 = vrot.lane.b32.xlu0 %v3896, 127
      %v3905 = vpop.permute.xlu0 %3904
      %3906 = vrot.lane.b32.xlu0 %v3903, 127
      %v3907 = vpop.permute.xlu0 %3906
      %v3908 = vrot.slane %v3905, 4
      %v3909 = vrot.slane %v3907, 4
      %v3910 = vsel %vm640, %v3908, %v3909
      %v3911 = vsel %vm642, %v3905, %v3910
      %3914 = vst [vmem:[#allocation2 + $0x3c] sm:$0x33] %v3911
      %3915 = vst.msk [vmem:[#allocation2 + $0x44] sm:$0x3] %vm615, %v3907
      %v3916 = vld [vmem:[%s565] sm:$0x3f]
      %v3918 = vcombine.low %v3916, %v3916
      %v3920 = vunpack.c.l.s4 1983009808
      %v3921 = vunpack.c.0.s8 %v3920
      %v3922 = vlaneseq
      %v3923 = vshrl.u32 %v3922, 7
      %v3924 = vsub.s32 %v3921, %v3923
      %v3925 = vrot.slane %v3918, %v3924
      %v3927 = vunpack.c.l.s4 1983009808
      %v3928 = vunpack.c.0.s8 %v3927
      %v3929 = vlaneseq
      %v3930 = vshrl.u32 %v3929, 7
      %v3931 = vsub.s32 %v3928, %v3930
      %v3932 = vrot.slane %v3916, %v3931
      %3933 = vrot.lane.b32.xlu0 %v3925, 126
      %v3934 = vpop.permute.xlu0 %3933
      %3935 = vrot.lane.b32.xlu0 %v3932, 126
      %v3936 = vpop.permute.xlu0 %3935
      %v3937 = vrot.slane %v3934, 4
      %v3938 = vrot.slane %v3936, 4
      %v3939 = vsel %vm640, %v3937, %v3938
      %v3940 = vsel %vm673, %v3934, %v3939
      %3943 = vst [vmem:[#allocation2 + $0x3c] sm:$0xcc] %v3940
      %3944 = vst.msk [vmem:[#allocation2 + $0x44] sm:$0xc] %vm647, %v3936
      %v3945 = vld [vmem:[%s565] sm:$0x3f]
      %v3947 = vcombine.high %v3945, %v3945
      %v3949 = vunpack.c.l.s4 1983009808
      %v3950 = vunpack.c.0.s8 %v3949
      %v3951 = vlaneseq
      %v3952 = vshrl.u32 %v3951, 7
      %v3953 = vsub.s32 %v3950, %v3952
      %v3954 = vrot.slane %v3945, %v3953
      %v3956 = vunpack.c.l.s4 1983009808
      %v3957 = vunpack.c.0.s8 %v3956
      %v3958 = vlaneseq
      %v3959 = vshrl.u32 %v3958, 7
      %v3960 = vsub.s32 %v3957, %v3959
      %v3961 = vrot.slane %v3947, %v3960
      %3962 = vrot.lane.b32.xlu0 %v3954, 110
      %v3963 = vpop.permute.xlu0 %3962
      %3964 = vrot.lane.b32.xlu0 %v3961, 110
      %v3965 = vpop.permute.xlu0 %3964
      %v3966 = vrot.slane %v3963, 4
      %v3967 = vrot.slane %v3965, 4
      %v3968 = vsel %vm640, %v3966, %v3967
      %v3969 = vsel %vm703, %v3963, %v3968
      %3972 = vst [vmem:[#allocation2 + $0x48] sm:$0x33] %v3969
      %3973 = vst.msk [vmem:[#allocation2 + $0x50] sm:$0x3] %vm615, %v3965
      %v3974 = vld [vmem:[%s565] sm:$0x3f]
      %v3976 = vcombine.low %v3974, %v3974
      %v3978 = vunpack.c.l.s4 1983009808
      %v3979 = vunpack.c.0.s8 %v3978
      %v3980 = vlaneseq
      %v3981 = vshrl.u32 %v3980, 7
      %v3982 = vsub.s32 %v3979, %v3981
      %v3983 = vrot.slane %v3976, %v3982
      %v3985 = vunpack.c.l.s4 1983009808
      %v3986 = vunpack.c.0.s8 %v3985
      %v3987 = vlaneseq
      %v3988 = vshrl.u32 %v3987, 7
      %v3989 = vsub.s32 %v3986, %v3988
      %v3990 = vrot.slane %v3974, %v3989
      %3991 = vrot.lane.b32.xlu0 %v3983, 109
      %v3992 = vpop.permute.xlu0 %3991
      %3993 = vrot.lane.b32.xlu0 %v3990, 109
      %v3994 = vpop.permute.xlu0 %3993
      %v3995 = vrot.slane %v3992, 4
      %v3996 = vrot.slane %v3994, 4
      %v3997 = vsel %vm640, %v3995, %v3996
      %v3998 = vsel %vm733, %v3992, %v3997
      %4001 = vst [vmem:[#allocation2 + $0x48] sm:$0xcc] %v3998
      %4002 = vst.msk [vmem:[#allocation2 + $0x50] sm:$0xc] %vm647, %v3994
      %v4003 = vld [vmem:[%s565] sm:$0x3f]
      %v4005 = vcombine.high %v4003, %v4003
      %v4007 = vunpack.c.l.s4 1983009808
      %v4008 = vunpack.c.0.s8 %v4007
      %v4009 = vlaneseq
      %v4010 = vshrl.u32 %v4009, 7
      %v4011 = vsub.s32 %v4008, %v4010
      %v4012 = vrot.slane %v4003, %v4011
      %v4014 = vunpack.c.l.s4 1983009808
      %v4015 = vunpack.c.0.s8 %v4014
      %v4016 = vlaneseq
      %v4017 = vshrl.u32 %v4016, 7
      %v4018 = vsub.s32 %v4015, %v4017
      %v4019 = vrot.slane %v4005, %v4018
      %4020 = vrot.lane.b32.xlu0 %v4012, 108
      %v4021 = vpop.permute.xlu0 %4020
      %4022 = vrot.lane.b32.xlu0 %v4019, 108
      %v4023 = vpop.permute.xlu0 %4022
      %v4024 = vrot.slane %v4021, 4
      %v4025 = vrot.slane %v4023, 4
      %v4026 = vsel %vm640, %v4024, %v4025
      %v4027 = vsel %vm763, %v4021, %v4026
      %4030 = vst [vmem:[#allocation2 + $0x54] sm:$0x33] %v4027
      %4031 = vst.msk [vmem:[#allocation2 + $0x5c] sm:$0x3] %vm615, %v4023
      %v4032 = vld [vmem:[%s565] sm:$0x3f]
      %v4034 = vcombine.low %v4032, %v4032
      %v4036 = vunpack.c.l.s4 1983009808
      %v4037 = vunpack.c.0.s8 %v4036
      %v4038 = vlaneseq
      %v4039 = vshrl.u32 %v4038, 7
      %v4040 = vsub.s32 %v4037, %v4039
      %v4041 = vrot.slane %v4034, %v4040
      %v4043 = vunpack.c.l.s4 1983009808
      %v4044 = vunpack.c.0.s8 %v4043
      %v4045 = vlaneseq
      %v4046 = vshrl.u32 %v4045, 7
      %v4047 = vsub.s32 %v4044, %v4046
      %v4048 = vrot.slane %v4032, %v4047
      %4049 = vrot.lane.b32.xlu0 %v4041, 92
      %v4050 = vpop.permute.xlu0 %4049
      %4051 = vrot.lane.b32.xlu0 %v4048, 92
      %v4052 = vpop.permute.xlu0 %4051
      %v4053 = vrot.slane %v4050, 4
      %v4054 = vrot.slane %v4052, 4
      %v4055 = vsel %vm640, %v4053, %v4054
      %v4056 = vsel %vm793, %v4050, %v4055
      %4059 = vst [vmem:[#allocation2 + $0x54] sm:$0xcc] %v4056
      %4060 = vst.msk [vmem:[#allocation2 + $0x5c] sm:$0xc] %vm647, %v4052
      %v4061 = vld [vmem:[%s565] sm:$0x3f]
      %v4063 = vcombine.high %v4061, %v4061
      %v4065 = vunpack.c.l.s4 1983009808
      %v4066 = vunpack.c.0.s8 %v4065
      %v4067 = vlaneseq
      %v4068 = vshrl.u32 %v4067, 7
      %v4069 = vsub.s32 %v4066, %v4068
      %v4070 = vrot.slane %v4061, %v4069
      %v4072 = vunpack.c.l.s4 1983009808
      %v4073 = vunpack.c.0.s8 %v4072
      %v4074 = vlaneseq
      %v4075 = vshrl.u32 %v4074, 7
      %v4076 = vsub.s32 %v4073, %v4075
      %v4077 = vrot.slane %v4063, %v4076
      %4078 = vrot.lane.b32.xlu0 %v4070, 91
      %v4079 = vpop.permute.xlu0 %4078
      %4080 = vrot.lane.b32.xlu0 %v4077, 91
      %v4081 = vpop.permute.xlu0 %4080
      %v4082 = vrot.slane %v4079, 4
      %v4083 = vrot.slane %v4081, 4
      %v4084 = vsel %vm640, %v4082, %v4083
      %v4085 = vsel %vm823, %v4079, %v4084
      %4088 = vst [vmem:[#allocation2 + $0x60] sm:$0x33] %v4085
      %4089 = vst.msk [vmem:[#allocation2 + $0x68] sm:$0x3] %vm615, %v4081
      %v4090 = vld [vmem:[%s565] sm:$0x3f]
      %v4092 = vcombine.low %v4090, %v4090
      %v4094 = vunpack.c.l.s4 1983009808
      %v4095 = vunpack.c.0.s8 %v4094
      %v4096 = vlaneseq
      %v4097 = vshrl.u32 %v4096, 7
      %v4098 = vsub.s32 %v4095, %v4097
      %v4099 = vrot.slane %v4092, %v4098
      %v4101 = vunpack.c.l.s4 1983009808
      %v4102 = vunpack.c.0.s8 %v4101
      %v4103 = vlaneseq
      %v4104 = vshrl.u32 %v4103, 7
      %v4105 = vsub.s32 %v4102, %v4104
      %v4106 = vrot.slane %v4090, %v4105
      %4107 = vrot.lane.b32.xlu0 %v4099, 90
      %v4108 = vpop.permute.xlu0 %4107
      %4109 = vrot.lane.b32.xlu0 %v4106, 90
      %v4110 = vpop.permute.xlu0 %4109
      %v4111 = vrot.slane %v4108, 4
      %v4112 = vrot.slane %v4110, 4
      %v4113 = vsel %vm640, %v4111, %v4112
      %v4114 = vsel %vm853, %v4108, %v4113
      %4117 = vst [vmem:[#allocation2 + $0x60] sm:$0xcc] %v4114
      %4118 = vst.msk [vmem:[#allocation2 + $0x68] sm:$0xc] %vm647, %v4110
      %v4119 = vld [vmem:[%s578] sm:$0x3f]
      %v4121 = vcombine.high %v4119, %v4119
      %v4123 = vunpack.c.l.s4 1983009808
      %v4124 = vunpack.c.0.s8 %v4123
      %v4125 = vlaneseq
      %v4126 = vshrl.u32 %v4125, 7
      %v4127 = vsub.s32 %v4124, %v4126
      %v4128 = vrot.slane %v4119, %v4127
      %v4130 = vunpack.c.l.s4 1983009808
      %v4131 = vunpack.c.0.s8 %v4130
      %v4132 = vlaneseq
      %v4133 = vshrl.u32 %v4132, 7
      %v4134 = vsub.s32 %v4131, %v4133
      %v4135 = vrot.slane %v4121, %v4134
      %4138 = vst [vmem:[#allocation2 + $0x6c] sm:$0x33] %v4128
      %4139 = vst.msk [vmem:[#allocation2 + $0x74] sm:$0x3] %vm615, %v4135
      %v4140 = vld [vmem:[%s578] sm:$0x3f]
      %v4142 = vcombine.low %v4140, %v4140
      %v4144 = vunpack.c.l.s4 1983009808
      %v4145 = vunpack.c.0.s8 %v4144
      %v4146 = vlaneseq
      %v4147 = vshrl.u32 %v4146, 7
      %v4148 = vsub.s32 %v4145, %v4147
      %v4149 = vrot.slane %v4142, %v4148
      %v4151 = vunpack.c.l.s4 1983009808
      %v4152 = vunpack.c.0.s8 %v4151
      %v4153 = vlaneseq
      %v4154 = vshrl.u32 %v4153, 7
      %v4155 = vsub.s32 %v4152, %v4154
      %v4156 = vrot.slane %v4140, %v4155
      %4157 = vrot.lane.b32.xlu0 %v4149, 127
      %v4158 = vpop.permute.xlu0 %4157
      %4159 = vrot.lane.b32.xlu0 %v4156, 127
      %v4160 = vpop.permute.xlu0 %4159
      %v4161 = vrot.slane %v4158, 4
      %v4162 = vrot.slane %v4160, 4
      %v4163 = vsel %vm640, %v4161, %v4162
      %v4164 = vsel %vm642, %v4158, %v4163
      %4167 = vst [vmem:[#allocation2 + $0x6c] sm:$0xcc] %v4164
      %4168 = vst.msk [vmem:[#allocation2 + $0x74] sm:$0xc] %vm647, %v4160
      %v4169 = vld [vmem:[%s578] sm:$0x3f]
      %v4171 = vcombine.high %v4169, %v4169
      %v4173 = vunpack.c.l.s4 1983009808
      %v4174 = vunpack.c.0.s8 %v4173
      %v4175 = vlaneseq
      %v4176 = vshrl.u32 %v4175, 7
      %v4177 = vsub.s32 %v4174, %v4176
      %v4178 = vrot.slane %v4169, %v4177
      %v4180 = vunpack.c.l.s4 1983009808
      %v4181 = vunpack.c.0.s8 %v4180
      %v4182 = vlaneseq
      %v4183 = vshrl.u32 %v4182, 7
      %v4184 = vsub.s32 %v4181, %v4183
      %v4185 = vrot.slane %v4171, %v4184
      %4186 = vrot.lane.b32.xlu0 %v4178, 126
      %v4187 = vpop.permute.xlu0 %4186
      %4188 = vrot.lane.b32.xlu0 %v4185, 126
      %v4189 = vpop.permute.xlu0 %4188
      %v4190 = vrot.slane %v4187, 4
      %v4191 = vrot.slane %v4189, 4
      %v4192 = vsel %vm640, %v4190, %v4191
      %v4193 = vsel %vm673, %v4187, %v4192
      %4196 = vst [vmem:[#allocation2 + $0x78] sm:$0x33] %v4193
      %4197 = vst.msk [vmem:[#allocation2 + $0x80] sm:$0x3] %vm615, %v4189
      %v4198 = vld [vmem:[%s578] sm:$0x3f]
      %v4200 = vcombine.low %v4198, %v4198
      %v4202 = vunpack.c.l.s4 1983009808
      %v4203 = vunpack.c.0.s8 %v4202
      %v4204 = vlaneseq
      %v4205 = vshrl.u32 %v4204, 7
      %v4206 = vsub.s32 %v4203, %v4205
      %v4207 = vrot.slane %v4200, %v4206
      %v4209 = vunpack.c.l.s4 1983009808
      %v4210 = vunpack.c.0.s8 %v4209
      %v4211 = vlaneseq
      %v4212 = vshrl.u32 %v4211, 7
      %v4213 = vsub.s32 %v4210, %v4212
      %v4214 = vrot.slane %v4198, %v4213
      %4215 = vrot.lane.b32.xlu0 %v4207, 110
      %v4216 = vpop.permute.xlu0 %4215
      %4217 = vrot.lane.b32.xlu0 %v4214, 110
      %v4218 = vpop.permute.xlu0 %4217
      %v4219 = vrot.slane %v4216, 4
      %v4220 = vrot.slane %v4218, 4
      %v4221 = vsel %vm640, %v4219, %v4220
      %v4222 = vsel %vm703, %v4216, %v4221
      %4225 = vst [vmem:[#allocation2 + $0x78] sm:$0xcc] %v4222
      %4226 = vst.msk [vmem:[#allocation2 + $0x80] sm:$0xc] %vm647, %v4218
      %v4227 = vld [vmem:[%s578] sm:$0x3f]
      %v4229 = vcombine.high %v4227, %v4227
      %v4231 = vunpack.c.l.s4 1983009808
      %v4232 = vunpack.c.0.s8 %v4231
      %v4233 = vlaneseq
      %v4234 = vshrl.u32 %v4233, 7
      %v4235 = vsub.s32 %v4232, %v4234
      %v4236 = vrot.slane %v4227, %v4235
      %v4238 = vunpack.c.l.s4 1983009808
      %v4239 = vunpack.c.0.s8 %v4238
      %v4240 = vlaneseq
      %v4241 = vshrl.u32 %v4240, 7
      %v4242 = vsub.s32 %v4239, %v4241
      %v4243 = vrot.slane %v4229, %v4242
      %4244 = vrot.lane.b32.xlu0 %v4236, 109
      %v4245 = vpop.permute.xlu0 %4244
      %4246 = vrot.lane.b32.xlu0 %v4243, 109
      %v4247 = vpop.permute.xlu0 %4246
      %v4248 = vrot.slane %v4245, 4
      %v4249 = vrot.slane %v4247, 4
      %v4250 = vsel %vm640, %v4248, %v4249
      %v4251 = vsel %vm733, %v4245, %v4250
      %4254 = vst [vmem:[#allocation2 + $0x84] sm:$0x33] %v4251
      %4255 = vst.msk [vmem:[#allocation2 + $0x8c] sm:$0x3] %vm615, %v4247
      %v4256 = vld [vmem:[%s578] sm:$0x3f]
      %v4258 = vcombine.low %v4256, %v4256
      %v4260 = vunpack.c.l.s4 1983009808
      %v4261 = vunpack.c.0.s8 %v4260
      %v4262 = vlaneseq
      %v4263 = vshrl.u32 %v4262, 7
      %v4264 = vsub.s32 %v4261, %v4263
      %v4265 = vrot.slane %v4258, %v4264
      %v4267 = vunpack.c.l.s4 1983009808
      %v4268 = vunpack.c.0.s8 %v4267
      %v4269 = vlaneseq
      %v4270 = vshrl.u32 %v4269, 7
      %v4271 = vsub.s32 %v4268, %v4270
      %v4272 = vrot.slane %v4256, %v4271
      %4273 = vrot.lane.b32.xlu0 %v4265, 108
      %v4274 = vpop.permute.xlu0 %4273
      %4275 = vrot.lane.b32.xlu0 %v4272, 108
      %v4276 = vpop.permute.xlu0 %4275
      %v4277 = vrot.slane %v4274, 4
      %v4278 = vrot.slane %v4276, 4
      %v4279 = vsel %vm640, %v4277, %v4278
      %v4280 = vsel %vm763, %v4274, %v4279
      %4283 = vst [vmem:[#allocation2 + $0x84] sm:$0xcc] %v4280
      %4284 = vst.msk [vmem:[#allocation2 + $0x8c] sm:$0xc] %vm647, %v4276
      %v4285 = vld [vmem:[%s578] sm:$0x3f]
      %v4287 = vcombine.high %v4285, %v4285
      %v4289 = vunpack.c.l.s4 1983009808
      %v4290 = vunpack.c.0.s8 %v4289
      %v4291 = vlaneseq
      %v4292 = vshrl.u32 %v4291, 7
      %v4293 = vsub.s32 %v4290, %v4292
      %v4294 = vrot.slane %v4285, %v4293
      %v4296 = vunpack.c.l.s4 1983009808
      %v4297 = vunpack.c.0.s8 %v4296
      %v4298 = vlaneseq
      %v4299 = vshrl.u32 %v4298, 7
      %v4300 = vsub.s32 %v4297, %v4299
      %v4301 = vrot.slane %v4287, %v4300
      %4302 = vrot.lane.b32.xlu0 %v4294, 92
      %v4303 = vpop.permute.xlu0 %4302
      %4304 = vrot.lane.b32.xlu0 %v4301, 92
      %v4305 = vpop.permute.xlu0 %4304
      %v4306 = vrot.slane %v4303, 4
      %v4307 = vrot.slane %v4305, 4
      %v4308 = vsel %vm640, %v4306, %v4307
      %v4309 = vsel %vm793, %v4303, %v4308
      %4312 = vst [vmem:[#allocation2 + $0x90] sm:$0x33] %v4309
      %4313 = vst.msk [vmem:[#allocation2 + $0x98] sm:$0x3] %vm615, %v4305
      %v4314 = vld [vmem:[%s578] sm:$0x3f]
      %v4316 = vcombine.low %v4314, %v4314
      %v4318 = vunpack.c.l.s4 1983009808
      %v4319 = vunpack.c.0.s8 %v4318
      %v4320 = vlaneseq
      %v4321 = vshrl.u32 %v4320, 7
      %v4322 = vsub.s32 %v4319, %v4321
      %v4323 = vrot.slane %v4316, %v4322
      %v4325 = vunpack.c.l.s4 1983009808
      %v4326 = vunpack.c.0.s8 %v4325
      %v4327 = vlaneseq
      %v4328 = vshrl.u32 %v4327, 7
      %v4329 = vsub.s32 %v4326, %v4328
      %v4330 = vrot.slane %v4314, %v4329
      %4331 = vrot.lane.b32.xlu0 %v4323, 91
      %v4332 = vpop.permute.xlu0 %4331
      %4333 = vrot.lane.b32.xlu0 %v4330, 91
      %v4334 = vpop.permute.xlu0 %4333
      %v4335 = vrot.slane %v4332, 4
      %v4336 = vrot.slane %v4334, 4
      %v4337 = vsel %vm640, %v4335, %v4336
      %v4338 = vsel %vm823, %v4332, %v4337
      %4341 = vst [vmem:[#allocation2 + $0x90] sm:$0xcc] %v4338
      %4342 = vst.msk [vmem:[#allocation2 + $0x98] sm:$0xc] %vm647, %v4334
      %v4343 = vld [vmem:[%s578] sm:$0x3f]
      %v4345 = vcombine.high %v4343, %v4343
      %v4347 = vunpack.c.l.s4 1983009808
      %v4348 = vunpack.c.0.s8 %v4347
      %v4349 = vlaneseq
      %v4350 = vshrl.u32 %v4349, 7
      %v4351 = vsub.s32 %v4348, %v4350
      %v4352 = vrot.slane %v4343, %v4351
      %v4354 = vunpack.c.l.s4 1983009808
      %v4355 = vunpack.c.0.s8 %v4354
      %v4356 = vlaneseq
      %v4357 = vshrl.u32 %v4356, 7
      %v4358 = vsub.s32 %v4355, %v4357
      %v4359 = vrot.slane %v4345, %v4358
      %4360 = vrot.lane.b32.xlu0 %v4352, 90
      %v4361 = vpop.permute.xlu0 %4360
      %4362 = vrot.lane.b32.xlu0 %v4359, 90
      %v4363 = vpop.permute.xlu0 %4362
      %v4364 = vrot.slane %v4361, 4
      %v4365 = vrot.slane %v4363, 4
      %v4366 = vsel %vm640, %v4364, %v4365
      %v4367 = vsel %vm853, %v4361, %v4366
      %4370 = vst [vmem:[#allocation2 + $0x9c] sm:$0x33] %v4367
      %4371 = vst.msk [vmem:[#allocation2 + $0xa4] sm:$0x3] %vm615, %v4363
      %v4372 = vld [vmem:[#allocation2] sm:$0xff]
      %v4373 = vld [vmem:[#allocation2 + $0x8] sm:$0xf]
      %v4374 = vld [vmem:[#allocation2 + $0xc] sm:$0xff]
      %v4375 = vld [vmem:[#allocation2 + $0x14] sm:$0xf]
      %v4376 = vld [vmem:[#allocation2 + $0x18] sm:$0xff]
      %v4377 = vld [vmem:[#allocation2 + $0x20] sm:$0xf]
      %v4378 = vld [vmem:[#allocation2 + $0x24] sm:$0xff]
      %v4379 = vld [vmem:[#allocation2 + $0x2c] sm:$0xf]
      %v4380 = vld [vmem:[#allocation2 + $0x30] sm:$0xff]
      %v4381 = vld [vmem:[#allocation2 + $0x38] sm:$0xf]
      %v4382 = vld [vmem:[#allocation2 + $0x3c] sm:$0xff]
      %v4383 = vld [vmem:[#allocation2 + $0x44] sm:$0xf]
      %v4384 = vld [vmem:[#allocation2 + $0x48] sm:$0xff]
      %v4385 = vld [vmem:[#allocation2 + $0x50] sm:$0xf]
      %v4386 = vld [vmem:[#allocation2 + $0x54] sm:$0xff]
      %v4387 = vld [vmem:[#allocation2 + $0x5c] sm:$0xf]
      %v4388 = vld [vmem:[#allocation2 + $0x60] sm:$0xff]
      %v4389 = vld [vmem:[#allocation2 + $0x68] sm:$0xf]
      %v4390 = vld [vmem:[#allocation2 + $0x6c] sm:$0xff]
      %v4391 = vld [vmem:[#allocation2 + $0x74] sm:$0xf]
      %v4392 = vld [vmem:[#allocation2 + $0x78] sm:$0xff]
      %v4393 = vld [vmem:[#allocation2 + $0x80] sm:$0xf]
      %v4394 = vld [vmem:[#allocation2 + $0x84] sm:$0xff]
      %v4395 = vld [vmem:[#allocation2 + $0x8c] sm:$0xf]
      %v4396 = vld [vmem:[#allocation2 + $0x90] sm:$0xff]
      %v4397 = vld [vmem:[#allocation2 + $0x98] sm:$0xf]
      %v4398 = vld [vmem:[#allocation2 + $0x9c] sm:$0x33]
      %v4399 = vld [vmem:[#allocation2 + $0xa4] sm:$0x3]
      %v4428 = vunpack.c.l.b16 %v4372
      %v4429 = vunpack.c.h.b16 %v4372
      %v4430 = vunpack.c.l.b16 %v4373
      %v4431 = vunpack.c.l.b16 %v4374
      %v4432 = vunpack.c.h.b16 %v4374
      %v4433 = vunpack.c.l.b16 %v4375
      %v4434 = vunpack.c.l.b16 %v4376
      %v4435 = vunpack.c.h.b16 %v4376
      %v4436 = vunpack.c.l.b16 %v4377
      %v4437 = vunpack.c.l.b16 %v4378
      %v4438 = vunpack.c.h.b16 %v4378
      %v4439 = vunpack.c.l.b16 %v4379
      %v4440 = vunpack.c.l.b16 %v4380
      %v4441 = vunpack.c.h.b16 %v4380
      %v4442 = vunpack.c.l.b16 %v4381
      %v4443 = vunpack.c.l.b16 %v4382
      %v4444 = vunpack.c.h.b16 %v4382
      %v4445 = vunpack.c.l.b16 %v4383
      %v4446 = vunpack.c.l.b16 %v4384
      %v4447 = vunpack.c.h.b16 %v4384
      %v4448 = vunpack.c.l.b16 %v4385
      %v4449 = vunpack.c.l.b16 %v4386
      %v4450 = vunpack.c.h.b16 %v4386
      %v4451 = vunpack.c.l.b16 %v4387
      %v4452 = vunpack.c.l.b16 %v4388
      %v4453 = vunpack.c.h.b16 %v4388
      %v4454 = vunpack.c.l.b16 %v4389
      %v4455 = vunpack.c.l.b16 %v4390
      %v4456 = vunpack.c.h.b16 %v4390
      %v4457 = vunpack.c.l.b16 %v4391
      %v4458 = vunpack.c.l.b16 %v4392
      %v4459 = vunpack.c.h.b16 %v4392
      %v4460 = vunpack.c.l.b16 %v4393
      %v4461 = vunpack.c.l.b16 %v4394
      %v4462 = vunpack.c.h.b16 %v4394
      %v4463 = vunpack.c.l.b16 %v4395
      %v4464 = vunpack.c.l.b16 %v4396
      %v4465 = vunpack.c.h.b16 %v4396
      %v4466 = vunpack.c.l.b16 %v4397
      %v4467 = vunpack.c.l.b16 %v4398
      %v4468 = vunpack.c.h.b16 %v4398
      %v4469 = vunpack.c.l.b16 %v4399
      %v4470 = vpack.c.b16 %v4431, %v4428
      %v4471 = vpack.c.b16 %v4432, %v4429
      %v4472 = vpack.c.b16 %v4433, %v4430
      %v4473 = vpack.c.b16 %v4437, %v4434
      %v4474 = vpack.c.b16 %v4438, %v4435
      %v4475 = vpack.c.b16 %v4439, %v4436
      %v4476 = vpack.c.b16 %v4443, %v4440
      %v4477 = vpack.c.b16 %v4444, %v4441
      %v4478 = vpack.c.b16 %v4445, %v4442
      %v4479 = vpack.c.b16 %v4449, %v4446
      %v4480 = vpack.c.b16 %v4450, %v4447
      %v4481 = vpack.c.b16 %v4451, %v4448
      %v4482 = vpack.c.b16 %v4455, %v4452
      %v4483 = vpack.c.b16 %v4456, %v4453
      %v4484 = vpack.c.b16 %v4457, %v4454
      %v4485 = vpack.c.b16 %v4461, %v4458
      %v4486 = vpack.c.b16 %v4462, %v4459
      %v4487 = vpack.c.b16 %v4463, %v4460
      %v4488 = vpack.c.b16 %v4467, %v4464
      %v4489 = vpack.c.b16 %v4468, %v4465
      %v4490 = vpack.c.b16 %v4469, %v4466
      %v4510 = vsel %vm1511, %v4488, 0
      %v4513 = vsel %vm1511, %v4489, 0
      %v4516 = vsel %vm1511, %v4490, 0
      %4518 = vmatprep.subr.bf16.mxu0 %v4471
      %4519 = vmatpush1.bf16.msra.mxu0 %v4470
      %4520 = vmatprep.subr.bf16.mxu0 %v4474
      %4521 = vmatpush1.bf16.msra.mxu0 %v4473
      %4522 = vmatprep.subr.bf16.mxu0 %v4477
      %4523 = vmatpush1.bf16.msra.mxu0 %v4476
      %4524 = vmatprep.subr.bf16.mxu0 %v4480
      %4525 = vmatpush1.bf16.msra.mxu0 %v4479
      %4526 = vmatprep.subr.bf16.mxu0 %v4483
      %4527 = vmatpush1.bf16.msra.mxu0 %v4482
      %4528 = vmatprep.subr.bf16.mxu0 %v4486
      %4529 = vmatpush1.bf16.msra.mxu0 %v4485
      %4530 = vmatprep.subr.bf16.mxu0 %v4513
      %4531 = vmatpush1.bf16.msra.mxu0 %v4510
      %4532 = vmatprep.subr.bf16.mxu0 0
      %4533 = vmatpush1.bf16.msra.mxu0 0
      %4534 = vmatprep.subr.bf16.mxu0 0
      %4535 = vmatpush1.bf16.msra.mxu0 0
      %4536 = vmatprep.subr.bf16.mxu0 0
      %4537 = vmatpush1.bf16.msra.mxu0 0
      %4538 = vmatprep.subr.bf16.mxu0 0
      %4539 = vmatpush1.bf16.msra.mxu0 0
      %4540 = vmatprep.subr.bf16.mxu0 0
      %4541 = vmatpush1.bf16.msra.mxu0 0
      %4542 = vmatprep.subr.bf16.mxu0 0
      %4543 = vmatpush1.bf16.msra.mxu0 0
      %4544 = vmatprep.subr.bf16.mxu0 0
      %4545 = vmatpush1.bf16.msra.mxu0 0
      %4546 = vmatprep.subr.bf16.mxu0 0
      %4547 = vmatpush1.bf16.msra.mxu0 0
      %4548 = vmatprep.subr.bf16.mxu0 0
      %4549 = vmatpush1.bf16.msra.mxu0 0
      %4550 = vmatprep.mubr.bf16.mxu0 0
      %4551 = vmatmul.mubr.bf16.gmra.mrb[0].mxu0 %v1509
      %v4552 = vpop.f32.mrb[0].mxu0
      %v4553 = vadd.f32 %v1396, %v4552
      %v4554 = vpop.f32.mrb[0].mxu0
      %v4555 = vadd.f32 %v1396, %v4554
      %v4556 = vpop.f32.mrb[0].mxu0
      %v4557 = vpop.f32.mrb[0].mxu0
      %4558 = vdwg.mxu0
      %4559 = vmatprep.subr.bf16.mxu0 0
      %4560 = vmatpush1.bf16.msra.mxu0 %v4472
      %4561 = vmatprep.subr.bf16.mxu0 0
      %4562 = vmatpush1.bf16.msra.mxu0 %v4475
      %4563 = vmatprep.subr.bf16.mxu0 0
      %4564 = vmatpush1.bf16.msra.mxu0 %v4478
      %4565 = vmatprep.subr.bf16.mxu0 0
      %4566 = vmatpush1.bf16.msra.mxu0 %v4481
      %4567 = vmatprep.subr.bf16.mxu0 0
      %4568 = vmatpush1.bf16.msra.mxu0 %v4484
      %4569 = vmatprep.subr.bf16.mxu0 0
      %4570 = vmatpush1.bf16.msra.mxu0 %v4487
      %4571 = vmatprep.subr.bf16.mxu0 0
      %4572 = vmatpush1.bf16.msra.mxu0 %v4516
      %4573 = vmatprep.subr.bf16.mxu0 0
      %4574 = vmatpush1.bf16.msra.mxu0 0
      %4575 = vmatprep.subr.bf16.mxu0 0
      %4576 = vmatpush1.bf16.msra.mxu0 0
      %4577 = vmatprep.subr.bf16.mxu0 0
      %4578 = vmatpush1.bf16.msra.mxu0 0
      %4579 = vmatprep.subr.bf16.mxu0 0
      %4580 = vmatpush1.bf16.msra.mxu0 0
      %4581 = vmatprep.subr.bf16.mxu0 0
      %4582 = vmatpush1.bf16.msra.mxu0 0
      %4583 = vmatprep.subr.bf16.mxu0 0
      %4584 = vmatpush1.bf16.msra.mxu0 0
      %4585 = vmatprep.subr.bf16.mxu0 0
      %4586 = vmatpush1.bf16.msra.mxu0 0
      %4587 = vmatprep.subr.bf16.mxu0 0
      %4588 = vmatpush1.bf16.msra.mxu0 0
      %4589 = vmatprep.subr.bf16.mxu0 0
      %4590 = vmatpush1.bf16.msra.mxu0 0
      %4591 = vmatprep.mubr.bf16.mxu0 0
      %4592 = vmatmul.mubr.bf16.gmra.mrb[0].mxu0 %v1509
      %v4593 = vpop.f32.mrb[0].mxu0
      %v4594 = vadd.f32 %v1396, %v4593
      %v4595 = vpop.f32.mrb[0].mxu0
      %v4596 = vpop.f32.mrb[0].mxu0
      %v4597 = vpop.f32.mrb[0].mxu0
      %4598 = vdwg.mxu0
      %vm4599 = vcmp.gt.f32.partialorder %v4553, 0.0
      %vm4600 = vcmp.gt.f32.partialorder %v4555, 0.0
      %vm4601 = vcmp.gt.f32.partialorder %v4594, 0.0
      %v4602 = vmul.f32 %v4553, 0.01
      %v4603 = vmul.f32 %v4555, 0.01
      %v4604 = vmul.f32 %v4594, 0.01
      %v4605 = vsel %vm4599, %v4553, %v4602
      %v4606 = vsel %vm4600, %v4555, %v4603
      %v4607 = vsel %vm4601, %v4594, %v4604
      %s4608 = scalar_lea.vmem %s590, 72
      %4609 = vst [vmem:[%s4608] sm:$0xff] %v4605
      %4610 = vst [vmem:[%s4608 + $0x8] sm:$0xff] %v4606
      %4611 = vst.msk [vmem:[%s4608 + $0x10] sm:$0xff] %vm1613, %v4607
      %s4612 = smul.u32 4, %s24
      %p4613 = scmp.lt.s32.totalorder %s23, 1
      %s4614 = scalar_select %p4613, %s23, 1
      %p4615 = scmp.lt.s32.totalorder %s4612, 7
      %s4616 = scalar_select %p4615, %s4612, 7
      %s4617 = smul.addr %s4616, 3
      %s4618 = smul.addr %s4614, 24
      %s4619 = sadd.s32 %s4617, %s4618
      %s4620 = smul.addr %s4619, 8
      %s4621 = scalar_lea.vmem %s8, %s4620
      // Predicated region
      $region53: #{conv_bn_relu3d.1} parent=51 // pred_check
        %p4622 = pneg %p283
      $region54: #{conv_bn_relu3d.1} parent=51 // pred_check_branch
        %4624 = sbr.rel (%p4622) target = $region56
      $region55: #{conv_bn_relu3d.1} parent=51 // pred_region
        %s4625 = smul.u32 4, %s24
      $region56: #{conv_bn_relu3d.1} parent=51 // pred_fallthru
        _
    $region52: #{conv_bn_relu3d.1} parent=5 // pred_fallthru
      _
    %p4626 = scmp.le.s32.totalorder 2, %s14
    // Predicated region
    $region57: #{conv_bn_relu3d.1} parent=5 // pred_check
      %p4627 = pneg %p4626
    $region58: #{conv_bn_relu3d.1} parent=5 // pred_check_branch
      %4629 = sbr.rel (%p4627) target = $region60
    $region59: #{conv_bn_relu3d.1} parent=5 // pred_region
      %s4630 = ssub.s32 %s14, 2
      // Predicated region
      $region61: #{conv_bn_relu3d.1} parent=59 // pred_check
        %p4631 = pneg %p289
      $region62: #{conv_bn_relu3d.1} parent=59 // pred_check_branch
        %4633 = sbr.rel (%p4631) target = $region64
      $region63: #{conv_bn_relu3d.1} parent=59 // pred_region
        %s4634 = smul.u32 4, %s26
        %p4635 = scmp.lt.s32.totalorder %s25, 1
        %s4636 = scalar_select %p4635, %s25, 1
        %p4637 = scmp.lt.s32.totalorder %s4634, 7
        %s4638 = scalar_select %p4637, %s4634, 7
        %s4639 = smul.addr %s4638, 3
        %s4640 = smul.addr %s4636, 24
        %s4641 = sadd.s32 %s4639, %s4640
        %s4642 = smul.addr %s4641, 8
        %s4643 = scalar_lea.vmem %s8, %s4642
      $region64: #{conv_bn_relu3d.1} parent=59 // pred_fallthru
        _
    $region60: #{conv_bn_relu3d.1} parent=5 // pred_fallthru
      _
  $region6: #{conv_bn_relu3d.1} parent=0 // loop_footer
    %s18 = sadd.s32 1, %s14
  $region7: #{conv_bn_relu3d.1} parent=0 // loop_footer_branch
    %13 = sbr.rel target = $region3
  $region8: #{conv_bn_relu3d.1} parent=0 // loop_exit
    _

</llo_original>
